<compile_context>
chip_gen: v6e
topology: v6e:2x2x1
jax: 0.10.0
libtpu: 0.0.40
codegen_flags: <defaults>
</compile_context>

<pallas_src>
import functools
import numpy as np
import jax
import jax.numpy as jnp
from jax import lax
from jax.experimental import pallas as pl
from jax.experimental.pallas import tpu as pltpu


def _wmsa_kernel(x_ref, wqkv_ref, bqkv_ref, rel_ref, wproj_ref, bproj_ref,
                 *rest, n_head, head_dim, n_win, n_tok, n_mask_win,
                 has_mask, has_dw):
    """One grid step == a block of `n_win` windows.

    Block shapes seen inside the kernel (Cp = padded channels, Np = padded tokens):
      x_ref     : (T, Cp)        bf16   T = n_win * Np
      wqkv_ref  : (Cp, 3*Cp)     bf16   fused [Wq|Wk|Wv], q pre-scaled
      bqkv_ref  : (1, 3*Cp)      f32    fused biases (q pre-scaled, k zeroed)
      rel_ref   : (H, Np, Np)    f32    relative-position bias (pad keys = -1e9)
      wproj_ref : (Cp, Cp)       bf16
      bproj_ref : (1, Cp)        f32
      [mask_ref : (nW, Np, Np)   f32 ]
      [dw_ref   : (T, Cp)        bf16]
      out_ref   : (T, Cp)        caller dtype
      qkv_scr   : (T, 3*Cp)      bf16   VMEM scratch
      o_scr     : (T, Cp)        bf16   VMEM scratch (per-head output "concat")
    """
    rest = list(rest)
    mask_ref = rest.pop(0) if has_mask else None
    dw_ref = rest.pop(0) if has_dw else None
    out_ref, qkv_scr, o_scr = rest

    H, hd, WB, Np, nW = n_head, head_dim, n_win, n_tok, n_mask_win
    T, Cp = x_ref.shape
    C = H * hd                       # real (unpadded) channel count
    f32, bf16 = jnp.float32, jnp.bfloat16

    # ---- fused q/k/v projection: one full-width MXU matmul ------------------
    qkv = jnp.dot(x_ref[...], wqkv_ref[...], preferred_element_type=f32)
    qkv = qkv + bqkv_ref[...]                       # (T, 3*Cp) + (1, 3*Cp)
    qkv_scr[...] = qkv.astype(bf16)

    # Padded output channels are never written by the head loop; zero them so
    # the final matmul never multiplies garbage (wproj rows there are zero).
    if Cp > C:
        o_scr[:, C:Cp] = jnp.zeros((T, Cp - C), bf16)

    # ---- per-head attention (static, unrolled) -------------------------------
    for h in range(H):
        c0 = h * hd
        q_h = qkv_scr[:, c0:c0 + hd].reshape(WB, Np, hd)                 # bf16
        k_h = qkv_scr[:, Cp + c0:Cp + c0 + hd].reshape(WB, Np, hd)
        v_h = qkv_scr[:, 2 * Cp + c0:2 * Cp + c0 + hd].reshape(WB, Np, hd)

        s = lax.dot_general(q_h, k_h, (((2,), (2,)), ((0,), (0,))),
                            preferred_element_type=f32)                 # (WB,Np,Np)
        s = s + rel_ref[h][None]                                         # rel bias
        if has_mask:
            s = (s.reshape(WB // nW, nW, Np, Np)
                 + mask_ref[...][None]).reshape(WB, Np, Np)              # swin mask

        m = jnp.max(s, axis=-1, keepdims=True)
        p = jnp.exp(s - m)
        denom = jnp.sum(p, axis=-1, keepdims=True)
        p = (p * pl.reciprocal(denom, approx=True)).astype(bf16)

        o_h = lax.dot_general(p, v_h, (((2,), (1,)), ((0,), (0,))),
                              preferred_element_type=f32)               # (WB,Np,hd)
        # in-place "concat over heads": write this head's output columns
        o_scr[:, c0:c0 + hd] = o_h.reshape(T, hd).astype(bf16)

    # ---- output projection: a single C-contraction on the MXU ---------------
    o_full = o_scr[...]                                                  # (T, Cp)
    if has_dw:
        o_full = o_full + dw_ref[...]           # torch adds dw before proj_out
    y = jnp.dot(o_full, wproj_ref[...], preferred_element_type=f32) + bproj_ref[...]
    out_ref[...] = y.astype(out_ref.dtype)      # lane-dense store (Cp % 128 == 0)


def window_attention(x, params, *, window_size, n_head, mask=None, dw=None,
                     qk_scale=None, max_windows_per_block=64):
    """Pallas wrapper reproducing the window-attention forward.

    x:    (B_, N, C) with N == window_size * window_size
    mask: (nW, N, N) or None
    dw:   anything reshapeable to (B_, N, C) or None
    Returns (out, 0, 0, 0) like the PyTorch module.
    """
    B_, N, C = x.shape
    assert window_size * window_size == N, "input feature has wrong size"
    H = n_head
    hd = C // H
    assert hd * H == C, "dim must be divisible by n_head"
    scale = qk_scale if qk_scale is not None else hd ** (-0.5)
    f32, cdt = jnp.float32, jnp.bfloat16
    out_dtype = x.dtype
    out_bytes = int(np.dtype(out_dtype).itemsize)

    wqkv, bqkv, wproj, bproj, rel_table, rel_index = params

    has_mask, has_dw = mask is not None, dw is not None
    nW = 1 if mask is None else int(mask.shape[0])
    if has_mask:
        assert B_ % nW == 0, "batch of windows must be a multiple of nW"

    # ---- layout padding: tokens -> multiple of 8, channels -> multiple of 128
    Np = -(-N // 8) * 8
    Cp = -(-C // 128) * 128

    # ---- VMEM budget -> windows-per-block (WB) and scoped VMEM limit --------
    cap = 64 * 1024 * 1024                       # conservative default (v7x per-TC)
    try:
        cap = int(getattr(pltpu.get_tpu_info(), "vmem_capacity_bytes", cap) or cap)
    except Exception:
        pass
    vmem_limit = max(32 << 20, min(int(cap * 0.8), 112 << 20))
    budget = int(vmem_limit * 0.75)

    resident = 2 * (Cp * 3 * Cp * 2 + Cp * Cp * 2 + 3 * Cp * 4 + Cp * 4
                    + H * Np * Np * 4 + (nW * Np * Np * 4 if has_mask else 0))
    per_win = (Np * Cp * 2 * 2                       # x tile (bf16, double-buffered)
               + Np * Cp * out_bytes * 2             # out tile
               + (Np * Cp * 2 * 2 if has_dw else 0)  # dw tile
               + Np * 3 * Cp * (4 + 2)               # qkv f32 temp + bf16 scratch
               + Np * Cp * 2                         # per-head output scratch
               + 4 * Np * Np * 4)                    # softmax temporaries
    wb_cap = max(nW, (budget - resident) // max(per_win, 1))
    wb_cap = min(int(wb_cap), int(max_windows_per_block), B_)
    if B_ // nW >= 2:                                # keep >= 2 grid steps (v7x: 2 TCs)
        wb_cap = min(wb_cap, B_ // 2)
    WB = nW
    for cand in range(wb_cap, nW - 1, -1):
        if B_ % cand == 0 and cand % nW == 0:
            WB = cand
            break
    T = WB * Np
    assert T % 8 == 0
    grid = (B_ // WB,)

    # ---- parameter preprocessing (glue, outside the hot loop) ---------------
    pad_w = lambda w: jnp.pad(w, ((0, Cp - C), (0, Cp - C)))
    pad_v = lambda v: jnp.pad(v, (0, Cp - C))

    # Fused qkv weight (q block pre-scaled).  The k bias is dropped: it only
    # shifts every logit row by q_i . b_k, which softmax cancels exactly.
    w_fused = jnp.concatenate(
        [pad_w(wqkv[:, :C] * scale), pad_w(wqkv[:, C:2 * C]), pad_w(wqkv[:, 2 * C:])],
        axis=1).astype(cdt)                                            # (Cp, 3Cp)
    b_fused = jnp.concatenate(
        [pad_v((bqkv[:C] * scale).astype(f32)),
         jnp.zeros((Cp,), f32),
         pad_v(bqkv[2 * C:].astype(f32))]).reshape(1, 3 * Cp)          # (1, 3Cp)

    wproj_p = pad_w(wproj).astype(cdt)                                  # (Cp, Cp)
    bproj_p = pad_v(bproj.astype(f32)).reshape(1, Cp)

    # Relative-position bias (H, Np, Np); padded key/query slots get -1e9 so
    # the softmax ignores padded tokens.
    rel_bias = rel_table[rel_index.reshape(-1)]
    rel_bias = rel_bias.reshape(N, N, H).transpose(2, 0, 1).astype(f32)
    rel_bias = jnp.pad(rel_bias, ((0, 0), (0, Np - N), (0, Np - N)),
                       constant_values=-1e9)

    xp = jnp.pad(x, ((0, 0), (0, Np - N), (0, Cp - C)))
    xp = xp.reshape(B_ * Np, Cp).astype(cdt)

    inputs = [xp, w_fused, b_fused, rel_bias, wproj_p, bproj_p]
    if has_mask:
        inputs.append(jnp.pad(mask.astype(f32),
                              ((0, 0), (0, Np - N), (0, Np - N))))
    if has_dw:
        dwp = jnp.pad(jnp.asarray(dw).reshape(B_, N, C).astype(f32),
                      ((0, 0), (0, Np - N), (0, Cp - C)))
        inputs.append(dwp.reshape(B_ * Np, Cp).astype(cdt))

    # Advisory cost estimate so XLA can schedule around the custom call.
    try:
        flops = (2 * B_ * Np * Cp * 3 * Cp            # fused qkv projection
                 + 4 * B_ * H * Np * Np * hd          # scores + attn @ v
                 + 2 * B_ * Np * Cp * Cp)             # output projection
        bytes_accessed = (B_ * Np * Cp * (2 + out_bytes + (2 if has_dw else 0))
                          + grid[0] * (3 * Cp * Cp + Cp * Cp) * 2)
        cost = pl.CostEstimate(flops=int(flops),
                               transcendentals=int(B_ * H * Np * Np),
                               bytes_accessed=int(bytes_accessed))
    except Exception:
        cost = None

    kernel = functools.partial(
        _wmsa_kernel, n_head=H, head_dim=hd, n_win=WB, n_tok=Np, n_mask_win=nW,
        has_mask=has_mask, has_dw=has_dw)

    def build(single_buffer_weights):
        # Constant-index weight/bias blocks: request single buffering (halves
        # their VMEM footprint) when supported.
        wkw = dict(pipeline_mode=pl.Buffered(1)) if single_buffer_weights else {}
        in_specs = [
            pl.BlockSpec((T, Cp), lambda b: (b, 0)),                    # x
            pl.BlockSpec((Cp, 3 * Cp), lambda b: (0, 0), **wkw),        # fused Wqkv
            pl.BlockSpec((1, 3 * Cp), lambda b: (0, 0), **wkw),         # fused bqkv
            pl.BlockSpec((H, Np, Np), lambda b: (0, 0, 0), **wkw),      # rel bias
            pl.BlockSpec((Cp, Cp), lambda b: (0, 0), **wkw),            # Wproj
            pl.BlockSpec((1, Cp), lambda b: (0, 0), **wkw),             # bproj
        ]
        if has_mask:
            in_specs.append(pl.BlockSpec((nW, Np, Np), lambda b: (0, 0, 0), **wkw))
        if has_dw:
            in_specs.append(pl.BlockSpec((T, Cp), lambda b: (b, 0)))
        return pl.pallas_call(
            kernel,
            out_shape=jax.ShapeDtypeStruct((B_ * Np, Cp), out_dtype),
            grid_spec=pltpu.PrefetchScalarGridSpec(
                num_scalar_prefetch=0,
                grid=grid,
                in_specs=in_specs,
                out_specs=pl.BlockSpec((T, Cp), lambda b: (b, 0)),
                scratch_shapes=[pltpu.VMEM((T, 3 * Cp), cdt),   # fused qkv
                                pltpu.VMEM((T, Cp), cdt)]),     # per-head outputs
            compiler_params=pltpu.CompilerParams(
                dimension_semantics=("parallel",),
                vmem_limit_bytes=vmem_limit),
            cost_estimate=cost,
        )

    try:
        out = jax.block_until_ready(build(True)(*inputs))
    except Exception:
        # Fallback if single-buffered pipeline_mode is not supported.
        out = build(False)(*inputs)

    out = out.reshape(B_, Np, Cp)[:, :N, :C]
    return out, 0, 0, 0


def make_params(key, dim, window_size, n_head):
    """Deterministic parameter init matching the module's shapes.

    qkv.weight  -> stored transposed as (dim, 3*dim)
    qkv.bias    -> (3*dim,)
    proj.weight -> stored transposed as (dim, dim)
    proj.bias   -> (dim,)
    relative_position_bias_table -> ((2*Wh-1)*(2*Ww-1), n_head), std=0.02
    relative_position_index      -> (Wh*Ww, Wh*Ww) int32 buffer
    """
    Wh, Ww = window_size
    k1, k2, k3, k4, k5 = jax.random.split(key, 5)
    wqkv = jax.random.normal(k1, (dim, 3 * dim), jnp.float32) * 0.02
    bqkv = jax.random.normal(k2, (3 * dim,), jnp.float32) * 0.02
    wproj = jax.random.normal(k3, (dim, dim), jnp.float32) * 0.02
    bproj = jax.random.normal(k4, (dim,), jnp.float32) * 0.02
    rel_table = jax.random.normal(
        k5, ((2 * Wh - 1) * (2 * Ww - 1), n_head), jnp.float32) * 0.02

    # relative position index (same construction as the PyTorch buffer)
    coords_h = np.arange(Wh)
    coords_w = np.arange(Ww)
    coords = np.stack(np.meshgrid(coords_h, coords_w, indexing="ij"))  # (2,Wh,Ww)
    coords_flat = coords.reshape(2, -1)                                # (2, Wh*Ww)
    rel = coords_flat[:, :, None] - coords_flat[:, None, :]            # (2, N, N)
    rel = rel.transpose(1, 2, 0).copy()                                # (N, N, 2)
    rel[:, :, 0] += Wh - 1
    rel[:, :, 1] += Ww - 1
    rel[:, :, 0] *= 2 * Ww - 1
    rel_index = jnp.asarray(rel.sum(-1), jnp.int32)                    # (N, N)

    return (wqkv, bqkv, wproj, bproj, rel_table, rel_index)


def _reference(x, params, *, window_size, n_head, mask=None, dw=None):
    """Pure-JAX f32 reference (mirrors the PyTorch forward, no_off path)."""
    wqkv, bqkv, wproj, bproj, rel_table, rel_index = params
    B_, N, C = x.shape
    hd = C // n_head
    scale = hd ** (-0.5)
    qkv = (x @ wqkv + bqkv).reshape(B_, N, 3, n_head, hd).transpose(2, 0, 3, 1, 4)
    q, k, v = qkv[0] * scale, qkv[1], qkv[2]
    attn = jnp.einsum("bhnd,bhmd->bhnm", q, k)
    bias = rel_table[rel_index.reshape(-1)].reshape(N, N, n_head).transpose(2, 0, 1)
    attn = attn + bias[None]
    if mask is not None:
        nW = mask.shape[0]
        attn = attn.reshape(B_ // nW, nW, n_head, N, N) + mask[None, :, None]
        attn = attn.reshape(B_, n_head, N, N)
    attn = jax.nn.softmax(attn, axis=-1)
    out = jnp.einsum("bhnm,bhmd->bhnd", attn, v).transpose(0, 2, 1, 3).reshape(B_, N, C)
    if dw is not None:
        out = out + dw.reshape(B_, N, C)
    return out @ wproj + bproj


if __name__ == "__main__":
    # Small shapes consistent with the module:
    #   window 4x4 -> N = 16 tokens per window, dim = 32, 4 heads,
    #   2 distinct windows (nW=2) x batch 2 -> B_ = 4.
    dim = 32
    ws = 4
    n_head = 4
    nW = 2
    B_ = 4                      # num_windows * batch
    N = ws * ws

    key = jax.random.PRNGKey(0)
    kp, kx, km, kd = jax.random.split(key, 4)

    params = make_params(kp, dim, (ws, ws), n_head)
    x = jax.random.normal(kx, (B_, N, dim), jnp.float32)
    # shifted-window style 0/-100 mask (as Swin does)
    mask = jnp.where(jax.random.bernoulli(km, 0.5, (nW, N, N)), 0.0, -100.0)
    dw = jax.random.normal(kd, (B_, N, dim), jnp.float32)

    out, _, _, _ = window_attention(
        x, params, window_size=ws, n_head=n_head, mask=mask, dw=dw)
    out = jax.block_until_ready(out)

    ref = _reference(x, params, window_size=ws, n_head=n_head, mask=mask, dw=dw)
    assert out.shape == (B_, N, dim)
    # bf16 MXU operands (f32 accumulation) -> relaxed tolerance vs the f32 reference
    assert jnp.allclose(out, ref, atol=2e-2, rtol=2e-2), "mismatch vs reference"

    # also exercise the mask=None / dw=None specialization (no zero-tensor DMAs)
    out2, _, _, _ = window_attention(
        x, params, window_size=ws, n_head=n_head, mask=None, dw=None)
    out2 = jax.block_until_ready(out2)
    ref2 = _reference(x, params, window_size=ws, n_head=n_head)
    assert jnp.allclose(out2, ref2, atol=2e-2, rtol=2e-2), "mismatch (no mask)"

    print("KERNEL_OK")
</pallas_src>

<mosaic_0001>
module attributes {stable_mosaic.version = 11 : i64} {
  func.func @_wmsa_kernel(%arg0: i32, %arg1: memref<32x128xbf16, #tpu.memory_space<vmem>>, %arg2: memref<128x384xbf16, #tpu.memory_space<vmem>>, %arg3: memref<1x384xf32, #tpu.memory_space<vmem>>, %arg4: memref<4x16x16xf32, #tpu.memory_space<vmem>>, %arg5: memref<128x128xbf16, #tpu.memory_space<vmem>>, %arg6: memref<1x128xf32, #tpu.memory_space<vmem>>, %arg7: memref<2x16x16xf32, #tpu.memory_space<vmem>>, %arg8: memref<32x128xbf16, #tpu.memory_space<vmem>>, %arg9: memref<32x128xf32, #tpu.memory_space<vmem>>, %arg10: memref<32x384xbf16, #tpu.memory_space<vmem>>, %arg11: memref<32x128xbf16, #tpu.memory_space<vmem>>) attributes {dimension_semantics = [#tpu.dimension_semantics<parallel>], iteration_bounds = array<i64: 2>, scalar_prefetch = 0 : i64, scratch_operands = 2 : i64, tpu.core_type = #tpu.core_type<tc>, window_params = [{transform_indices = @transform_0, window_bounds = array<i64: 32, 128>}, {pipeline_mode = #tpu.pipeline_mode<synchronous>, transform_indices = @transform_1, window_bounds = array<i64: 128, 384>}, {pipeline_mode = #tpu.pipeline_mode<synchronous>, transform_indices = @transform_2, window_bounds = array<i64: 1, 384>}, {pipeline_mode = #tpu.pipeline_mode<synchronous>, transform_indices = @transform_3, window_bounds = array<i64: 4, 16, 16>}, {pipeline_mode = #tpu.pipeline_mode<synchronous>, transform_indices = @transform_4, window_bounds = array<i64: 128, 128>}, {pipeline_mode = #tpu.pipeline_mode<synchronous>, transform_indices = @transform_5, window_bounds = array<i64: 1, 128>}, {pipeline_mode = #tpu.pipeline_mode<synchronous>, transform_indices = @transform_6, window_bounds = array<i64: 2, 16, 16>}, {transform_indices = @transform_7, window_bounds = array<i64: 32, 128>}, {transform_indices = @transform_8, window_bounds = array<i64: 32, 128>}]} {
    %c0 = arith.constant 0 : index
    %c0_0 = arith.constant 0 : index
    %0 = vector.load %arg1[%c0, %c0_0] : memref<32x128xbf16, #tpu.memory_space<vmem>>, vector<32x128xbf16>
    %c0_1 = arith.constant 0 : index
    %c0_2 = arith.constant 0 : index
    %1 = vector.load %arg2[%c0_1, %c0_2] : memref<128x384xbf16, #tpu.memory_space<vmem>>, vector<128x384xbf16>
    %cst = arith.constant dense<0.000000e+00> : vector<32x384xf32>
    %2 = tpu.matmul %0, %1, %cst {dimension_numbers = #tpu.dot_dimension_numbers<[1], [0], [0], [1], [0, 0, 1, 1], [], []>} : vector<32x128xbf16>, vector<128x384xbf16>, vector<32x384xf32> -> vector<32x384xf32>
    %c0_3 = arith.constant 0 : index
    %c0_4 = arith.constant 0 : index
    %3 = vector.load %arg3[%c0_3, %c0_4] : memref<1x384xf32, #tpu.memory_space<vmem>>, vector<1x384xf32>
    %4 = vector.broadcast %3 : vector<1x384xf32> to vector<32x384xf32>
    %5 = arith.addf %2, %4 : vector<32x384xf32>
    %6 = arith.truncf %5 : vector<32x384xf32> to vector<32x384xbf16>
    %c0_5 = arith.constant 0 : index
    %c0_6 = arith.constant 0 : index
    %7 = vector.load %arg10[%c0_5, %c0_6] : memref<32x384xbf16, #tpu.memory_space<vmem>>, vector<32x384xbf16>
    tpu.vector_store %arg10[%c0_5, %c0_6], %6 {strides = array<i32>} : memref<32x384xbf16, #tpu.memory_space<vmem>>, vector<32x384xbf16>,
    %cst_7 = arith.constant 0.000000e+00 : bf16
    %8 = vector.broadcast %cst_7 : bf16 to vector<32x96xbf16>
    %c0_8 = arith.constant 0 : index
    %c32 = arith.constant 32 : index
    %9 = vector.load %arg11[%c0_8, %c32] : memref<32x128xbf16, #tpu.memory_space<vmem>>, vector<32x96xbf16>
    tpu.vector_store %arg11[%c0_8, %c32], %8 {strides = array<i32>} : memref<32x128xbf16, #tpu.memory_space<vmem>>, vector<32x96xbf16>,
    %c0_9 = arith.constant 0 : index
    %c0_10 = arith.constant 0 : index
    %10 = vector.load %arg10[%c0_9, %c0_10] : memref<32x384xbf16, #tpu.memory_space<vmem>>, vector<32x8xbf16>
    %11 = vector.shape_cast %10 : vector<32x8xbf16> to vector<2x16x8xbf16>
    %c0_11 = arith.constant 0 : index
    %c128 = arith.constant 128 : index
    %12 = vector.load %arg10[%c0_11, %c128] : memref<32x384xbf16, #tpu.memory_space<vmem>>, vector<32x8xbf16>
    %13 = vector.shape_cast %12 : vector<32x8xbf16> to vector<2x16x8xbf16>
    %c0_12 = arith.constant 0 : index
    %c256 = arith.constant 256 : index
    %14 = vector.load %arg10[%c0_12, %c256] : memref<32x384xbf16, #tpu.memory_space<vmem>>, vector<32x8xbf16>
    %15 = vector.shape_cast %14 : vector<32x8xbf16> to vector<2x16x8xbf16>
    %cst_13 = arith.constant dense<0.000000e+00> : vector<2x16x16xf32>
    %16 = tpu.matmul %11, %13, %cst_13 {dimension_numbers = #tpu.dot_dimension_numbers<[2], [2], [1], [1], [0, 0, 0, 1, 1, 1], [0], [0]>} : vector<2x16x8xbf16>, vector<2x16x8xbf16>, vector<2x16x16xf32> -> vector<2x16x16xf32>
    %c0_14 = arith.constant 0 : index
    %c0_15 = arith.constant 0 : index
    %c0_16 = arith.constant 0 : index
    %17 = vector.load %arg4[%c0_14, %c0_15, %c0_16] : memref<4x16x16xf32, #tpu.memory_space<vmem>>, vector<1x16x16xf32>
    %18 = vector.shape_cast %17 : vector<1x16x16xf32> to vector<16x16xf32>
    %19 = vector.shape_cast %18 : vector<16x16xf32> to vector<1x16x16xf32>
    %20 = vector.broadcast %19 : vector<1x16x16xf32> to vector<2x16x16xf32>
    %21 = arith.addf %16, %20 : vector<2x16x16xf32>
    %22 = vector.shape_cast %21 : vector<2x16x16xf32> to vector<1x2x16x16xf32>
    %c0_17 = arith.constant 0 : index
    %c0_18 = arith.constant 0 : index
    %c0_19 = arith.constant 0 : index
    %23 = vector.load %arg7[%c0_17, %c0_18, %c0_19] : memref<2x16x16xf32, #tpu.memory_space<vmem>>, vector<2x16x16xf32>
    %24 = vector.shape_cast %23 : vector<2x16x16xf32> to vector<1x2x16x16xf32>
    %25 = arith.addf %22, %24 : vector<1x2x16x16xf32>
    %26 = vector.shape_cast %25 : vector<1x2x16x16xf32> to vector<2x16x16xf32>
    %cst_20 = arith.constant dense<0xFF800000> : vector<2x16xf32>
    %27 = vector.multi_reduction <maximumf>, %26, %cst_20 [2] : vector<2x16x16xf32> to vector<2x16xf32>
    %28 = vector.shape_cast %27 : vector<2x16xf32> to vector<2x16x1xf32>
    %29 = vector.broadcast %28 : vector<2x16x1xf32> to vector<2x16x16xf32>
    %30 = arith.subf %26, %29 : vector<2x16x16xf32>
    %31 = math.exp %30 : vector<2x16x16xf32>
    %cst_21 = arith.constant dense<0.000000e+00> : vector<2x16xf32>
    %32 = vector.multi_reduction <add>, %31, %cst_21 [2] : vector<2x16x16xf32> to vector<2x16xf32>
    %33 = vector.shape_cast %32 : vector<2x16xf32> to vector<2x16x1xf32>
    %34 = tpu.reciprocal %33 {approx = true} : vector<2x16x1xf32> -> vector<2x16x1xf32>
    %35 = vector.broadcast %34 : vector<2x16x1xf32> to vector<2x16x16xf32>
    %36 = arith.mulf %31, %35 : vector<2x16x16xf32>
    %37 = arith.truncf %36 : vector<2x16x16xf32> to vector<2x16x16xbf16>
    %cst_22 = arith.constant dense<0.000000e+00> : vector<2x16x8xf32>
    %38 = tpu.matmul %37, %15, %cst_22 {dimension_numbers = #tpu.dot_dimension_numbers<[2], [1], [1], [2], [0, 0, 0, 1, 1, 2], [0], [0]>} : vector<2x16x16xbf16>, vector<2x16x8xbf16>, vector<2x16x8xf32> -> vector<2x16x8xf32>
    %39 = vector.shape_cast %38 : vector<2x16x8xf32> to vector<32x8xf32>
    %40 = arith.truncf %39 : vector<32x8xf32> to vector<32x8xbf16>
    %c0_23 = arith.constant 0 : index
    %c0_24 = arith.constant 0 : index
    %41 = vector.load %arg11[%c0_23, %c0_24] : memref<32x128xbf16, #tpu.memory_space<vmem>>, vector<32x8xbf16>
    tpu.vector_store %arg11[%c0_23, %c0_24], %40 {strides = array<i32>} : memref<32x128xbf16, #tpu.memory_space<vmem>>, vector<32x8xbf16>,
    %c0_25 = arith.constant 0 : index
    %c8 = arith.constant 8 : index
    %42 = vector.load %arg10[%c0_25, %c8] : memref<32x384xbf16, #tpu.memory_space<vmem>>, vector<32x8xbf16>
    %43 = vector.shape_cast %42 : vector<32x8xbf16> to vector<2x16x8xbf16>
    %c0_26 = arith.constant 0 : index
    %c136 = arith.constant 136 : index
    %44 = vector.load %arg10[%c0_26, %c136] : memref<32x384xbf16, #tpu.memory_space<vmem>>, vector<32x8xbf16>
    %45 = vector.shape_cast %44 : vector<32x8xbf16> to vector<2x16x8xbf16>
    %c0_27 = arith.constant 0 : index
    %c264 = arith.constant 264 : index
    %46 = vector.load %arg10[%c0_27, %c264] : memref<32x384xbf16, #tpu.memory_space<vmem>>, vector<32x8xbf16>
    %47 = vector.shape_cast %46 : vector<32x8xbf16> to vector<2x16x8xbf16>
    %cst_28 = arith.constant dense<0.000000e+00> : vector<2x16x16xf32>
    %48 = tpu.matmul %43, %45, %cst_28 {dimension_numbers = #tpu.dot_dimension_numbers<[2], [2], [1], [1], [0, 0, 0, 1, 1, 1], [0], [0]>} : vector<2x16x8xbf16>, vector<2x16x8xbf16>, vector<2x16x16xf32> -> vector<2x16x16xf32>
    %c1 = arith.constant 1 : index
    %c0_29 = arith.constant 0 : index
    %c0_30 = arith.constant 0 : index
    %49 = vector.load %arg4[%c1, %c0_29, %c0_30] : memref<4x16x16xf32, #tpu.memory_space<vmem>>, vector<1x16x16xf32>
    %50 = vector.shape_cast %49 : vector<1x16x16xf32> to vector<16x16xf32>
    %51 = vector.shape_cast %50 : vector<16x16xf32> to vector<1x16x16xf32>
    %52 = vector.broadcast %51 : vector<1x16x16xf32> to vector<2x16x16xf32>
    %53 = arith.addf %48, %52 : vector<2x16x16xf32>
    %54 = vector.shape_cast %53 : vector<2x16x16xf32> to vector<1x2x16x16xf32>
    %c0_31 = arith.constant 0 : index
    %c0_32 = arith.constant 0 : index
    %c0_33 = arith.constant 0 : index
    %55 = vector.load %arg7[%c0_31, %c0_32, %c0_33] : memref<2x16x16xf32, #tpu.memory_space<vmem>>, vector<2x16x16xf32>
    %56 = vector.shape_cast %55 : vector<2x16x16xf32> to vector<1x2x16x16xf32>
    %57 = arith.addf %54, %56 : vector<1x2x16x16xf32>
    %58 = vector.shape_cast %57 : vector<1x2x16x16xf32> to vector<2x16x16xf32>
    %cst_34 = arith.constant dense<0xFF800000> : vector<2x16xf32>
    %59 = vector.multi_reduction <maximumf>, %58, %cst_34 [2] : vector<2x16x16xf32> to vector<2x16xf32>
    %60 = vector.shape_cast %59 : vector<2x16xf32> to vector<2x16x1xf32>
    %61 = vector.broadcast %60 : vector<2x16x1xf32> to vector<2x16x16xf32>
    %62 = arith.subf %58, %61 : vector<2x16x16xf32>
    %63 = math.exp %62 : vector<2x16x16xf32>
    %cst_35 = arith.constant dense<0.000000e+00> : vector<2x16xf32>
    %64 = vector.multi_reduction <add>, %63, %cst_35 [2] : vector<2x16x16xf32> to vector<2x16xf32>
    %65 = vector.shape_cast %64 : vector<2x16xf32> to vector<2x16x1xf32>
    %66 = tpu.reciprocal %65 {approx = true} : vector<2x16x1xf32> -> vector<2x16x1xf32>
    %67 = vector.broadcast %66 : vector<2x16x1xf32> to vector<2x16x16xf32>
    %68 = arith.mulf %63, %67 : vector<2x16x16xf32>
    %69 = arith.truncf %68 : vector<2x16x16xf32> to vector<2x16x16xbf16>
    %cst_36 = arith.constant dense<0.000000e+00> : vector<2x16x8xf32>
    %70 = tpu.matmul %69, %47, %cst_36 {dimension_numbers = #tpu.dot_dimension_numbers<[2], [1], [1], [2], [0, 0, 0, 1, 1, 2], [0], [0]>} : vector<2x16x16xbf16>, vector<2x16x8xbf16>, vector<2x16x8xf32> -> vector<2x16x8xf32>
    %71 = vector.shape_cast %70 : vector<2x16x8xf32> to vector<32x8xf32>
    %72 = arith.truncf %71 : vector<32x8xf32> to vector<32x8xbf16>
    %c0_37 = arith.constant 0 : index
    %c8_38 = arith.constant 8 : index
    %73 = vector.load %arg11[%c0_37, %c8_38] : memref<32x128xbf16, #tpu.memory_space<vmem>>, vector<32x8xbf16>
    tpu.vector_store %arg11[%c0_37, %c8_38], %72 {strides = array<i32>} : memref<32x128xbf16, #tpu.memory_space<vmem>>, vector<32x8xbf16>,
    %c0_39 = arith.constant 0 : index
    %c16 = arith.constant 16 : index
    %74 = vector.load %arg10[%c0_39, %c16] : memref<32x384xbf16, #tpu.memory_space<vmem>>, vector<32x8xbf16>
    %75 = vector.shape_cast %74 : vector<32x8xbf16> to vector<2x16x8xbf16>
    %c0_40 = arith.constant 0 : index
    %c144 = arith.constant 144 : index
    %76 = vector.load %arg10[%c0_40, %c144] : memref<32x384xbf16, #tpu.memory_space<vmem>>, vector<32x8xbf16>
    %77 = vector.shape_cast %76 : vector<32x8xbf16> to vector<2x16x8xbf16>
    %c0_41 = arith.constant 0 : index
    %c272 = arith.constant 272 : index
    %78 = vector.load %arg10[%c0_41, %c272] : memref<32x384xbf16, #tpu.memory_space<vmem>>, vector<32x8xbf16>
    %79 = vector.shape_cast %78 : vector<32x8xbf16> to vector<2x16x8xbf16>
    %cst_42 = arith.constant dense<0.000000e+00> : vector<2x16x16xf32>
    %80 = tpu.matmul %75, %77, %cst_42 {dimension_numbers = #tpu.dot_dimension_numbers<[2], [2], [1], [1], [0, 0, 0, 1, 1, 1], [0], [0]>} : vector<2x16x8xbf16>, vector<2x16x8xbf16>, vector<2x16x16xf32> -> vector<2x16x16xf32>
    %c2 = arith.constant 2 : index
    %c0_43 = arith.constant 0 : index
    %c0_44 = arith.constant 0 : index
    %81 = vector.load %arg4[%c2, %c0_43, %c0_44] : memref<4x16x16xf32, #tpu.memory_space<vmem>>, vector<1x16x16xf32>
    %82 = vector.shape_cast %81 : vector<1x16x16xf32> to vector<16x16xf32>
    %83 = vector.shape_cast %82 : vector<16x16xf32> to vector<1x16x16xf32>
    %84 = vector.broadcast %83 : vector<1x16x16xf32> to vector<2x16x16xf32>
    %85 = arith.addf %80, %84 : vector<2x16x16xf32>
    %86 = vector.shape_cast %85 : vector<2x16x16xf32> to vector<1x2x16x16xf32>
    %c0_45 = arith.constant 0 : index
    %c0_46 = arith.constant 0 : index
    %c0_47 = arith.constant 0 : index
    %87 = vector.load %arg7[%c0_45, %c0_46, %c0_47] : memref<2x16x16xf32, #tpu.memory_space<vmem>>, vector<2x16x16xf32>
    %88 = vector.shape_cast %87 : vector<2x16x16xf32> to vector<1x2x16x16xf32>
    %89 = arith.addf %86, %88 : vector<1x2x16x16xf32>
    %90 = vector.shape_cast %89 : vector<1x2x16x16xf32> to vector<2x16x16xf32>
    %cst_48 = arith.constant dense<0xFF800000> : vector<2x16xf32>
    %91 = vector.multi_reduction <maximumf>, %90, %cst_48 [2] : vector<2x16x16xf32> to vector<2x16xf32>
    %92 = vector.shape_cast %91 : vector<2x16xf32> to vector<2x16x1xf32>
    %93 = vector.broadcast %92 : vector<2x16x1xf32> to vector<2x16x16xf32>
    %94 = arith.subf %90, %93 : vector<2x16x16xf32>
    %95 = math.exp %94 : vector<2x16x16xf32>
    %cst_49 = arith.constant dense<0.000000e+00> : vector<2x16xf32>
    %96 = vector.multi_reduction <add>, %95, %cst_49 [2] : vector<2x16x16xf32> to vector<2x16xf32>
    %97 = vector.shape_cast %96 : vector<2x16xf32> to vector<2x16x1xf32>
    %98 = tpu.reciprocal %97 {approx = true} : vector<2x16x1xf32> -> vector<2x16x1xf32>
    %99 = vector.broadcast %98 : vector<2x16x1xf32> to vector<2x16x16xf32>
    %100 = arith.mulf %95, %99 : vector<2x16x16xf32>
    %101 = arith.truncf %100 : vector<2x16x16xf32> to vector<2x16x16xbf16>
    %cst_50 = arith.constant dense<0.000000e+00> : vector<2x16x8xf32>
    %102 = tpu.matmul %101, %79, %cst_50 {dimension_numbers = #tpu.dot_dimension_numbers<[2], [1], [1], [2], [0, 0, 0, 1, 1, 2], [0], [0]>} : vector<2x16x16xbf16>, vector<2x16x8xbf16>, vector<2x16x8xf32> -> vector<2x16x8xf32>
    %103 = vector.shape_cast %102 : vector<2x16x8xf32> to vector<32x8xf32>
    %104 = arith.truncf %103 : vector<32x8xf32> to vector<32x8xbf16>
    %c0_51 = arith.constant 0 : index
    %c16_52 = arith.constant 16 : index
    %105 = vector.load %arg11[%c0_51, %c16_52] : memref<32x128xbf16, #tpu.memory_space<vmem>>, vector<32x8xbf16>
    tpu.vector_store %arg11[%c0_51, %c16_52], %104 {strides = array<i32>} : memref<32x128xbf16, #tpu.memory_space<vmem>>, vector<32x8xbf16>,
    %c0_53 = arith.constant 0 : index
    %c24 = arith.constant 24 : index
    %106 = vector.load %arg10[%c0_53, %c24] : memref<32x384xbf16, #tpu.memory_space<vmem>>, vector<32x8xbf16>
    %107 = vector.shape_cast %106 : vector<32x8xbf16> to vector<2x16x8xbf16>
    %c0_54 = arith.constant 0 : index
    %c152 = arith.constant 152 : index
    %108 = vector.load %arg10[%c0_54, %c152] : memref<32x384xbf16, #tpu.memory_space<vmem>>, vector<32x8xbf16>
    %109 = vector.shape_cast %108 : vector<32x8xbf16> to vector<2x16x8xbf16>
    %c0_55 = arith.constant 0 : index
    %c280 = arith.constant 280 : index
    %110 = vector.load %arg10[%c0_55, %c280] : memref<32x384xbf16, #tpu.memory_space<vmem>>, vector<32x8xbf16>
    %111 = vector.shape_cast %110 : vector<32x8xbf16> to vector<2x16x8xbf16>
    %cst_56 = arith.constant dense<0.000000e+00> : vector<2x16x16xf32>
    %112 = tpu.matmul %107, %109, %cst_56 {dimension_numbers = #tpu.dot_dimension_numbers<[2], [2], [1], [1], [0, 0, 0, 1, 1, 1], [0], [0]>} : vector<2x16x8xbf16>, vector<2x16x8xbf16>, vector<2x16x16xf32> -> vector<2x16x16xf32>
    %c3 = arith.constant 3 : index
    %c0_57 = arith.constant 0 : index
    %c0_58 = arith.constant 0 : index
    %113 = vector.load %arg4[%c3, %c0_57, %c0_58] : memref<4x16x16xf32, #tpu.memory_space<vmem>>, vector<1x16x16xf32>
    %114 = vector.shape_cast %113 : vector<1x16x16xf32> to vector<16x16xf32>
    %115 = vector.shape_cast %114 : vector<16x16xf32> to vector<1x16x16xf32>
    %116 = vector.broadcast %115 : vector<1x16x16xf32> to vector<2x16x16xf32>
    %117 = arith.addf %112, %116 : vector<2x16x16xf32>
    %118 = vector.shape_cast %117 : vector<2x16x16xf32> to vector<1x2x16x16xf32>
    %c0_59 = arith.constant 0 : index
    %c0_60 = arith.constant 0 : index
    %c0_61 = arith.constant 0 : index
    %119 = vector.load %arg7[%c0_59, %c0_60, %c0_61] : memref<2x16x16xf32, #tpu.memory_space<vmem>>, vector<2x16x16xf32>
    %120 = vector.shape_cast %119 : vector<2x16x16xf32> to vector<1x2x16x16xf32>
    %121 = arith.addf %118, %120 : vector<1x2x16x16xf32>
    %122 = vector.shape_cast %121 : vector<1x2x16x16xf32> to vector<2x16x16xf32>
    %cst_62 = arith.constant dense<0xFF800000> : vector<2x16xf32>
    %123 = vector.multi_reduction <maximumf>, %122, %cst_62 [2] : vector<2x16x16xf32> to vector<2x16xf32>
    %124 = vector.shape_cast %123 : vector<2x16xf32> to vector<2x16x1xf32>
    %125 = vector.broadcast %124 : vector<2x16x1xf32> to vector<2x16x16xf32>
    %126 = arith.subf %122, %125 : vector<2x16x16xf32>
    %127 = math.exp %126 : vector<2x16x16xf32>
    %cst_63 = arith.constant dense<0.000000e+00> : vector<2x16xf32>
    %128 = vector.multi_reduction <add>, %127, %cst_63 [2] : vector<2x16x16xf32> to vector<2x16xf32>
    %129 = vector.shape_cast %128 : vector<2x16xf32> to vector<2x16x1xf32>
    %130 = tpu.reciprocal %129 {approx = true} : vector<2x16x1xf32> -> vector<2x16x1xf32>
    %131 = vector.broadcast %130 : vector<2x16x1xf32> to vector<2x16x16xf32>
    %132 = arith.mulf %127, %131 : vector<2x16x16xf32>
    %133 = arith.truncf %132 : vector<2x16x16xf32> to vector<2x16x16xbf16>
    %cst_64 = arith.constant dense<0.000000e+00> : vector<2x16x8xf32>
    %134 = tpu.matmul %133, %111, %cst_64 {dimension_numbers = #tpu.dot_dimension_numbers<[2], [1], [1], [2], [0, 0, 0, 1, 1, 2], [0], [0]>} : vector<2x16x16xbf16>, vector<2x16x8xbf16>, vector<2x16x8xf32> -> vector<2x16x8xf32>
    %135 = vector.shape_cast %134 : vector<2x16x8xf32> to vector<32x8xf32>
    %136 = arith.truncf %135 : vector<32x8xf32> to vector<32x8xbf16>
    %c0_65 = arith.constant 0 : index
    %c24_66 = arith.constant 24 : index
    %137 = vector.load %arg11[%c0_65, %c24_66] : memref<32x128xbf16, #tpu.memory_space<vmem>>, vector<32x8xbf16>
    tpu.vector_store %arg11[%c0_65, %c24_66], %136 {strides = array<i32>} : memref<32x128xbf16, #tpu.memory_space<vmem>>, vector<32x8xbf16>,
    %c0_67 = arith.constant 0 : index
    %c0_68 = arith.constant 0 : index
    %138 = vector.load %arg11[%c0_67, %c0_68] : memref<32x128xbf16, #tpu.memory_space<vmem>>, vector<32x128xbf16>
    %c0_69 = arith.constant 0 : index
    %c0_70 = arith.constant 0 : index
    %139 = vector.load %arg8[%c0_69, %c0_70] : memref<32x128xbf16, #tpu.memory_space<vmem>>, vector<32x128xbf16>
    %140 = arith.addf %138, %139 : vector<32x128xbf16>
    %c0_71 = arith.constant 0 : index
    %c0_72 = arith.constant 0 : index
    %141 = vector.load %arg5[%c0_71, %c0_72] : memref<128x128xbf16, #tpu.memory_space<vmem>>, vector<128x128xbf16>
    %cst_73 = arith.constant dense<0.000000e+00> : vector<32x128xf32>
    %142 = tpu.matmul %140, %141, %cst_73 {dimension_numbers = #tpu.dot_dimension_numbers<[1], [0], [0], [1], [0, 0, 1, 1], [], []>} : vector<32x128xbf16>, vector<128x128xbf16>, vector<32x128xf32> -> vector<32x128xf32>
    %c0_74 = arith.constant 0 : index
    %c0_75 = arith.constant 0 : index
    %143 = vector.load %arg6[%c0_74, %c0_75] : memref<1x128xf32, #tpu.memory_space<vmem>>, vector<1x128xf32>
    %144 = vector.broadcast %143 : vector<1x128xf32> to vector<32x128xf32>
    %145 = arith.addf %142, %144 : vector<32x128xf32>
    %c0_76 = arith.constant 0 : index
    %c0_77 = arith.constant 0 : index
    %146 = vector.load %arg9[%c0_76, %c0_77] : memref<32x128xf32, #tpu.memory_space<vmem>>, vector<32x128xf32>
    tpu.vector_store %arg9[%c0_76, %c0_77], %145 {strides = array<i32>} : memref<32x128xf32, #tpu.memory_space<vmem>>, vector<32x128xf32>,
    return
  }
  func.func @transform_0(%arg0: i32) -> (i32, i32) {
    %c0_i32 = arith.constant 0 : i32
    %c0_i32_0 = arith.constant 0 : i32
    return %arg0, %c0_i32 : i32, i32
  }
  func.func @transform_1(%arg0: i32) -> (i32, i32) {
    %c0_i32 = arith.constant 0 : i32
    %c0_i32_0 = arith.constant 0 : i32
    %c0_i32_1 = arith.constant 0 : i32
    return %c0_i32, %c0_i32_0 : i32, i32
  }
  func.func @transform_2(%arg0: i32) -> (i32, i32) {
    %c0_i32 = arith.constant 0 : i32
    %c0_i32_0 = arith.constant 0 : i32
    %c0_i32_1 = arith.constant 0 : i32
    return %c0_i32, %c0_i32_0 : i32, i32
  }
  func.func @transform_3(%arg0: i32) -> (i32, i32, i32) {
    %c0_i32 = arith.constant 0 : i32
    %c0_i32_0 = arith.constant 0 : i32
    %c0_i32_1 = arith.constant 0 : i32
    %c0_i32_2 = arith.constant 0 : i32
    return %c0_i32, %c0_i32_0, %c0_i32_1 : i32, i32, i32
  }
  func.func @transform_4(%arg0: i32) -> (i32, i32) {
    %c0_i32 = arith.constant 0 : i32
    %c0_i32_0 = arith.constant 0 : i32
    %c0_i32_1 = arith.constant 0 : i32
    return %c0_i32, %c0_i32_0 : i32, i32
  }
  func.func @transform_5(%arg0: i32) -> (i32, i32) {
    %c0_i32 = arith.constant 0 : i32
    %c0_i32_0 = arith.constant 0 : i32
    %c0_i32_1 = arith.constant 0 : i32
    return %c0_i32, %c0_i32_0 : i32, i32
  }
  func.func @transform_6(%arg0: i32) -> (i32, i32, i32) {
    %c0_i32 = arith.constant 0 : i32
    %c0_i32_0 = arith.constant 0 : i32
    %c0_i32_1 = arith.constant 0 : i32
    %c0_i32_2 = arith.constant 0 : i32
    return %c0_i32, %c0_i32_0, %c0_i32_1 : i32, i32, i32
  }
  func.func @transform_7(%arg0: i32) -> (i32, i32) {
    %c0_i32 = arith.constant 0 : i32
    %c0_i32_0 = arith.constant 0 : i32
    return %arg0, %c0_i32 : i32, i32
  }
  func.func @transform_8(%arg0: i32) -> (i32, i32) {
    %c0_i32 = arith.constant 0 : i32
    %c0_i32_0 = arith.constant 0 : i32
    return %arg0, %c0_i32 : i32, i32
  }
}

module attributes {stable_mosaic.version = 11 : i64} {
  func.func @_wmsa_kernel(%arg0: i32, %arg1: memref<32x128xbf16, #tpu.memory_space<vmem>>, %arg2: memref<128x384xbf16, #tpu.memory_space<vmem>>, %arg3: memref<1x384xf32, #tpu.memory_space<vmem>>, %arg4: memref<4x16x16xf32, #tpu.memory_space<vmem>>, %arg5: memref<128x128xbf16, #tpu.memory_space<vmem>>, %arg6: memref<1x128xf32, #tpu.memory_space<vmem>>, %arg7: memref<2x16x16xf32, #tpu.memory_space<vmem>>, %arg8: memref<32x128xbf16, #tpu.memory_space<vmem>>, %arg9: memref<32x128xf32, #tpu.memory_space<vmem>>, %arg10: memref<32x384xbf16, #tpu.memory_space<vmem>>, %arg11: memref<32x128xbf16, #tpu.memory_space<vmem>>) attributes {dimension_semantics = [#tpu.dimension_semantics<parallel>], iteration_bounds = array<i64: 2>, scalar_prefetch = 0 : i64, scratch_operands = 2 : i64, tpu.core_type = #tpu.core_type<tc>, window_params = [{transform_indices = @transform_0, window_bounds = array<i64: 32, 128>}, {pipeline_mode = #tpu.pipeline_mode<synchronous>, transform_indices = @transform_1, window_bounds = array<i64: 128, 384>}, {pipeline_mode = #tpu.pipeline_mode<synchronous>, transform_indices = @transform_2, window_bounds = array<i64: 1, 384>}, {pipeline_mode = #tpu.pipeline_mode<synchronous>, transform_indices = @transform_3, window_bounds = array<i64: 4, 16, 16>}, {pipeline_mode = #tpu.pipeline_mode<synchronous>, transform_indices = @transform_4, window_bounds = array<i64: 128, 128>}, {pipeline_mode = #tpu.pipeline_mode<synchronous>, transform_indices = @transform_5, window_bounds = array<i64: 1, 128>}, {pipeline_mode = #tpu.pipeline_mode<synchronous>, transform_indices = @transform_6, window_bounds = array<i64: 2, 16, 16>}, {transform_indices = @transform_7, window_bounds = array<i64: 32, 128>}, {transform_indices = @transform_8, window_bounds = array<i64: 32, 128>}]} {
    %c0 = arith.constant 0 : index
    %c0_0 = arith.constant 0 : index
    %0 = vector.load %arg1[%c0, %c0_0] : memref<32x128xbf16, #tpu.memory_space<vmem>>, vector<32x128xbf16>
    %c0_1 = arith.constant 0 : index
    %c0_2 = arith.constant 0 : index
    %1 = vector.load %arg2[%c0_1, %c0_2] : memref<128x384xbf16, #tpu.memory_space<vmem>>, vector<128x384xbf16>
    %cst = arith.constant dense<0.000000e+00> : vector<32x384xf32>
    %2 = tpu.matmul %0, %1, %cst {dimension_numbers = #tpu.dot_dimension_numbers<[1], [0], [0], [1], [0, 0, 1, 1], [], []>} : vector<32x128xbf16>, vector<128x384xbf16>, vector<32x384xf32> -> vector<32x384xf32>
    %c0_3 = arith.constant 0 : index
    %c0_4 = arith.constant 0 : index
    %3 = vector.load %arg3[%c0_3, %c0_4] : memref<1x384xf32, #tpu.memory_space<vmem>>, vector<1x384xf32>
    %4 = vector.broadcast %3 : vector<1x384xf32> to vector<32x384xf32>
    %5 = arith.addf %2, %4 : vector<32x384xf32>
    %6 = arith.truncf %5 : vector<32x384xf32> to vector<32x384xbf16>
    %c0_5 = arith.constant 0 : index
    %c0_6 = arith.constant 0 : index
    %7 = vector.load %arg10[%c0_5, %c0_6] : memref<32x384xbf16, #tpu.memory_space<vmem>>, vector<32x384xbf16>
    tpu.vector_store %arg10[%c0_5, %c0_6], %6 {strides = array<i32>} : memref<32x384xbf16, #tpu.memory_space<vmem>>, vector<32x384xbf16>,
    %cst_7 = arith.constant 0.000000e+00 : bf16
    %8 = vector.broadcast %cst_7 : bf16 to vector<32x96xbf16>
    %c0_8 = arith.constant 0 : index
    %c32 = arith.constant 32 : index
    %9 = vector.load %arg11[%c0_8, %c32] : memref<32x128xbf16, #tpu.memory_space<vmem>>, vector<32x96xbf16>
    tpu.vector_store %arg11[%c0_8, %c32], %8 {strides = array<i32>} : memref<32x128xbf16, #tpu.memory_space<vmem>>, vector<32x96xbf16>,
    %c0_9 = arith.constant 0 : index
    %c0_10 = arith.constant 0 : index
    %10 = vector.load %arg10[%c0_9, %c0_10] : memref<32x384xbf16, #tpu.memory_space<vmem>>, vector<32x8xbf16>
    %11 = vector.shape_cast %10 : vector<32x8xbf16> to vector<2x16x8xbf16>
    %c0_11 = arith.constant 0 : index
    %c128 = arith.constant 128 : index
    %12 = vector.load %arg10[%c0_11, %c128] : memref<32x384xbf16, #tpu.memory_space<vmem>>, vector<32x8xbf16>
    %13 = vector.shape_cast %12 : vector<32x8xbf16> to vector<2x16x8xbf16>
    %c0_12 = arith.constant 0 : index
    %c256 = arith.constant 256 : index
    %14 = vector.load %arg10[%c0_12, %c256] : memref<32x384xbf16, #tpu.memory_space<vmem>>, vector<32x8xbf16>
    %15 = vector.shape_cast %14 : vector<32x8xbf16> to vector<2x16x8xbf16>
    %cst_13 = arith.constant dense<0.000000e+00> : vector<2x16x16xf32>
    %16 = tpu.matmul %11, %13, %cst_13 {dimension_numbers = #tpu.dot_dimension_numbers<[2], [2], [1], [1], [0, 0, 0, 1, 1, 1], [0], [0]>} : vector<2x16x8xbf16>, vector<2x16x8xbf16>, vector<2x16x16xf32> -> vector<2x16x16xf32>
    %c0_14 = arith.constant 0 : index
    %c0_15 = arith.constant 0 : index
    %c0_16 = arith.constant 0 : index
    %17 = vector.load %arg4[%c0_14, %c0_15, %c0_16] : memref<4x16x16xf32, #tpu.memory_space<vmem>>, vector<1x16x16xf32>
    %18 = vector.shape_cast %17 : vector<1x16x16xf32> to vector<16x16xf32>
    %19 = vector.shape_cast %18 : vector<16x16xf32> to vector<1x16x16xf32>
    %20 = vector.broadcast %19 : vector<1x16x16xf32> to vector<2x16x16xf32>
    %21 = arith.addf %16, %20 : vector<2x16x16xf32>
    %22 = vector.shape_cast %21 : vector<2x16x16xf32> to vector<1x2x16x16xf32>
    %c0_17 = arith.constant 0 : index
    %c0_18 = arith.constant 0 : index
    %c0_19 = arith.constant 0 : index
    %23 = vector.load %arg7[%c0_17, %c0_18, %c0_19] : memref<2x16x16xf32, #tpu.memory_space<vmem>>, vector<2x16x16xf32>
    %24 = vector.shape_cast %23 : vector<2x16x16xf32> to vector<1x2x16x16xf32>
    %25 = arith.addf %22, %24 : vector<1x2x16x16xf32>
    %26 = vector.shape_cast %25 : vector<1x2x16x16xf32> to vector<2x16x16xf32>
    %cst_20 = arith.constant dense<0xFF800000> : vector<2x16xf32>
    %27 = vector.multi_reduction <maximumf>, %26, %cst_20 [2] : vector<2x16x16xf32> to vector<2x16xf32>
    %28 = vector.shape_cast %27 : vector<2x16xf32> to vector<2x16x1xf32>
    %29 = vector.broadcast %28 : vector<2x16x1xf32> to vector<2x16x16xf32>
    %30 = arith.subf %26, %29 : vector<2x16x16xf32>
    %31 = math.exp %30 : vector<2x16x16xf32>
    %cst_21 = arith.constant dense<0.000000e+00> : vector<2x16xf32>
    %32 = vector.multi_reduction <add>, %31, %cst_21 [2] : vector<2x16x16xf32> to vector<2x16xf32>
    %33 = vector.shape_cast %32 : vector<2x16xf32> to vector<2x16x1xf32>
    %34 = tpu.reciprocal %33 {approx = true} : vector<2x16x1xf32> -> vector<2x16x1xf32>
    %35 = vector.broadcast %34 : vector<2x16x1xf32> to vector<2x16x16xf32>
    %36 = arith.mulf %31, %35 : vector<2x16x16xf32>
    %37 = arith.truncf %36 : vector<2x16x16xf32> to vector<2x16x16xbf16>
    %cst_22 = arith.constant dense<0.000000e+00> : vector<2x16x8xf32>
    %38 = tpu.matmul %37, %15, %cst_22 {dimension_numbers = #tpu.dot_dimension_numbers<[2], [1], [1], [2], [0, 0, 0, 1, 1, 2], [0], [0]>} : vector<2x16x16xbf16>, vector<2x16x8xbf16>, vector<2x16x8xf32> -> vector<2x16x8xf32>
    %39 = vector.shape_cast %38 : vector<2x16x8xf32> to vector<32x8xf32>
    %40 = arith.truncf %39 : vector<32x8xf32> to vector<32x8xbf16>
    %c0_23 = arith.constant 0 : index
    %c0_24 = arith.constant 0 : index
    %41 = vector.load %arg11[%c0_23, %c0_24] : memref<32x128xbf16, #tpu.memory_space<vmem>>, vector<32x8xbf16>
    tpu.vector_store %arg11[%c0_23, %c0_24], %40 {strides = array<i32>} : memref<32x128xbf16, #tpu.memory_space<vmem>>, vector<32x8xbf16>,
    %c0_25 = arith.constant 0 : index
    %c8 = arith.constant 8 : index
    %42 = vector.load %arg10[%c0_25, %c8] : memref<32x384xbf16, #tpu.memory_space<vmem>>, vector<32x8xbf16>
    %43 = vector.shape_cast %42 : vector<32x8xbf16> to vector<2x16x8xbf16>
    %c0_26 = arith.constant 0 : index
    %c136 = arith.constant 136 : index
    %44 = vector.load %arg10[%c0_26, %c136] : memref<32x384xbf16, #tpu.memory_space<vmem>>, vector<32x8xbf16>
    %45 = vector.shape_cast %44 : vector<32x8xbf16> to vector<2x16x8xbf16>
    %c0_27 = arith.constant 0 : index
    %c264 = arith.constant 264 : index
    %46 = vector.load %arg10[%c0_27, %c264] : memref<32x384xbf16, #tpu.memory_space<vmem>>, vector<32x8xbf16>
    %47 = vector.shape_cast %46 : vector<32x8xbf16> to vector<2x16x8xbf16>
    %cst_28 = arith.constant dense<0.000000e+00> : vector<2x16x16xf32>
    %48 = tpu.matmul %43, %45, %cst_28 {dimension_numbers = #tpu.dot_dimension_numbers<[2], [2], [1], [1], [0, 0, 0, 1, 1, 1], [0], [0]>} : vector<2x16x8xbf16>, vector<2x16x8xbf16>, vector<2x16x16xf32> -> vector<2x16x16xf32>
    %c1 = arith.constant 1 : index
    %c0_29 = arith.constant 0 : index
    %c0_30 = arith.constant 0 : index
    %49 = vector.load %arg4[%c1, %c0_29, %c0_30] : memref<4x16x16xf32, #tpu.memory_space<vmem>>, vector<1x16x16xf32>
    %50 = vector.shape_cast %49 : vector<1x16x16xf32> to vector<16x16xf32>
    %51 = vector.shape_cast %50 : vector<16x16xf32> to vector<1x16x16xf32>
    %52 = vector.broadcast %51 : vector<1x16x16xf32> to vector<2x16x16xf32>
    %53 = arith.addf %48, %52 : vector<2x16x16xf32>
    %54 = vector.shape_cast %53 : vector<2x16x16xf32> to vector<1x2x16x16xf32>
    %c0_31 = arith.constant 0 : index
    %c0_32 = arith.constant 0 : index
    %c0_33 = arith.constant 0 : index
    %55 = vector.load %arg7[%c0_31, %c0_32, %c0_33] : memref<2x16x16xf32, #tpu.memory_space<vmem>>, vector<2x16x16xf32>
    %56 = vector.shape_cast %55 : vector<2x16x16xf32> to vector<1x2x16x16xf32>
    %57 = arith.addf %54, %56 : vector<1x2x16x16xf32>
    %58 = vector.shape_cast %57 : vector<1x2x16x16xf32> to vector<2x16x16xf32>
    %cst_34 = arith.constant dense<0xFF800000> : vector<2x16xf32>
    %59 = vector.multi_reduction <maximumf>, %58, %cst_34 [2] : vector<2x16x16xf32> to vector<2x16xf32>
    %60 = vector.shape_cast %59 : vector<2x16xf32> to vector<2x16x1xf32>
    %61 = vector.broadcast %60 : vector<2x16x1xf32> to vector<2x16x16xf32>
    %62 = arith.subf %58, %61 : vector<2x16x16xf32>
    %63 = math.exp %62 : vector<2x16x16xf32>
    %cst_35 = arith.constant dense<0.000000e+00> : vector<2x16xf32>
    %64 = vector.multi_reduction <add>, %63, %cst_35 [2] : vector<2x16x16xf32> to vector<2x16xf32>
    %65 = vector.shape_cast %64 : vector<2x16xf32> to vector<2x16x1xf32>
    %66 = tpu.reciprocal %65 {approx = true} : vector<2x16x1xf32> -> vector<2x16x1xf32>
    %67 = vector.broadcast %66 : vector<2x16x1xf32> to vector<2x16x16xf32>
    %68 = arith.mulf %63, %67 : vector<2x16x16xf32>
    %69 = arith.truncf %68 : vector<2x16x16xf32> to vector<2x16x16xbf16>
    %cst_36 = arith.constant dense<0.000000e+00> : vector<2x16x8xf32>
    %70 = tpu.matmul %69, %47, %cst_36 {dimension_numbers = #tpu.dot_dimension_numbers<[2], [1], [1], [2], [0, 0, 0, 1, 1, 2], [0], [0]>} : vector<2x16x16xbf16>, vector<2x16x8xbf16>, vector<2x16x8xf32> -> vector<2x16x8xf32>
    %71 = vector.shape_cast %70 : vector<2x16x8xf32> to vector<32x8xf32>
    %72 = arith.truncf %71 : vector<32x8xf32> to vector<32x8xbf16>
    %c0_37 = arith.constant 0 : index
    %c8_38 = arith.constant 8 : index
    %73 = vector.load %arg11[%c0_37, %c8_38] : memref<32x128xbf16, #tpu.memory_space<vmem>>, vector<32x8xbf16>
    tpu.vector_store %arg11[%c0_37, %c8_38], %72 {strides = array<i32>} : memref<32x128xbf16, #tpu.memory_space<vmem>>, vector<32x8xbf16>,
    %c0_39 = arith.constant 0 : index
    %c16 = arith.constant 16 : index
    %74 = vector.load %arg10[%c0_39, %c16] : memref<32x384xbf16, #tpu.memory_space<vmem>>, vector<32x8xbf16>
    %75 = vector.shape_cast %74 : vector<32x8xbf16> to vector<2x16x8xbf16>
    %c0_40 = arith.constant 0 : index
    %c144 = arith.constant 144 : index
    %76 = vector.load %arg10[%c0_40, %c144] : memref<32x384xbf16, #tpu.memory_space<vmem>>, vector<32x8xbf16>
    %77 = vector.shape_cast %76 : vector<32x8xbf16> to vector<2x16x8xbf16>
    %c0_41 = arith.constant 0 : index
    %c272 = arith.constant 272 : index
    %78 = vector.load %arg10[%c0_41, %c272] : memref<32x384xbf16, #tpu.memory_space<vmem>>, vector<32x8xbf16>
    %79 = vector.shape_cast %78 : vector<32x8xbf16> to vector<2x16x8xbf16>
    %cst_42 = arith.constant dense<0.000000e+00> : vector<2x16x16xf32>
    %80 = tpu.matmul %75, %77, %cst_42 {dimension_numbers = #tpu.dot_dimension_numbers<[2], [2], [1], [1], [0, 0, 0, 1, 1, 1], [0], [0]>} : vector<2x16x8xbf16>, vector<2x16x8xbf16>, vector<2x16x16xf32> -> vector<2x16x16xf32>
    %c2 = arith.constant 2 : index
    %c0_43 = arith.constant 0 : index
    %c0_44 = arith.constant 0 : index
    %81 = vector.load %arg4[%c2, %c0_43, %c0_44] : memref<4x16x16xf32, #tpu.memory_space<vmem>>, vector<1x16x16xf32>
    %82 = vector.shape_cast %81 : vector<1x16x16xf32> to vector<16x16xf32>
    %83 = vector.shape_cast %82 : vector<16x16xf32> to vector<1x16x16xf32>
    %84 = vector.broadcast %83 : vector<1x16x16xf32> to vector<2x16x16xf32>
    %85 = arith.addf %80, %84 : vector<2x16x16xf32>
    %86 = vector.shape_cast %85 : vector<2x16x16xf32> to vector<1x2x16x16xf32>
    %c0_45 = arith.constant 0 : index
    %c0_46 = arith.constant 0 : index
    %c0_47 = arith.constant 0 : index
    %87 = vector.load %arg7[%c0_45, %c0_46, %c0_47] : memref<2x16x16xf32, #tpu.memory_space<vmem>>, vector<2x16x16xf32>
    %88 = vector.shape_cast %87 : vector<2x16x16xf32> to vector<1x2x16x16xf32>
    %89 = arith.addf %86, %88 : vector<1x2x16x16xf32>
    %90 = vector.shape_cast %89 : vector<1x2x16x16xf32> to vector<2x16x16xf32>
    %cst_48 = arith.constant dense<0xFF800000> : vector<2x16xf32>
    %91 = vector.multi_reduction <maximumf>, %90, %cst_48 [2] : vector<2x16x16xf32> to vector<2x16xf32>
    %92 = vector.shape_cast %91 : vector<2x16xf32> to vector<2x16x1xf32>
    %93 = vector.broadcast %92 : vector<2x16x1xf32> to vector<2x16x16xf32>
    %94 = arith.subf %90, %93 : vector<2x16x16xf32>
    %95 = math.exp %94 : vector<2x16x16xf32>
    %cst_49 = arith.constant dense<0.000000e+00> : vector<2x16xf32>
    %96 = vector.multi_reduction <add>, %95, %cst_49 [2] : vector<2x16x16xf32> to vector<2x16xf32>
    %97 = vector.shape_cast %96 : vector<2x16xf32> to vector<2x16x1xf32>
    %98 = tpu.reciprocal %97 {approx = true} : vector<2x16x1xf32> -> vector<2x16x1xf32>
    %99 = vector.broadcast %98 : vector<2x16x1xf32> to vector<2x16x16xf32>
    %100 = arith.mulf %95, %99 : vector<2x16x16xf32>
    %101 = arith.truncf %100 : vector<2x16x16xf32> to vector<2x16x16xbf16>
    %cst_50 = arith.constant dense<0.000000e+00> : vector<2x16x8xf32>
    %102 = tpu.matmul %101, %79, %cst_50 {dimension_numbers = #tpu.dot_dimension_numbers<[2], [1], [1], [2], [0, 0, 0, 1, 1, 2], [0], [0]>} : vector<2x16x16xbf16>, vector<2x16x8xbf16>, vector<2x16x8xf32> -> vector<2x16x8xf32>
    %103 = vector.shape_cast %102 : vector<2x16x8xf32> to vector<32x8xf32>
    %104 = arith.truncf %103 : vector<32x8xf32> to vector<32x8xbf16>
    %c0_51 = arith.constant 0 : index
    %c16_52 = arith.constant 16 : index
    %105 = vector.load %arg11[%c0_51, %c16_52] : memref<32x128xbf16, #tpu.memory_space<vmem>>, vector<32x8xbf16>
    tpu.vector_store %arg11[%c0_51, %c16_52], %104 {strides = array<i32>} : memref<32x128xbf16, #tpu.memory_space<vmem>>, vector<32x8xbf16>,
    %c0_53 = arith.constant 0 : index
    %c24 = arith.constant 24 : index
    %106 = vector.load %arg10[%c0_53, %c24] : memref<32x384xbf16, #tpu.memory_space<vmem>>, vector<32x8xbf16>
    %107 = vector.shape_cast %106 : vector<32x8xbf16> to vector<2x16x8xbf16>
    %c0_54 = arith.constant 0 : index
    %c152 = arith.constant 152 : index
    %108 = vector.load %arg10[%c0_54, %c152] : memref<32x384xbf16, #tpu.memory_space<vmem>>, vector<32x8xbf16>
    %109 = vector.shape_cast %108 : vector<32x8xbf16> to vector<2x16x8xbf16>
    %c0_55 = arith.constant 0 : index
    %c280 = arith.constant 280 : index
    %110 = vector.load %arg10[%c0_55, %c280] : memref<32x384xbf16, #tpu.memory_space<vmem>>, vector<32x8xbf16>
    %111 = vector.shape_cast %110 : vector<32x8xbf16> to vector<2x16x8xbf16>
    %cst_56 = arith.constant dense<0.000000e+00> : vector<2x16x16xf32>
    %112 = tpu.matmul %107, %109, %cst_56 {dimension_numbers = #tpu.dot_dimension_numbers<[2], [2], [1], [1], [0, 0, 0, 1, 1, 1], [0], [0]>} : vector<2x16x8xbf16>, vector<2x16x8xbf16>, vector<2x16x16xf32> -> vector<2x16x16xf32>
    %c3 = arith.constant 3 : index
    %c0_57 = arith.constant 0 : index
    %c0_58 = arith.constant 0 : index
    %113 = vector.load %arg4[%c3, %c0_57, %c0_58] : memref<4x16x16xf32, #tpu.memory_space<vmem>>, vector<1x16x16xf32>
    %114 = vector.shape_cast %113 : vector<1x16x16xf32> to vector<16x16xf32>
    %115 = vector.shape_cast %114 : vector<16x16xf32> to vector<1x16x16xf32>
    %116 = vector.broadcast %115 : vector<1x16x16xf32> to vector<2x16x16xf32>
    %117 = arith.addf %112, %116 : vector<2x16x16xf32>
    %118 = vector.shape_cast %117 : vector<2x16x16xf32> to vector<1x2x16x16xf32>
    %c0_59 = arith.constant 0 : index
    %c0_60 = arith.constant 0 : index
    %c0_61 = arith.constant 0 : index
    %119 = vector.load %arg7[%c0_59, %c0_60, %c0_61] : memref<2x16x16xf32, #tpu.memory_space<vmem>>, vector<2x16x16xf32>
    %120 = vector.shape_cast %119 : vector<2x16x16xf32> to vector<1x2x16x16xf32>
    %121 = arith.addf %118, %120 : vector<1x2x16x16xf32>
    %122 = vector.shape_cast %121 : vector<1x2x16x16xf32> to vector<2x16x16xf32>
    %cst_62 = arith.constant dense<0xFF800000> : vector<2x16xf32>
    %123 = vector.multi_reduction <maximumf>, %122, %cst_62 [2] : vector<2x16x16xf32> to vector<2x16xf32>
    %124 = vector.shape_cast %123 : vector<2x16xf32> to vector<2x16x1xf32>
    %125 = vector.broadcast %124 : vector<2x16x1xf32> to vector<2x16x16xf32>
    %126 = arith.subf %122, %125 : vector<2x16x16xf32>
    %127 = math.exp %126 : vector<2x16x16xf32>
    %cst_63 = arith.constant dense<0.000000e+00> : vector<2x16xf32>
    %128 = vector.multi_reduction <add>, %127, %cst_63 [2] : vector<2x16x16xf32> to vector<2x16xf32>
    %129 = vector.shape_cast %128 : vector<2x16xf32> to vector<2x16x1xf32>
    %130 = tpu.reciprocal %129 {approx = true} : vector<2x16x1xf32> -> vector<2x16x1xf32>
    %131 = vector.broadcast %130 : vector<2x16x1xf32> to vector<2x16x16xf32>
    %132 = arith.mulf %127, %131 : vector<2x16x16xf32>
    %133 = arith.truncf %132 : vector<2x16x16xf32> to vector<2x16x16xbf16>
    %cst_64 = arith.constant dense<0.000000e+00> : vector<2x16x8xf32>
    %134 = tpu.matmul %133, %111, %cst_64 {dimension_numbers = #tpu.dot_dimension_numbers<[2], [1], [1], [2], [0, 0, 0, 1, 1, 2], [0], [0]>} : vector<2x16x16xbf16>, vector<2x16x8xbf16>, vector<2x16x8xf32> -> vector<2x16x8xf32>
    %135 = vector.shape_cast %134 : vector<2x16x8xf32> to vector<32x8xf32>
    %136 = arith.truncf %135 : vector<32x8xf32> to vector<32x8xbf16>
    %c0_65 = arith.constant 0 : index
    %c24_66 = arith.constant 24 : index
    %137 = vector.load %arg11[%c0_65, %c24_66] : memref<32x128xbf16, #tpu.memory_space<vmem>>, vector<32x8xbf16>
    tpu.vector_store %arg11[%c0_65, %c24_66], %136 {strides = array<i32>} : memref<32x128xbf16, #tpu.memory_space<vmem>>, vector<32x8xbf16>,
    %c0_67 = arith.constant 0 : index
    %c0_68 = arith.constant 0 : index
    %138 = vector.load %arg11[%c0_67, %c0_68] : memref<32x128xbf16, #tpu.memory_space<vmem>>, vector<32x128xbf16>
    %c0_69 = arith.constant 0 : index
    %c0_70 = arith.constant 0 : index
    %139 = vector.load %arg8[%c0_69, %c0_70] : memref<32x128xbf16, #tpu.memory_space<vmem>>, vector<32x128xbf16>
    %140 = arith.addf %138, %139 : vector<32x128xbf16>
    %c0_71 = arith.constant 0 : index
    %c0_72 = arith.constant 0 : index
    %141 = vector.load %arg5[%c0_71, %c0_72] : memref<128x128xbf16, #tpu.memory_space<vmem>>, vector<128x128xbf16>
    %cst_73 = arith.constant dense<0.000000e+00> : vector<32x128xf32>
    %142 = tpu.matmul %140, %141, %cst_73 {dimension_numbers = #tpu.dot_dimension_numbers<[1], [0], [0], [1], [0, 0, 1, 1], [], []>} : vector<32x128xbf16>, vector<128x128xbf16>, vector<32x128xf32> -> vector<32x128xf32>
    %c0_74 = arith.constant 0 : index
    %c0_75 = arith.constant 0 : index
    %143 = vector.load %arg6[%c0_74, %c0_75] : memref<1x128xf32, #tpu.memory_space<vmem>>, vector<1x128xf32>
    %144 = vector.broadcast %143 : vector<1x128xf32> to vector<32x128xf32>
    %145 = arith.addf %142, %144 : vector<32x128xf32>
    %c0_76 = arith.constant 0 : index
    %c0_77 = arith.constant 0 : index
    %146 = vector.load %arg9[%c0_76, %c0_77] : memref<32x128xf32, #tpu.memory_space<vmem>>, vector<32x128xf32>
    tpu.vector_store %arg9[%c0_76, %c0_77], %145 {strides = array<i32>} : memref<32x128xf32, #tpu.memory_space<vmem>>, vector<32x128xf32>,
    return
  }
  func.func @transform_0(%arg0: i32) -> (i32, i32) {
    %c0_i32 = arith.constant 0 : i32
    %c0_i32_0 = arith.constant 0 : i32
    return %arg0, %c0_i32 : i32, i32
  }
  func.func @transform_1(%arg0: i32) -> (i32, i32) {
    %c0_i32 = arith.constant 0 : i32
    %c0_i32_0 = arith.constant 0 : i32
    %c0_i32_1 = arith.constant 0 : i32
    return %c0_i32, %c0_i32_0 : i32, i32
  }
  func.func @transform_2(%arg0: i32) -> (i32, i32) {
    %c0_i32 = arith.constant 0 : i32
    %c0_i32_0 = arith.constant 0 : i32
    %c0_i32_1 = arith.constant 0 : i32
    return %c0_i32, %c0_i32_0 : i32, i32
  }
  func.func @transform_3(%arg0: i32) -> (i32, i32, i32) {
    %c0_i32 = arith.constant 0 : i32
    %c0_i32_0 = arith.constant 0 : i32
    %c0_i32_1 = arith.constant 0 : i32
    %c0_i32_2 = arith.constant 0 : i32
    return %c0_i32, %c0_i32_0, %c0_i32_1 : i32, i32, i32
  }
  func.func @transform_4(%arg0: i32) -> (i32, i32) {
    %c0_i32 = arith.constant 0 : i32
    %c0_i32_0 = arith.constant 0 : i32
    %c0_i32_1 = arith.constant 0 : i32
    return %c0_i32, %c0_i32_0 : i32, i32
  }
  func.func @transform_5(%arg0: i32) -> (i32, i32) {
    %c0_i32 = arith.constant 0 : i32
    %c0_i32_0 = arith.constant 0 : i32
    %c0_i32_1 = arith.constant 0 : i32
    return %c0_i32, %c0_i32_0 : i32, i32
  }
  func.func @transform_6(%arg0: i32) -> (i32, i32, i32) {
    %c0_i32 = arith.constant 0 : i32
    %c0_i32_0 = arith.constant 0 : i32
    %c0_i32_1 = arith.constant 0 : i32
    %c0_i32_2 = arith.constant 0 : i32
    return %c0_i32, %c0_i32_0, %c0_i32_1 : i32, i32, i32
  }
  func.func @transform_7(%arg0: i32) -> (i32, i32) {
    %c0_i32 = arith.constant 0 : i32
    %c0_i32_0 = arith.constant 0 : i32
    return %arg0, %c0_i32 : i32, i32
  }
  func.func @transform_8(%arg0: i32) -> (i32, i32) {
    %c0_i32 = arith.constant 0 : i32
    %c0_i32_0 = arith.constant 0 : i32
    return %arg0, %c0_i32 : i32, i32
  }
}

</mosaic_0001>

<llo_original>
// kernel: tpu_custom_call.1
$region0: #{tpu_custom_call.1}
  #allocation0 [shape = 'u32[]', space=smem, size = 0x4, offset = 0x4, fixed_abs, tag = 'smem constant byte address 0x4 - core index']
  #allocation1 [shape = 'u32[144,128]{1,0:T(1,128)}', space=vmem, size = 0x12000, scoped, tag = 'internal scratch']
  #allocation2 [shape = 'bf16[32,384]{1,0:T(8,128)(2,1)}', space=vmem, size = 0x6000, scoped, tag = 'scratch operand']
  #allocation3 [shape = 'bf16[32,128]{1,0:T(8,128)(2,1)}', space=vmem, size = 0x2000, scoped, tag = 'scratch operand']
  %s0 = inlined_call_operand.hbm [shape: bf16[64,128], index: 0, kind: input, shape index: {}]
  %s1 = inlined_call_operand.hbm [shape: bf16[128,384], index: 1, kind: input, shape index: {}]
  %s2 = inlined_call_operand.vmem [shape: f32[1,384], index: 2, kind: input, shape index: {}]
  %s3 = inlined_call_operand.hbm [shape: f32[4,16,16], index: 3, kind: input, shape index: {}]
  %s4 = inlined_call_operand.hbm [shape: bf16[128,128], index: 4, kind: input, shape index: {}]
  %s5 = inlined_call_operand.vmem [shape: f32[1,128], index: 5, kind: input, shape index: {}]
  %s6 = inlined_call_operand.hbm [shape: f32[2,16,16], index: 6, kind: input, shape index: {}]
  %s7 = inlined_call_operand.hbm [shape: bf16[64,128], index: 7, kind: input, shape index: {}]
  %s8 = inlined_call_operand.hbm [shape: f32[64,128], index: 8, kind: output, shape index: {}]
  %s9 = sld [smem:[#allocation0]]
  $region89: #{tpu_custom_call.1} parent=0
    _
  %s11 = ssub.s32 1, %s9
  %s12 = scalar_select 0, %s11, %s9
  $region1: #{tpu_custom_call.1} parent=0
    #allocation4 [shape = 'u8[16384]{0}', space=vmem, size = 0x4000, scoped, tag = 'input window, operand 0']
    #allocation5 [shape = 's32[2]{0}', space=sflag, size = 0x8, scoped, tag = 'scoped memory for tpu_custom_call.1']
    #allocation6 [shape = 's32[2]{0}', space=sflag, size = 0x8, scoped, tag = 'scoped memory for tpu_custom_call.1']
    #allocation7 [shape = 'u8[98304]{0}', space=vmem, size = 0x18000, scoped, tag = 'input window, operand 1, single buffered']
    #allocation8 [shape = 's32[1]{0}', space=sflag, size = 0x4, scoped, tag = 'scoped memory for tpu_custom_call.1']
    #allocation9 [shape = 'u8[32768]{0}', space=vmem, size = 0x8000, scoped, tag = 'input window, operand 3, single buffered']
    #allocation10 [shape = 'u8[32768]{0}', space=vmem, size = 0x8000, scoped, tag = 'input window, operand 4, single buffered']
    #allocation11 [shape = 's32[1]{0}', space=sflag, size = 0x4, scoped, tag = 'scoped memory for tpu_custom_call.1']
    #allocation12 [shape = 'u8[16384]{0}', space=vmem, size = 0x4000, scoped, tag = 'input window, operand 6, single buffered']
    #allocation13 [shape = 'u8[16384]{0}', space=vmem, size = 0x4000, scoped, tag = 'input window, operand 7']
    #allocation14 [shape = 's32[2]{0}', space=sflag, size = 0x8, scoped, tag = 'scoped memory for tpu_custom_call.1']
    #allocation15 [shape = 'u8[32768]{0}', space=vmem, size = 0x8000, scoped, tag = 'output window, operand 0']
    %13 = vsyncpa [#allocation5], 0
    %s14 = scalar_lea.sflag [#allocation5], 1
    %15 = vsyncpa %s14, 0
    %16 = vsyncpa [#allocation8], 0
    %17 = vsyncpa [#allocation11], 0
    %18 = vsyncpa [#allocation14], 0
    %s19 = scalar_lea.sflag [#allocation14], 1
    %20 = vsyncpa %s19, 0
    %21 = vsyncpa [#allocation6], 0
    %s22 = scalar_lea.sflag [#allocation6], 1
    %23 = vsyncpa %s22, 0
    loop: start=0, step=1, limit=4
    $region2: #{tpu_custom_call.1} parent=1 // loop_pre_header
      _
    $region3: #{tpu_custom_call.1} parent=1 // loop_header
      %s25 = sphi 0, %s29
      %p26 = scmp.ge.s32.totalorder %s25, 4
      %s35 = sphi 0, %s37
      %s38 = sphi 0, %s35
      %s39 = sphi 0, %s38
      %s55 = sphi 0, %s39
      %s59 = sphi 0, %s59
      %s61 = sphi 0, %s59
      %s62 = sphi 0, %s61
      %s76 = sphi 0, %s62
      %s80 = sphi 0, %s80
      %s82 = sphi 0, %s80
      %s83 = sphi 0, %s82
      %s97 = sphi 0, %s83
      %s101 = sphi 0, %s101
      %s103 = sphi 0, %s101
      %s104 = sphi 0, %s103
      %s118 = sphi 0, %s104
      %s122 = sphi 0, %s122
      %s124 = sphi 0, %s122
      %s125 = sphi 0, %s124
      %s139 = sphi 0, %s125
      %s143 = sphi 0, %s143
      %s145 = sphi 0, %s143
      %s146 = sphi 0, %s145
      %s160 = sphi 0, %s146
      %s164 = sphi 0, %s164
      %s166 = sphi 0, %s164
      %s167 = sphi 0, %s166
      %s181 = sphi 0, %s167
      %s187 = sphi 0, %s189
      %s190 = sphi 0, %s187
      %s191 = sphi 0, %s190
      %s207 = sphi 0, %s191
      %s213 = sphi 0, %s215
      %s216 = sphi 0, %s213
      %s217 = sphi 0, %s216
      %s233 = sphi 0, %s217
    $region4: #{tpu_custom_call.1} parent=1 // loop_header_branch
      %28 = sbr.rel (%p26) target = $region8
    $region5: #{tpu_custom_call.1} parent=1 // loop_body
      %s30 = ssub.s32 %s25, 1
      %s31 = ssub.s32 %s25, 2
      %s32 = sadd.s32 %s25, 1
      %s33 = ssub.s32 %s25, %s32
      %p34 = scmp.eq.s32.totalorder %s33, 0
      %s36 = sadd.s32 %s35, 1
      %s37 = scalar_select %p34, %s35, %s36
      %p40 = pneg %p34
      %p41 = scmp.eq.s32.totalorder %s25, 1
      %p42 = por %p40, %p41
      %p43 = scmp.ne.s32.totalorder %s35, %s38
      %p44 = scmp.eq.s32.totalorder %s25, 0
      %p45 = por %p43, %p44
      %p46 = scmp.ne.s32.totalorder %s35, %s38
      %p47 = scmp.eq.s32.totalorder %s30, 1
      %p48 = por %p46, %p47
      %p49 = scmp.ne.s32.totalorder %s38, %s39
      %p50 = scmp.eq.s32.totalorder %s30, 0
      %p51 = por %p49, %p50
      %p52 = scmp.ne.s32.totalorder %s38, %s39
      %p53 = scmp.eq.s32.totalorder %s31, 1
      %p54 = por %p52, %p53
      %p56 = scmp.ne.s32.totalorder %s39, %s55
      %p57 = scmp.eq.s32.totalorder %s31, 0
      %p58 = por %p56, %p57
      %s60 = sadd.s32 %s59, 1
      %p63 = scmp.eq.s32.totalorder %s25, 1
      %p64 = scmp.ne.s32.totalorder %s59, %s61
      %p65 = scmp.eq.s32.totalorder %s25, 0
      %p66 = por %p64, %p65
      %p67 = scmp.ne.s32.totalorder %s59, %s61
      %p68 = scmp.eq.s32.totalorder %s30, 1
      %p69 = por %p67, %p68
      %p70 = scmp.ne.s32.totalorder %s61, %s62
      %p71 = scmp.eq.s32.totalorder %s30, 0
      %p72 = por %p70, %p71
      %p73 = scmp.ne.s32.totalorder %s61, %s62
      %p74 = scmp.eq.s32.totalorder %s31, 1
      %p75 = por %p73, %p74
      %p77 = scmp.ne.s32.totalorder %s62, %s76
      %p78 = scmp.eq.s32.totalorder %s31, 0
      %p79 = por %p77, %p78
      %s81 = sadd.s32 %s80, 1
      %p84 = scmp.eq.s32.totalorder %s25, 1
      %p85 = scmp.ne.s32.totalorder %s80, %s82
      %p86 = scmp.eq.s32.totalorder %s25, 0
      %p87 = por %p85, %p86
      %p88 = scmp.ne.s32.totalorder %s80, %s82
      %p89 = scmp.eq.s32.totalorder %s30, 1
      %p90 = por %p88, %p89
      %p91 = scmp.ne.s32.totalorder %s82, %s83
      %p92 = scmp.eq.s32.totalorder %s30, 0
      %p93 = por %p91, %p92
      %p94 = scmp.ne.s32.totalorder %s82, %s83
      %p95 = scmp.eq.s32.totalorder %s31, 1
      %p96 = por %p94, %p95
      %p98 = scmp.ne.s32.totalorder %s83, %s97
      %p99 = scmp.eq.s32.totalorder %s31, 0
      %p100 = por %p98, %p99
      %s102 = sadd.s32 %s101, 1
      %p105 = scmp.eq.s32.totalorder %s25, 1
      %p106 = scmp.ne.s32.totalorder %s101, %s103
      %p107 = scmp.eq.s32.totalorder %s25, 0
      %p108 = por %p106, %p107
      %p109 = scmp.ne.s32.totalorder %s101, %s103
      %p110 = scmp.eq.s32.totalorder %s30, 1
      %p111 = por %p109, %p110
      %p112 = scmp.ne.s32.totalorder %s103, %s104
      %p113 = scmp.eq.s32.totalorder %s30, 0
      %p114 = por %p112, %p113
      %p115 = scmp.ne.s32.totalorder %s103, %s104
      %p116 = scmp.eq.s32.totalorder %s31, 1
      %p117 = por %p115, %p116
      %p119 = scmp.ne.s32.totalorder %s104, %s118
      %p120 = scmp.eq.s32.totalorder %s31, 0
      %p121 = por %p119, %p120
      %s123 = sadd.s32 %s122, 1
      %p126 = scmp.eq.s32.totalorder %s25, 1
      %p127 = scmp.ne.s32.totalorder %s122, %s124
      %p128 = scmp.eq.s32.totalorder %s25, 0
      %p129 = por %p127, %p128
      %p130 = scmp.ne.s32.totalorder %s122, %s124
      %p131 = scmp.eq.s32.totalorder %s30, 1
      %p132 = por %p130, %p131
      %p133 = scmp.ne.s32.totalorder %s124, %s125
      %p134 = scmp.eq.s32.totalorder %s30, 0
      %p135 = por %p133, %p134
      %p136 = scmp.ne.s32.totalorder %s124, %s125
      %p137 = scmp.eq.s32.totalorder %s31, 1
      %p138 = por %p136, %p137
      %p140 = scmp.ne.s32.totalorder %s125, %s139
      %p141 = scmp.eq.s32.totalorder %s31, 0
      %p142 = por %p140, %p141
      %s144 = sadd.s32 %s143, 1
      %p147 = scmp.eq.s32.totalorder %s25, 1
      %p148 = scmp.ne.s32.totalorder %s143, %s145
      %p149 = scmp.eq.s32.totalorder %s25, 0
      %p150 = por %p148, %p149
      %p151 = scmp.ne.s32.totalorder %s143, %s145
      %p152 = scmp.eq.s32.totalorder %s30, 1
      %p153 = por %p151, %p152
      %p154 = scmp.ne.s32.totalorder %s145, %s146
      %p155 = scmp.eq.s32.totalorder %s30, 0
      %p156 = por %p154, %p155
      %p157 = scmp.ne.s32.totalorder %s145, %s146
      %p158 = scmp.eq.s32.totalorder %s31, 1
      %p159 = por %p157, %p158
      %p161 = scmp.ne.s32.totalorder %s146, %s160
      %p162 = scmp.eq.s32.totalorder %s31, 0
      %p163 = por %p161, %p162
      %s165 = sadd.s32 %s164, 1
      %p168 = scmp.eq.s32.totalorder %s25, 1
      %p169 = scmp.ne.s32.totalorder %s164, %s166
      %p170 = scmp.eq.s32.totalorder %s25, 0
      %p171 = por %p169, %p170
      %p172 = scmp.ne.s32.totalorder %s164, %s166
      %p173 = scmp.eq.s32.totalorder %s30, 1
      %p174 = por %p172, %p173
      %p175 = scmp.ne.s32.totalorder %s166, %s167
      %p176 = scmp.eq.s32.totalorder %s30, 0
      %p177 = por %p175, %p176
      %p178 = scmp.ne.s32.totalorder %s166, %s167
      %p179 = scmp.eq.s32.totalorder %s31, 1
      %p180 = por %p178, %p179
      %p182 = scmp.ne.s32.totalorder %s167, %s181
      %p183 = scmp.eq.s32.totalorder %s31, 0
      %p184 = por %p182, %p183
      %s185 = ssub.s32 %s25, %s32
      %p186 = scmp.eq.s32.totalorder %s185, 0
      %s188 = sadd.s32 %s187, 1
      %s189 = scalar_select %p186, %s187, %s188
      %p192 = pneg %p186
      %p193 = scmp.eq.s32.totalorder %s25, 1
      %p194 = por %p192, %p193
      %p195 = scmp.ne.s32.totalorder %s187, %s190
      %p196 = scmp.eq.s32.totalorder %s25, 0
      %p197 = por %p195, %p196
      %p198 = scmp.ne.s32.totalorder %s187, %s190
      %p199 = scmp.eq.s32.totalorder %s30, 1
      %p200 = por %p198, %p199
      %p201 = scmp.ne.s32.totalorder %s190, %s191
      %p202 = scmp.eq.s32.totalorder %s30, 0
      %p203 = por %p201, %p202
      %p204 = scmp.ne.s32.totalorder %s190, %s191
      %p205 = scmp.eq.s32.totalorder %s31, 1
      %p206 = por %p204, %p205
      %p208 = scmp.ne.s32.totalorder %s191, %s207
      %p209 = scmp.eq.s32.totalorder %s31, 0
      %p210 = por %p208, %p209
      %s211 = ssub.s32 %s25, %s32
      %p212 = scmp.eq.s32.totalorder %s211, 0
      %s214 = sadd.s32 %s213, 1
      %s215 = scalar_select %p212, %s213, %s214
      %p218 = pneg %p212
      %p219 = scmp.eq.s32.totalorder %s25, 1
      %p220 = por %p218, %p219
      %p221 = scmp.ne.s32.totalorder %s213, %s216
      %p222 = scmp.eq.s32.totalorder %s25, 0
      %p223 = por %p221, %p222
      %p224 = scmp.ne.s32.totalorder %s213, %s216
      %p225 = scmp.eq.s32.totalorder %s30, 1
      %p226 = por %p224, %p225
      %p227 = scmp.ne.s32.totalorder %s216, %s217
      %p228 = scmp.eq.s32.totalorder %s30, 0
      %p229 = por %p227, %p228
      %p230 = scmp.ne.s32.totalorder %s216, %s217
      %p231 = scmp.eq.s32.totalorder %s31, 1
      %p232 = por %p230, %p231
      %p234 = scmp.ne.s32.totalorder %s217, %s233
      %p235 = scmp.eq.s32.totalorder %s31, 0
      %p236 = por %p234, %p235
      %p237 = scmp.le.s32.totalorder 1, %s25
      %p238 = scmp.lt.s32.totalorder %s25, 3
      %p239 = pnand %p237, %p238
      %p240 = pneg %p239
      // Predicated region
      $region9: #{tpu_custom_call.1} parent=5 // pred_check
        _
      $region10: #{tpu_custom_call.1} parent=5 // pred_check_branch
        %242 = sbr.rel (%p239) target = $region12
      $region11: #{tpu_custom_call.1} parent=5 // pred_region
        %s243 = ssub.s32 %s25, 1
        // Predicated region
        $region13: #{tpu_custom_call.1} parent=11 // pred_check
          %p244 = pneg %p72
        $region14: #{tpu_custom_call.1} parent=11 // pred_check_branch
          %246 = sbr.rel (%p244) target = $region16
        $region15: #{tpu_custom_call.1} parent=11 // pred_region
          %s248 = ssub.s32 3072, 3072
          %249 = vsyncadd [#allocation8], %s248
          %s250 = sshll.u32 [#allocation7], 4
          %s251 = int_to_ptr.vmem [resolvable:$true] %s250
          %256 = dma.hbm_to_vmem [thread:$0]  %s1, 3072, %s251, [#allocation8], 192, 192, 12
        $region16: #{tpu_custom_call.1} parent=11 // pred_fallthru
          _
        // Predicated region
        $region17: #{tpu_custom_call.1} parent=11 // pred_check
          %p257 = pneg %p93
        $region18: #{tpu_custom_call.1} parent=11 // pred_check_branch
          %259 = sbr.rel (%p257) target = $region20
        $region19: #{tpu_custom_call.1} parent=11 // pred_region
          _
        $region20: #{tpu_custom_call.1} parent=11 // pred_fallthru
          _
        // Predicated region
        $region21: #{tpu_custom_call.1} parent=11 // pred_check
          %p260 = pneg %p114
        $region22: #{tpu_custom_call.1} parent=11 // pred_check_branch
          %262 = sbr.rel (%p260) target = $region24
        $region23: #{tpu_custom_call.1} parent=11 // pred_region
          %s264 = ssub.s32 1024, 1024
          %265 = vsyncadd [#allocation8], %s264
          %s266 = sshll.u32 [#allocation9], 4
          %s267 = int_to_ptr.vmem [resolvable:$true] %s266
          %272 = dma.hbm_to_vmem [thread:$0]  %s3, 1024, %s267, [#allocation8], 128, 128, 8
        $region24: #{tpu_custom_call.1} parent=11 // pred_fallthru
          _
        // Predicated region
        $region25: #{tpu_custom_call.1} parent=11 // pred_check
          %p273 = pneg %p135
        $region26: #{tpu_custom_call.1} parent=11 // pred_check_branch
          %275 = sbr.rel (%p273) target = $region28
        $region27: #{tpu_custom_call.1} parent=11 // pred_region
          %s277 = ssub.s32 1024, 1024
          %278 = vsyncadd [#allocation11], %s277
          %s279 = sshll.u32 [#allocation10], 4
          %s280 = int_to_ptr.vmem [resolvable:$true] %s279
          %285 = dma.hbm_to_vmem [thread:$0]  %s4, 1024, %s280, [#allocation11], 64, 64, 4
        $region28: #{tpu_custom_call.1} parent=11 // pred_fallthru
          _
        // Predicated region
        $region29: #{tpu_custom_call.1} parent=11 // pred_check
          %p286 = pneg %p156
        $region30: #{tpu_custom_call.1} parent=11 // pred_check_branch
          %288 = sbr.rel (%p286) target = $region32
        $region31: #{tpu_custom_call.1} parent=11 // pred_region
          _
        $region32: #{tpu_custom_call.1} parent=11 // pred_fallthru
          _
        // Predicated region
        $region33: #{tpu_custom_call.1} parent=11 // pred_check
          %p289 = pneg %p177
        $region34: #{tpu_custom_call.1} parent=11 // pred_check_branch
          %291 = sbr.rel (%p289) target = $region36
        $region35: #{tpu_custom_call.1} parent=11 // pred_region
          %s293 = ssub.s32 512, 512
          %294 = vsyncadd [#allocation11], %s293
          %s295 = sshll.u32 [#allocation12], 4
          %s296 = int_to_ptr.vmem [resolvable:$true] %s295
          %301 = dma.hbm_to_vmem [thread:$0]  %s6, 512, %s296, [#allocation11], 128, 128, 8
        $region36: #{tpu_custom_call.1} parent=11 // pred_fallthru
          _
      $region12: #{tpu_custom_call.1} parent=5 // pred_fallthru
        _
      %p302 = scmp.lt.s32.totalorder %s25, 2
      // Predicated region
      $region37: #{tpu_custom_call.1} parent=5 // pred_check
        %p303 = pneg %p302
      $region38: #{tpu_custom_call.1} parent=5 // pred_check_branch
        %305 = sbr.rel (%p303) target = $region40
      $region39: #{tpu_custom_call.1} parent=5 // pred_region
        // Predicated region
        $region41: #{tpu_custom_call.1} parent=39 // pred_check
          %p306 = pneg %p45
        $region42: #{tpu_custom_call.1} parent=39 // pred_check_branch
          %308 = sbr.rel (%p306) target = $region44
        $region43: #{tpu_custom_call.1} parent=39 // pred_region
          %s309 = sand.u32 %s35, 1
          %s310 = scalar_lea.sflag [#allocation5], %s309
          %s311 = sand.u32 %s35, 1
          %s312 = smul.addr %s311, 16
          %s313 = scalar_lea.vmem [#allocation4], %s312
          %s314 = smul.u32 4, %s25
          %s316 = ssub.s32 256, 256
          %317 = vsyncadd %s310, %s316
          %s318 = smul.addr %s314, 64
          %s319 = scalar_lea.hbm %s0, %s318
          %s320 = sshll.u32 %s313, 4
          %s321 = int_to_ptr.vmem [resolvable:$true] %s320
          %326 = dma.hbm_to_vmem [thread:$0]  %s319, 256, %s321, %s310, 64, 64, 4
        $region44: #{tpu_custom_call.1} parent=39 // pred_fallthru
          _
        // Predicated region
        $region45: #{tpu_custom_call.1} parent=39 // pred_check
          %p327 = pneg %p197
        $region46: #{tpu_custom_call.1} parent=39 // pred_check_branch
          %329 = sbr.rel (%p327) target = $region48
        $region47: #{tpu_custom_call.1} parent=39 // pred_region
          %s330 = sand.u32 %s187, 1
          %s331 = scalar_lea.sflag [#allocation14], %s330
          %s332 = sand.u32 %s187, 1
          %s333 = smul.addr %s332, 16
          %s334 = scalar_lea.vmem [#allocation13], %s333
          %s335 = smul.u32 4, %s25
          %s337 = ssub.s32 256, 256
          %338 = vsyncadd %s331, %s337
          %s339 = smul.addr %s335, 64
          %s340 = scalar_lea.hbm %s7, %s339
          %s341 = sshll.u32 %s334, 4
          %s342 = int_to_ptr.vmem [resolvable:$true] %s341
          %347 = dma.hbm_to_vmem [thread:$0]  %s340, 256, %s342, %s331, 64, 64, 4
        $region48: #{tpu_custom_call.1} parent=39 // pred_fallthru
          _
      $region40: #{tpu_custom_call.1} parent=5 // pred_fallthru
        _
      %p348 = scmp.le.s32.totalorder 1, %s25
      %p349 = scmp.lt.s32.totalorder %s25, 3
      %p350 = pnand %p348, %p349
      %p351 = pneg %p350
      // Predicated region
      $region49: #{tpu_custom_call.1} parent=5 // pred_check
        _
      $region50: #{tpu_custom_call.1} parent=5 // pred_check_branch
        %353 = sbr.rel (%p350) target = $region52
      $region51: #{tpu_custom_call.1} parent=5 // pred_region
        %s354 = ssub.s32 %s25, 1
        %s355 = sand.u32 %s38, 1
        %s356 = scalar_lea.sflag [#allocation5], %s355
        %s357 = sand.u32 %s38, 1
        %s358 = smul.addr %s357, 16
        %s359 = scalar_lea.vmem [#allocation4], %s358
        // Predicated region
        $region53: #{tpu_custom_call.1} parent=51 // pred_check
          %p360 = pneg %p51
        $region54: #{tpu_custom_call.1} parent=51 // pred_check_branch
          %362 = sbr.rel (%p360) target = $region56
        $region55: #{tpu_custom_call.1} parent=51 // pred_region
          %363 = dma.done %s356, 256
        $region56: #{tpu_custom_call.1} parent=51 // pred_fallthru
          _
        // Predicated region
        $region57: #{tpu_custom_call.1} parent=51 // pred_check
          %p364 = pneg %p72
        $region58: #{tpu_custom_call.1} parent=51 // pred_check_branch
          %366 = sbr.rel (%p364) target = $region60
        $region59: #{tpu_custom_call.1} parent=51 // pred_region
          %367 = dma.done [#allocation8], 3072
        $region60: #{tpu_custom_call.1} parent=51 // pred_fallthru
          _
        // Predicated region
        $region61: #{tpu_custom_call.1} parent=51 // pred_check
          %p368 = pneg %p114
        $region62: #{tpu_custom_call.1} parent=51 // pred_check_branch
          %370 = sbr.rel (%p368) target = $region64
        $region63: #{tpu_custom_call.1} parent=51 // pred_region
          %371 = dma.done [#allocation8], 1024
        $region64: #{tpu_custom_call.1} parent=51 // pred_fallthru
          _
        // Predicated region
        $region65: #{tpu_custom_call.1} parent=51 // pred_check
          %p372 = pneg %p135
        $region66: #{tpu_custom_call.1} parent=51 // pred_check_branch
          %374 = sbr.rel (%p372) target = $region68
        $region67: #{tpu_custom_call.1} parent=51 // pred_region
          %375 = dma.done [#allocation11], 1024
        $region68: #{tpu_custom_call.1} parent=51 // pred_fallthru
          _
        // Predicated region
        $region69: #{tpu_custom_call.1} parent=51 // pred_check
          %p376 = pneg %p177
        $region70: #{tpu_custom_call.1} parent=51 // pred_check_branch
          %378 = sbr.rel (%p376) target = $region72
        $region71: #{tpu_custom_call.1} parent=51 // pred_region
          %379 = dma.done [#allocation11], 512
        $region72: #{tpu_custom_call.1} parent=51 // pred_fallthru
          _
        %s380 = sand.u32 %s190, 1
        %s381 = scalar_lea.sflag [#allocation14], %s380
        %s382 = sand.u32 %s190, 1
        %s383 = smul.addr %s382, 16
        %s384 = scalar_lea.vmem [#allocation13], %s383
        // Predicated region
        $region73: #{tpu_custom_call.1} parent=51 // pred_check
          %p385 = pneg %p203
        $region74: #{tpu_custom_call.1} parent=51 // pred_check_branch
          %387 = sbr.rel (%p385) target = $region76
        $region75: #{tpu_custom_call.1} parent=51 // pred_region
          %388 = dma.done %s381, 256
        $region76: #{tpu_custom_call.1} parent=51 // pred_fallthru
          _
        %s389 = sand.u32 %s38, 1
        %s390 = scalar_lea.sflag [#allocation5], %s389
        %s391 = sand.u32 %s38, 1
        %s392 = smul.addr %s391, 16
        %s393 = scalar_lea.vmem [#allocation4], %s392
        %p394 = pneg %p51
        %p395 = pneg %p48
        %p396 = pneg %p72
        %p397 = pneg %p69
        %p398 = pneg %p93
        %p399 = pneg %p90
        %p400 = pneg %p114
        %p401 = pneg %p111
        %p402 = pneg %p135
        %p403 = pneg %p132
        %p404 = pneg %p156
        %p405 = pneg %p153
        %p406 = pneg %p177
        %p407 = pneg %p174
        %s408 = sand.u32 %s190, 1
        %s409 = scalar_lea.sflag [#allocation14], %s408
        %s410 = sand.u32 %s190, 1
        %s411 = smul.addr %s410, 16
        %s412 = scalar_lea.vmem [#allocation13], %s411
        %p413 = pneg %p203
        %p414 = pneg %p200
        %p415 = pneg %p229
        %p416 = pneg %p226
        %s417 = sand.u32 %s216, 1
        %s418 = scalar_lea.sflag [#allocation6], %s417
        %s419 = sand.u32 %s216, 1
        %s420 = smul.addr %s419, 32
        %s421 = scalar_lea.vmem [#allocation15], %s420
        %s422 = smul.u32 4, %s30
        %s423 = smul.u32 4, %s30
        %s424 = smul.u32 4, %s30
        %v426 = vld [vmem:[%s359] sm:$0xf]
        %v427 = vld [vmem:[%s359 + $0x4] sm:$0xf]
        %v428 = vld [vmem:[%s359 + $0x8] sm:$0xf]
        %v429 = vld [vmem:[%s359 + $0xc] sm:$0xf]
        %v430 = vld [vmem:[#allocation7] sm:$0xff]
        %v431 = vld [vmem:[#allocation7 + $0x8] sm:$0xf]
        %v432 = vld [vmem:[#allocation7 + $0xc] sm:$0xff]
        %v433 = vld [vmem:[#allocation7 + $0x14] sm:$0xf]
        %v434 = vld [vmem:[#allocation7 + $0x18] sm:$0xff]
        %v435 = vld [vmem:[#allocation7 + $0x20] sm:$0xf]
        %v436 = vld [vmem:[#allocation7 + $0x24] sm:$0xff]
        %v437 = vld [vmem:[#allocation7 + $0x2c] sm:$0xf]
        %v438 = vld [vmem:[#allocation7 + $0x30] sm:$0xff]
        %v439 = vld [vmem:[#allocation7 + $0x38] sm:$0xf]
        %v440 = vld [vmem:[#allocation7 + $0x3c] sm:$0xff]
        %v441 = vld [vmem:[#allocation7 + $0x44] sm:$0xf]
        %v442 = vld [vmem:[#allocation7 + $0x48] sm:$0xff]
        %v443 = vld [vmem:[#allocation7 + $0x50] sm:$0xf]
        %v444 = vld [vmem:[#allocation7 + $0x54] sm:$0xff]
        %v445 = vld [vmem:[#allocation7 + $0x5c] sm:$0xf]
        %v446 = vld [vmem:[#allocation7 + $0x60] sm:$0xff]
        %v447 = vld [vmem:[#allocation7 + $0x68] sm:$0xf]
        %v448 = vld [vmem:[#allocation7 + $0x6c] sm:$0xff]
        %v449 = vld [vmem:[#allocation7 + $0x74] sm:$0xf]
        %v450 = vld [vmem:[#allocation7 + $0x78] sm:$0xff]
        %v451 = vld [vmem:[#allocation7 + $0x80] sm:$0xf]
        %v452 = vld [vmem:[#allocation7 + $0x84] sm:$0xff]
        %v453 = vld [vmem:[#allocation7 + $0x8c] sm:$0xf]
        %v454 = vld [vmem:[#allocation7 + $0x90] sm:$0xff]
        %v455 = vld [vmem:[#allocation7 + $0x98] sm:$0xf]
        %v456 = vld [vmem:[#allocation7 + $0x9c] sm:$0xff]
        %v457 = vld [vmem:[#allocation7 + $0xa4] sm:$0xf]
        %v458 = vld [vmem:[#allocation7 + $0xa8] sm:$0xff]
        %v459 = vld [vmem:[#allocation7 + $0xb0] sm:$0xf]
        %v460 = vld [vmem:[#allocation7 + $0xb4] sm:$0xff]
        %v461 = vld [vmem:[#allocation7 + $0xbc] sm:$0xf]
        %v462 = vld [vmem:[%s2] sm:$0x7]
        %v464 = vlaneseq
        %v465 = vshrl.u32 %v464, 7
        %v466 = vsub.s32 0, %v465
        %v467 = vrot.slane %v462, %v466
        %v468 = vlaneseq
        %v469 = vshrl.u32 %v468, 7
        %v470 = vsub.s32 1, %v469
        %v471 = vrot.slane %v462, %v470
        %v472 = vlaneseq
        %v473 = vshrl.u32 %v472, 7
        %v474 = vsub.s32 2, %v473
        %v475 = vrot.slane %v462, %v474
        %v483 = vunpack.c.l.b16 %v426
        %v484 = vunpack.c.l.b16 %v427
        %v485 = vunpack.c.l.b16 %v428
        %v486 = vunpack.c.l.b16 %v429
        %v487 = vpack.c.b16 %v484, %v483
        %v488 = vpack.c.b16 %v486, %v485
        %v523 = vunpack.c.l.b16 %v430
        %v524 = vunpack.c.h.b16 %v430
        %v525 = vunpack.c.l.b16 %v431
        %v526 = vunpack.c.l.b16 %v432
        %v527 = vunpack.c.h.b16 %v432
        %v528 = vunpack.c.l.b16 %v433
        %v529 = vunpack.c.l.b16 %v434
        %v530 = vunpack.c.h.b16 %v434
        %v531 = vunpack.c.l.b16 %v435
        %v532 = vunpack.c.l.b16 %v436
        %v533 = vunpack.c.h.b16 %v436
        %v534 = vunpack.c.l.b16 %v437
        %v535 = vunpack.c.l.b16 %v438
        %v536 = vunpack.c.h.b16 %v438
        %v537 = vunpack.c.l.b16 %v439
        %v538 = vunpack.c.l.b16 %v440
        %v539 = vunpack.c.h.b16 %v440
        %v540 = vunpack.c.l.b16 %v441
        %v541 = vunpack.c.l.b16 %v442
        %v542 = vunpack.c.h.b16 %v442
        %v543 = vunpack.c.l.b16 %v443
        %v544 = vunpack.c.l.b16 %v444
        %v545 = vunpack.c.h.b16 %v444
        %v546 = vunpack.c.l.b16 %v445
        %v547 = vunpack.c.l.b16 %v446
        %v548 = vunpack.c.h.b16 %v446
        %v549 = vunpack.c.l.b16 %v447
        %v550 = vunpack.c.l.b16 %v448
        %v551 = vunpack.c.h.b16 %v448
        %v552 = vunpack.c.l.b16 %v449
        %v553 = vunpack.c.l.b16 %v450
        %v554 = vunpack.c.h.b16 %v450
        %v555 = vunpack.c.l.b16 %v451
        %v556 = vunpack.c.l.b16 %v452
        %v557 = vunpack.c.h.b16 %v452
        %v558 = vunpack.c.l.b16 %v453
        %v559 = vunpack.c.l.b16 %v454
        %v560 = vunpack.c.h.b16 %v454
        %v561 = vunpack.c.l.b16 %v455
        %v562 = vunpack.c.l.b16 %v456
        %v563 = vunpack.c.h.b16 %v456
        %v564 = vunpack.c.l.b16 %v457
        %v565 = vunpack.c.l.b16 %v458
        %v566 = vunpack.c.h.b16 %v458
        %v567 = vunpack.c.l.b16 %v459
        %v568 = vunpack.c.l.b16 %v460
        %v569 = vunpack.c.h.b16 %v460
        %v570 = vunpack.c.l.b16 %v461
        %v571 = vpack.c.b16 %v526, %v523
        %v572 = vpack.c.b16 %v527, %v524
        %v573 = vpack.c.b16 %v528, %v525
        %v574 = vpack.c.b16 %v532, %v529
        %v575 = vpack.c.b16 %v533, %v530
        %v576 = vpack.c.b16 %v534, %v531
        %v577 = vpack.c.b16 %v538, %v535
        %v578 = vpack.c.b16 %v539, %v536
        %v579 = vpack.c.b16 %v540, %v537
        %v580 = vpack.c.b16 %v544, %v541
        %v581 = vpack.c.b16 %v545, %v542
        %v582 = vpack.c.b16 %v546, %v543
        %v583 = vpack.c.b16 %v550, %v547
        %v584 = vpack.c.b16 %v551, %v548
        %v585 = vpack.c.b16 %v552, %v549
        %v586 = vpack.c.b16 %v556, %v553
        %v587 = vpack.c.b16 %v557, %v554
        %v588 = vpack.c.b16 %v558, %v555
        %v589 = vpack.c.b16 %v562, %v559
        %v590 = vpack.c.b16 %v563, %v560
        %v591 = vpack.c.b16 %v564, %v561
        %v592 = vpack.c.b16 %v568, %v565
        %v593 = vpack.c.b16 %v569, %v566
        %v594 = vpack.c.b16 %v570, %v567
        %619 = vmatprep.subr.bf16.mxu0 %v593
        %620 = vmatpush1.bf16.msra.mxu0 %v592
        %621 = vmatprep.subr.bf16.mxu0 %v590
        %622 = vmatpush1.bf16.msra.mxu0 %v589
        %623 = vmatprep.subr.bf16.mxu0 %v587
        %624 = vmatpush1.bf16.msra.mxu0 %v586
        %625 = vmatprep.subr.bf16.mxu0 %v584
        %626 = vmatpush1.bf16.msra.mxu0 %v583
        %627 = vmatprep.subr.bf16.mxu0 %v581
        %628 = vmatpush1.bf16.msra.mxu0 %v580
        %629 = vmatprep.subr.bf16.mxu0 %v578
        %630 = vmatpush1.bf16.msra.mxu0 %v577
        %631 = vmatprep.subr.bf16.mxu0 %v575
        %632 = vmatpush1.bf16.msra.mxu0 %v574
        %633 = vmatprep.subr.bf16.mxu0 %v572
        %634 = vmatpush1.bf16.msra.mxu0 %v571
        %635 = vmatprep.subr.bf16.mxu0 0
        %636 = vmatpush2.bf16.msra.mxu0 0
        %637 = vmatprep.subr.bf16.mxu0 0
        %638 = vmatpush2.bf16.msra.mxu0 0
        %639 = vmatprep.subr.bf16.mxu0 0
        %640 = vmatpush2.bf16.msra.mxu0 0
        %641 = vmatprep.subr.bf16.mxu0 0
        %642 = vmatpush2.bf16.msra.mxu0 0
        %643 = vmatprep.subr.bf16.mxu0 0
        %644 = vmatpush2.bf16.msra.mxu0 0
        %645 = vmatprep.subr.bf16.mxu0 0
        %646 = vmatpush2.bf16.msra.mxu0 0
        %647 = vmatprep.subr.bf16.mxu0 0
        %648 = vmatpush2.bf16.msra.mxu0 0
        %649 = vmatprep.subr.bf16.mxu0 0
        %650 = vmatpush2.bf16.msra.mxu0 0
        %651 = vmatprep.mubr.bf16.mxu0 0
        %652 = vmatmul.mubr.bf16.gmra.mxu0 %v487
        %v653 = vpop.f32.mrf.mxu0
        %v654 = vadd.f32 %v467, %v653
        %v655 = vpop.f32.mrf.mxu0
        %v656 = vadd.f32 %v471, %v655
        %v657 = vpop.f32.mrf.mxu0
        %v658 = vadd.f32 %v467, %v657
        %v659 = vpop.f32.mrf.mxu0
        %v660 = vadd.f32 %v471, %v659
        %661 = vmatprep.mubr.bf16.mxu0 0
        %662 = vmatmul.mubr.bf16.gmra.mxu0 %v488
        %v663 = vpop.f32.mrf.mxu0
        %v664 = vadd.f32 %v467, %v663
        %v665 = vpop.f32.mrf.mxu0
        %v666 = vadd.f32 %v471, %v665
        %v667 = vpop.f32.mrf.mxu0
        %v668 = vadd.f32 %v467, %v667
        %v669 = vpop.f32.mrf.mxu0
        %v670 = vadd.f32 %v471, %v669
        %671 = vdwg.mxu0
        %672 = vmatprep.subr.bf16.mxu0 0
        %673 = vmatpush1.bf16.msra.mxu0 %v594
        %674 = vmatprep.subr.bf16.mxu0 0
        %675 = vmatpush1.bf16.msra.mxu0 %v591
        %676 = vmatprep.subr.bf16.mxu0 0
        %677 = vmatpush1.bf16.msra.mxu0 %v588
        %678 = vmatprep.subr.bf16.mxu0 0
        %679 = vmatpush1.bf16.msra.mxu0 %v585
        %680 = vmatprep.subr.bf16.mxu0 0
        %681 = vmatpush1.bf16.msra.mxu0 %v582
        %682 = vmatprep.subr.bf16.mxu0 0
        %683 = vmatpush1.bf16.msra.mxu0 %v579
        %684 = vmatprep.subr.bf16.mxu0 0
        %685 = vmatpush1.bf16.msra.mxu0 %v576
        %686 = vmatprep.subr.bf16.mxu0 0
        %687 = vmatpush1.bf16.msra.mxu0 %v573
        %688 = vmatprep.subr.bf16.mxu0 0
        %689 = vmatpush2.bf16.msra.mxu0 0
        %690 = vmatprep.subr.bf16.mxu0 0
        %691 = vmatpush2.bf16.msra.mxu0 0
        %692 = vmatprep.subr.bf16.mxu0 0
        %693 = vmatpush2.bf16.msra.mxu0 0
        %694 = vmatprep.subr.bf16.mxu0 0
        %695 = vmatpush2.bf16.msra.mxu0 0
        %696 = vmatprep.subr.bf16.mxu0 0
        %697 = vmatpush2.bf16.msra.mxu0 0
        %698 = vmatprep.subr.bf16.mxu0 0
        %699 = vmatpush2.bf16.msra.mxu0 0
        %700 = vmatprep.subr.bf16.mxu0 0
        %701 = vmatpush2.bf16.msra.mxu0 0
        %702 = vmatprep.subr.bf16.mxu0 0
        %703 = vmatpush2.bf16.msra.mxu0 0
        %704 = vmatprep.mubr.bf16.mxu0 0
        %705 = vmatmul.mubr.bf16.gmra.mxu0 %v487
        %v706 = vpop.f32.mrf.mxu0
        %v707 = vadd.f32 %v475, %v706
        %v708 = vpop.f32.mrf.mxu0
        %v709 = vpop.f32.mrf.mxu0
        %v710 = vadd.f32 %v475, %v709
        %v711 = vpop.f32.mrf.mxu0
        %712 = vmatprep.mubr.bf16.mxu0 0
        %713 = vmatmul.mubr.bf16.gmra.mxu0 %v488
        %v714 = vpop.f32.mrf.mxu0
        %v715 = vadd.f32 %v475, %v714
        %v716 = vpop.f32.mrf.mxu0
        %v717 = vpop.f32.mrf.mxu0
        %v718 = vadd.f32 %v475, %v717
        %v719 = vpop.f32.mrf.mxu0
        %720 = vdwg.mxu0
        %v721 = vpack.c.bf16 %v658, %v654
        %v722 = vpack.c.bf16 %v660, %v656
        %v723 = vpack.c.bf16 %v710, %v707
        %v724 = vpack.c.bf16 %v668, %v664
        %v725 = vpack.c.bf16 %v670, %v666
        %v726 = vpack.c.bf16 %v718, %v715
        %v733 = vunpack.c.l.b16 %v721
        %v734 = vunpack.c.l.b16 %v722
        %v735 = vunpack.c.l.b16 %v723
        %v736 = vunpack.c.h.b16 %v721
        %v737 = vunpack.c.h.b16 %v722
        %v738 = vunpack.c.h.b16 %v723
        %v739 = vunpack.c.l.b16 %v724
        %v740 = vunpack.c.l.b16 %v725
        %v741 = vunpack.c.l.b16 %v726
        %v742 = vunpack.c.h.b16 %v724
        %v743 = vunpack.c.h.b16 %v725
        %v744 = vunpack.c.h.b16 %v726
        %v745 = vpack.c.b16 %v734, %v733
        %v746 = vpack.c.b16 %v735, %v735
        %v747 = vpack.c.b16 %v737, %v736
        %v748 = vpack.c.b16 %v738, %v738
        %v749 = vpack.c.b16 %v740, %v739
        %v750 = vpack.c.b16 %v741, %v741
        %v751 = vpack.c.b16 %v743, %v742
        %v752 = vpack.c.b16 %v744, %v744
        %761 = vst [vmem:[#allocation2] sm:$0xff] %v745
        %762 = vst [vmem:[#allocation2 + $0x8] sm:$0xf] %v746
        %763 = vst [vmem:[#allocation2 + $0xc] sm:$0xff] %v747
        %764 = vst [vmem:[#allocation2 + $0x14] sm:$0xf] %v748
        %765 = vst [vmem:[#allocation2 + $0x18] sm:$0xff] %v749
        %766 = vst [vmem:[#allocation2 + $0x20] sm:$0xf] %v750
        %767 = vst [vmem:[#allocation2 + $0x24] sm:$0xff] %v751
        %768 = vst [vmem:[#allocation2 + $0x2c] sm:$0xf] %v752
        %vm769 = vcmask 1043712
        %770 = vst.msk [vmem:[#allocation3] sm:$0xf] %vm769, 0
        %771 = vst.msk [vmem:[#allocation3 + $0x4] sm:$0xf] %vm769, 0
        %772 = vst.msk [vmem:[#allocation3 + $0x8] sm:$0xf] %vm769, 0
        %773 = vst.msk [vmem:[#allocation3 + $0xc] sm:$0xf] %vm769, 0
        %v774 = vld [vmem:[#allocation2] sm:$0xf]
        %v775 = vld [vmem:[#allocation2 + $0xc] sm:$0xf]
        %v776 = vld [vmem:[#allocation2 + $0x18] sm:$0xf]
        %v777 = vld [vmem:[#allocation2 + $0x24] sm:$0xf]
        %v778 = vld [vmem:[#allocation2 + $0x4] sm:$0xf]
        %v779 = vld [vmem:[#allocation2 + $0x10] sm:$0xf]
        %v780 = vld [vmem:[#allocation2 + $0x1c] sm:$0xf]
        %v781 = vld [vmem:[#allocation2 + $0x28] sm:$0xf]
        %v782 = vld [vmem:[#allocation2 + $0x8] sm:$0xf]
        %v783 = vld [vmem:[#allocation2 + $0x14] sm:$0xf]
        %v784 = vld [vmem:[#allocation2 + $0x20] sm:$0xf]
        %v785 = vld [vmem:[#allocation2 + $0x2c] sm:$0xf]
        %v786 = vld [vmem:[#allocation9] sm:$0xff]
        %v787 = vld [vmem:[#allocation9 + $0x8] sm:$0xff]
        %v790 = vunpack.c.l.b16 %v774
        %v791 = vunpack.c.l.b16 %v775
        %v792 = vpack.c.b16 %v791, %v790
        %v795 = vunpack.c.l.b16 %v778
        %v796 = vunpack.c.l.b16 %v779
        %v797 = vpack.c.b16 %v796, %v795
        %vm798 = vcmask 64512
        %v800 = vsel %vm798, %v792, 0
        %v803 = vsel %vm798, %v797, 0
        %805 = vmatprep.subr.bf16.mxu0 0
        %806 = vmatpush1.bf16.xpose.msra.mxu0 0
        %807 = vmatprep.subr.bf16.mxu0 0
        %808 = vmatpush1.bf16.xpose.msra.mxu0 0
        %809 = vmatprep.subr.bf16.mxu0 0
        %810 = vmatpush1.bf16.xpose.msra.mxu0 0
        %811 = vmatprep.subr.bf16.mxu0 0
        %812 = vmatpush1.bf16.xpose.msra.mxu0 0
        %813 = vmatprep.subr.bf16.mxu0 0
        %814 = vmatpush1.bf16.xpose.msra.mxu0 0
        %815 = vmatprep.subr.bf16.mxu0 0
        %816 = vmatpush1.bf16.xpose.msra.mxu0 0
        %817 = vmatprep.subr.bf16.mxu0 0
        %818 = vmatpush1.bf16.xpose.msra.mxu0 0
        %819 = vmatprep.subr.bf16.mxu0 0
        %820 = vmatpush1.bf16.xpose.msra.mxu0 %v803
        %821 = vmatprep.subr.bf16.mxu0 0
        %822 = vmatpush2.bf16.xpose.msra.mxu0 0
        %823 = vmatprep.subr.bf16.mxu0 0
        %824 = vmatpush2.bf16.xpose.msra.mxu0 0
        %825 = vmatprep.subr.bf16.mxu0 0
        %826 = vmatpush2.bf16.xpose.msra.mxu0 0
        %827 = vmatprep.subr.bf16.mxu0 0
        %828 = vmatpush2.bf16.xpose.msra.mxu0 0
        %829 = vmatprep.subr.bf16.mxu0 0
        %830 = vmatpush2.bf16.xpose.msra.mxu0 0
        %831 = vmatprep.subr.bf16.mxu0 0
        %832 = vmatpush2.bf16.xpose.msra.mxu0 0
        %833 = vmatprep.subr.bf16.mxu0 0
        %834 = vmatpush2.bf16.xpose.msra.mxu0 0
        %835 = vmatprep.subr.bf16.mxu0 0
        %836 = vmatpush2.bf16.xpose.msra.mxu0 0
        %837 = vmatprep.mubr.bf16.mxu0 0
        %838 = vmatmul.mubr.bf16.gmra.mxu0 %v800
        %v839 = vpop.f32.mrf.mxu0
        %v840 = vadd.f32 %v786, %v839
        %v841 = vpop.f32.mrf.mxu0
        %v842 = vpop.f32.mrf.mxu0
        %v843 = vadd.f32 %v787, %v842
        %v844 = vpop.f32.mrf.mxu0
        %845 = vdwg.mxu0
        %v848 = vunpack.c.l.b16 %v776
        %v849 = vunpack.c.l.b16 %v777
        %v850 = vpack.c.b16 %v849, %v848
        %v853 = vunpack.c.l.b16 %v780
        %v854 = vunpack.c.l.b16 %v781
        %v855 = vpack.c.b16 %v854, %v853
        %v857 = vsel %vm798, %v850, 0
        %v860 = vsel %vm798, %v855, 0
        %862 = vmatprep.subr.bf16.mxu0 0
        %863 = vmatpush1.bf16.xpose.msra.mxu0 0
        %864 = vmatprep.subr.bf16.mxu0 0
        %865 = vmatpush1.bf16.xpose.msra.mxu0 0
        %866 = vmatprep.subr.bf16.mxu0 0
        %867 = vmatpush1.bf16.xpose.msra.mxu0 0
        %868 = vmatprep.subr.bf16.mxu0 0
        %869 = vmatpush1.bf16.xpose.msra.mxu0 0
        %870 = vmatprep.subr.bf16.mxu0 0
        %871 = vmatpush1.bf16.xpose.msra.mxu0 0
        %872 = vmatprep.subr.bf16.mxu0 0
        %873 = vmatpush1.bf16.xpose.msra.mxu0 0
        %874 = vmatprep.subr.bf16.mxu0 0
        %875 = vmatpush1.bf16.xpose.msra.mxu0 0
        %876 = vmatprep.subr.bf16.mxu0 0
        %877 = vmatpush1.bf16.xpose.msra.mxu0 %v860
        %878 = vmatprep.subr.bf16.mxu0 0
        %879 = vmatpush2.bf16.xpose.msra.mxu0 0
        %880 = vmatprep.subr.bf16.mxu0 0
        %881 = vmatpush2.bf16.xpose.msra.mxu0 0
        %882 = vmatprep.subr.bf16.mxu0 0
        %883 = vmatpush2.bf16.xpose.msra.mxu0 0
        %884 = vmatprep.subr.bf16.mxu0 0
        %885 = vmatpush2.bf16.xpose.msra.mxu0 0
        %886 = vmatprep.subr.bf16.mxu0 0
        %887 = vmatpush2.bf16.xpose.msra.mxu0 0
        %888 = vmatprep.subr.bf16.mxu0 0
        %889 = vmatpush2.bf16.xpose.msra.mxu0 0
        %890 = vmatprep.subr.bf16.mxu0 0
        %891 = vmatpush2.bf16.xpose.msra.mxu0 0
        %892 = vmatprep.subr.bf16.mxu0 0
        %893 = vmatpush2.bf16.xpose.msra.mxu0 0
        %894 = vmatprep.mubr.bf16.mxu0 0
        %895 = vmatmul.mubr.bf16.gmra.mxu0 %v857
        %v896 = vpop.f32.mrf.mxu0
        %v897 = vadd.f32 %v786, %v896
        %v898 = vpop.f32.mrf.mxu0
        %v899 = vpop.f32.mrf.mxu0
        %v900 = vadd.f32 %v787, %v899
        %v901 = vpop.f32.mrf.mxu0
        %902 = vdwg.mxu0
        %v903 = vld [vmem:[#allocation12] sm:$0xff]
        %v904 = vld [vmem:[#allocation12 + $0x8] sm:$0xff]
        %v905 = vld [vmem:[#allocation12 + $0x10] sm:$0xff]
        %v906 = vld [vmem:[#allocation12 + $0x18] sm:$0xff]
        %v907 = vadd.f32 %v840, %v903
        %v908 = vadd.f32 %v843, %v904
        %v909 = vadd.f32 %v897, %v905
        %v910 = vadd.f32 %v900, %v906
        %vm911 = vcmask 130048
        %v912 = vsel %vm911, %v907, -inf
        %913 = vmax.xlane.f32.xlu0 %v912
        %v914 = vpop.xlane.xlu0 %913
        %v915 = vsel %vm911, %v908, -inf
        %916 = vmax.xlane.f32.xlu0 %v915
        %v917 = vpop.xlane.xlu0 %916
        %v918 = vsel %vm911, %v909, -inf
        %919 = vmax.xlane.f32.xlu0 %v918
        %v920 = vpop.xlane.xlu0 %919
        %v921 = vsel %vm911, %v910, -inf
        %922 = vmax.xlane.f32.xlu0 %v921
        %v923 = vpop.xlane.xlu0 %922
        %v924 = vsub.f32 %v907, %v914
        %v925 = vsub.f32 %v908, %v917
        %v926 = vsub.f32 %v909, %v920
        %v927 = vsub.f32 %v910, %v923
        %v928 = vmul.f32 %v924, 1.442695
        %v929 = vpow.pop %v928
        %v930 = vmul.f32 %v925, 1.442695
        %v931 = vpow.pop %v930
        %v932 = vmul.f32 %v926, 1.442695
        %v933 = vpow.pop %v932
        %v934 = vmul.f32 %v927, 1.442695
        %v935 = vpow.pop %v934
        %v936 = vsel %vm911, %v929, 0.0
        %937 = vadd.xlane.f32.xlu0 %v936
        %v938 = vpop.xlane.xlu0 %937
        %v939 = vsel %vm911, %v931, 0.0
        %940 = vadd.xlane.f32.xlu0 %v939
        %v941 = vpop.xlane.xlu0 %940
        %v942 = vsel %vm911, %v933, 0.0
        %943 = vadd.xlane.f32.xlu0 %v942
        %v944 = vpop.xlane.xlu0 %943
        %v945 = vsel %vm911, %v935, 0.0
        %946 = vadd.xlane.f32.xlu0 %v945
        %v947 = vpop.xlane.xlu0 %946
        %v948 = vrcp.pop %v938
        %v949 = vrcp.pop %v941
        %v950 = vrcp.pop %v944
        %v951 = vrcp.pop %v947
        %v952 = vmul.f32 %v929, %v948
        %v953 = vmul.f32 %v931, %v949
        %v954 = vmul.f32 %v933, %v950
        %v955 = vmul.f32 %v935, %v951
        %v956 = vpack.c.bf16 %v953, %v952
        %v957 = vpack.c.bf16 %v955, %v954
        %v960 = vunpack.c.l.b16 %v782
        %v961 = vunpack.c.l.b16 %v783
        %v962 = vpack.c.b16 %v961, %v960
        %v965 = vsel %vm911, %v956, 0
        %967 = vmatprep.subr.bf16.mxu0 0
        %968 = vmatpush1.bf16.msra.mxu0 0
        %969 = vmatprep.subr.bf16.mxu0 0
        %970 = vmatpush1.bf16.msra.mxu0 0
        %971 = vmatprep.subr.bf16.mxu0 0
        %972 = vmatpush1.bf16.msra.mxu0 0
        %973 = vmatprep.subr.bf16.mxu0 0
        %974 = vmatpush1.bf16.msra.mxu0 0
        %975 = vmatprep.subr.bf16.mxu0 0
        %976 = vmatpush1.bf16.msra.mxu0 0
        %977 = vmatprep.subr.bf16.mxu0 0
        %978 = vmatpush1.bf16.msra.mxu0 0
        %979 = vmatprep.subr.bf16.mxu0 0
        %980 = vmatpush1.bf16.msra.mxu0 0
        %981 = vmatprep.subr.bf16.mxu0 0
        %982 = vmatpush1.bf16.msra.mxu0 %v962
        %983 = vmatprep.subr.bf16.mxu0 0
        %984 = vmatpush2.bf16.msra.mxu0 0
        %985 = vmatprep.subr.bf16.mxu0 0
        %986 = vmatpush2.bf16.msra.mxu0 0
        %987 = vmatprep.subr.bf16.mxu0 0
        %988 = vmatpush2.bf16.msra.mxu0 0
        %989 = vmatprep.subr.bf16.mxu0 0
        %990 = vmatpush2.bf16.msra.mxu0 0
        %991 = vmatprep.subr.bf16.mxu0 0
        %992 = vmatpush2.bf16.msra.mxu0 0
        %993 = vmatprep.subr.bf16.mxu0 0
        %994 = vmatpush2.bf16.msra.mxu0 0
        %995 = vmatprep.subr.bf16.mxu0 0
        %996 = vmatpush2.bf16.msra.mxu0 0
        %997 = vmatprep.subr.bf16.mxu0 0
        %998 = vmatpush2.bf16.msra.mxu0 0
        %999 = vmatprep.mubr.bf16.mxu0 0
        %1000 = vmatmul.mubr.bf16.gmra.mxu0 %v965
        %v1001 = vpop.f32.mrf.mxu0
        %v1002 = vadd.f32 0.0, %v1001
        %v1003 = vpop.f32.mrf.mxu0
        %v1004 = vpop.f32.mrf.mxu0
        %v1005 = vadd.f32 0.0, %v1004
        %v1006 = vpop.f32.mrf.mxu0
        %1007 = vdwg.mxu0
        %v1010 = vunpack.c.l.b16 %v784
        %v1011 = vunpack.c.l.b16 %v785
        %v1012 = vpack.c.b16 %v1011, %v1010
        %v1015 = vsel %vm911, %v957, 0
        %1017 = vmatprep.subr.bf16.mxu0 0
        %1018 = vmatpush1.bf16.msra.mxu0 0
        %1019 = vmatprep.subr.bf16.mxu0 0
        %1020 = vmatpush1.bf16.msra.mxu0 0
        %1021 = vmatprep.subr.bf16.mxu0 0
        %1022 = vmatpush1.bf16.msra.mxu0 0
        %1023 = vmatprep.subr.bf16.mxu0 0
        %1024 = vmatpush1.bf16.msra.mxu0 0
        %1025 = vmatprep.subr.bf16.mxu0 0
        %1026 = vmatpush1.bf16.msra.mxu0 0
        %1027 = vmatprep.subr.bf16.mxu0 0
        %1028 = vmatpush1.bf16.msra.mxu0 0
        %1029 = vmatprep.subr.bf16.mxu0 0
        %1030 = vmatpush1.bf16.msra.mxu0 0
        %1031 = vmatprep.subr.bf16.mxu0 0
        %1032 = vmatpush1.bf16.msra.mxu0 %v1012
        %1033 = vmatprep.subr.bf16.mxu0 0
        %1034 = vmatpush2.bf16.msra.mxu0 0
        %1035 = vmatprep.subr.bf16.mxu0 0
        %1036 = vmatpush2.bf16.msra.mxu0 0
        %1037 = vmatprep.subr.bf16.mxu0 0
        %1038 = vmatpush2.bf16.msra.mxu0 0
        %1039 = vmatprep.subr.bf16.mxu0 0
        %1040 = vmatpush2.bf16.msra.mxu0 0
        %1041 = vmatprep.subr.bf16.mxu0 0
        %1042 = vmatpush2.bf16.msra.mxu0 0
        %1043 = vmatprep.subr.bf16.mxu0 0
        %1044 = vmatpush2.bf16.msra.mxu0 0
        %1045 = vmatprep.subr.bf16.mxu0 0
        %1046 = vmatpush2.bf16.msra.mxu0 0
        %1047 = vmatprep.subr.bf16.mxu0 0
        %1048 = vmatpush2.bf16.msra.mxu0 0
        %1049 = vmatprep.mubr.bf16.mxu0 0
        %1050 = vmatmul.mubr.bf16.gmra.mxu0 %v1015
        %v1051 = vpop.f32.mrf.mxu0
        %v1052 = vadd.f32 0.0, %v1051
        %v1053 = vpop.f32.mrf.mxu0
        %v1054 = vpop.f32.mrf.mxu0
        %v1055 = vadd.f32 0.0, %v1054
        %v1056 = vpop.f32.mrf.mxu0
        %1057 = vdwg.mxu0
        %v1058 = vpack.c.bf16 %v1005, %v1002
        %v1059 = vpack.c.bf16 %v1055, %v1052
        %v1062 = vunpack.c.l.b16 %v1058
        %v1063 = vunpack.c.h.b16 %v1058
        %v1064 = vunpack.c.l.b16 %v1059
        %v1065 = vunpack.c.h.b16 %v1059
        %v1066 = vpack.c.b16 %v1062, %v1062
        %v1067 = vpack.c.b16 %v1063, %v1063
        %v1068 = vpack.c.b16 %v1064, %v1064
        %v1069 = vpack.c.b16 %v1065, %v1065
        %vm1074 = vcmask 60416
        %1075 = vst.msk [vmem:[#allocation3] sm:$0xf] %vm1074, %v1066
        %1076 = vst.msk [vmem:[#allocation3 + $0x4] sm:$0xf] %vm1074, %v1067
        %1077 = vst.msk [vmem:[#allocation3 + $0x8] sm:$0xf] %vm1074, %v1068
        %1078 = vst.msk [vmem:[#allocation3 + $0xc] sm:$0xf] %vm1074, %v1069
        %v1079 = vld [vmem:[#allocation2] sm:$0xf]
        %v1080 = vld [vmem:[#allocation2 + $0xc] sm:$0xf]
        %v1081 = vld [vmem:[#allocation2 + $0x18] sm:$0xf]
        %v1082 = vld [vmem:[#allocation2 + $0x24] sm:$0xf]
        %v1083 = vld [vmem:[#allocation2 + $0x4] sm:$0xf]
        %v1084 = vld [vmem:[#allocation2 + $0x10] sm:$0xf]
        %v1085 = vld [vmem:[#allocation2 + $0x1c] sm:$0xf]
        %v1086 = vld [vmem:[#allocation2 + $0x28] sm:$0xf]
        %v1087 = vld [vmem:[#allocation2 + $0x8] sm:$0xf]
        %v1088 = vld [vmem:[#allocation2 + $0x14] sm:$0xf]
        %v1089 = vld [vmem:[#allocation2 + $0x20] sm:$0xf]
        %v1090 = vld [vmem:[#allocation2 + $0x2c] sm:$0xf]
        %s1091 = scalar_lea.vmem [#allocation9], 16
        %v1092 = vld [vmem:[%s1091] sm:$0xff]
        %v1093 = vld [vmem:[%s1091 + $0x8] sm:$0xff]
        %v1096 = vunpack.c.l.b16 %v1079
        %v1097 = vunpack.c.l.b16 %v1080
        %v1098 = vpack.c.b16 %v1097, %v1096
        %1099 = vrot.lane.b32.xlu0 %v1098, 120
        %v1100 = vpop.permute.xlu0 %1099
        %v1103 = vunpack.c.l.b16 %v1083
        %v1104 = vunpack.c.l.b16 %v1084
        %v1105 = vpack.c.b16 %v1104, %v1103
        %1106 = vrot.lane.b32.xlu0 %v1105, 120
        %v1107 = vpop.permute.xlu0 %1106
        %v1109 = vsel %vm798, %v1100, 0
        %v1112 = vsel %vm798, %v1107, 0
        %1114 = vmatprep.subr.bf16.mxu0 0
        %1115 = vmatpush1.bf16.xpose.msra.mxu0 0
        %1116 = vmatprep.subr.bf16.mxu0 0
        %1117 = vmatpush1.bf16.xpose.msra.mxu0 0
        %1118 = vmatprep.subr.bf16.mxu0 0
        %1119 = vmatpush1.bf16.xpose.msra.mxu0 0
        %1120 = vmatprep.subr.bf16.mxu0 0
        %1121 = vmatpush1.bf16.xpose.msra.mxu0 0
        %1122 = vmatprep.subr.bf16.mxu0 0
        %1123 = vmatpush1.bf16.xpose.msra.mxu0 0
        %1124 = vmatprep.subr.bf16.mxu0 0
        %1125 = vmatpush1.bf16.xpose.msra.mxu0 0
        %1126 = vmatprep.subr.bf16.mxu0 0
        %1127 = vmatpush1.bf16.xpose.msra.mxu0 0
        %1128 = vmatprep.subr.bf16.mxu0 0
        %1129 = vmatpush1.bf16.xpose.msra.mxu0 %v1112
        %1130 = vmatprep.subr.bf16.mxu0 0
        %1131 = vmatpush2.bf16.xpose.msra.mxu0 0
        %1132 = vmatprep.subr.bf16.mxu0 0
        %1133 = vmatpush2.bf16.xpose.msra.mxu0 0
        %1134 = vmatprep.subr.bf16.mxu0 0
        %1135 = vmatpush2.bf16.xpose.msra.mxu0 0
        %1136 = vmatprep.subr.bf16.mxu0 0
        %1137 = vmatpush2.bf16.xpose.msra.mxu0 0
        %1138 = vmatprep.subr.bf16.mxu0 0
        %1139 = vmatpush2.bf16.xpose.msra.mxu0 0
        %1140 = vmatprep.subr.bf16.mxu0 0
        %1141 = vmatpush2.bf16.xpose.msra.mxu0 0
        %1142 = vmatprep.subr.bf16.mxu0 0
        %1143 = vmatpush2.bf16.xpose.msra.mxu0 0
        %1144 = vmatprep.subr.bf16.mxu0 0
        %1145 = vmatpush2.bf16.xpose.msra.mxu0 0
        %1146 = vmatprep.mubr.bf16.mxu0 0
        %1147 = vmatmul.mubr.bf16.gmra.mxu0 %v1109
        %v1148 = vpop.f32.mrf.mxu0
        %v1149 = vadd.f32 %v1092, %v1148
        %v1150 = vpop.f32.mrf.mxu0
        %v1151 = vpop.f32.mrf.mxu0
        %v1152 = vadd.f32 %v1093, %v1151
        %v1153 = vpop.f32.mrf.mxu0
        %1154 = vdwg.mxu0
        %v1157 = vunpack.c.l.b16 %v1081
        %v1158 = vunpack.c.l.b16 %v1082
        %v1159 = vpack.c.b16 %v1158, %v1157
        %1160 = vrot.lane.b32.xlu0 %v1159, 120
        %v1161 = vpop.permute.xlu0 %1160
        %v1164 = vunpack.c.l.b16 %v1085
        %v1165 = vunpack.c.l.b16 %v1086
        %v1166 = vpack.c.b16 %v1165, %v1164
        %1167 = vrot.lane.b32.xlu0 %v1166, 120
        %v1168 = vpop.permute.xlu0 %1167
        %v1170 = vsel %vm798, %v1161, 0
        %v1173 = vsel %vm798, %v1168, 0
        %1175 = vmatprep.subr.bf16.mxu0 0
        %1176 = vmatpush1.bf16.xpose.msra.mxu0 0
        %1177 = vmatprep.subr.bf16.mxu0 0
        %1178 = vmatpush1.bf16.xpose.msra.mxu0 0
        %1179 = vmatprep.subr.bf16.mxu0 0
        %1180 = vmatpush1.bf16.xpose.msra.mxu0 0
        %1181 = vmatprep.subr.bf16.mxu0 0
        %1182 = vmatpush1.bf16.xpose.msra.mxu0 0
        %1183 = vmatprep.subr.bf16.mxu0 0
        %1184 = vmatpush1.bf16.xpose.msra.mxu0 0
        %1185 = vmatprep.subr.bf16.mxu0 0
        %1186 = vmatpush1.bf16.xpose.msra.mxu0 0
        %1187 = vmatprep.subr.bf16.mxu0 0
        %1188 = vmatpush1.bf16.xpose.msra.mxu0 0
        %1189 = vmatprep.subr.bf16.mxu0 0
        %1190 = vmatpush1.bf16.xpose.msra.mxu0 %v1173
        %1191 = vmatprep.subr.bf16.mxu0 0
        %1192 = vmatpush2.bf16.xpose.msra.mxu0 0
        %1193 = vmatprep.subr.bf16.mxu0 0
        %1194 = vmatpush2.bf16.xpose.msra.mxu0 0
        %1195 = vmatprep.subr.bf16.mxu0 0
        %1196 = vmatpush2.bf16.xpose.msra.mxu0 0
        %1197 = vmatprep.subr.bf16.mxu0 0
        %1198 = vmatpush2.bf16.xpose.msra.mxu0 0
        %1199 = vmatprep.subr.bf16.mxu0 0
        %1200 = vmatpush2.bf16.xpose.msra.mxu0 0
        %1201 = vmatprep.subr.bf16.mxu0 0
        %1202 = vmatpush2.bf16.xpose.msra.mxu0 0
        %1203 = vmatprep.subr.bf16.mxu0 0
        %1204 = vmatpush2.bf16.xpose.msra.mxu0 0
        %1205 = vmatprep.subr.bf16.mxu0 0
        %1206 = vmatpush2.bf16.xpose.msra.mxu0 0
        %1207 = vmatprep.mubr.bf16.mxu0 0
        %1208 = vmatmul.mubr.bf16.gmra.mxu0 %v1170
        %v1209 = vpop.f32.mrf.mxu0
        %v1210 = vadd.f32 %v1092, %v1209
        %v1211 = vpop.f32.mrf.mxu0
        %v1212 = vpop.f32.mrf.mxu0
        %v1213 = vadd.f32 %v1093, %v1212
        %v1214 = vpop.f32.mrf.mxu0
        %1215 = vdwg.mxu0
        %v1216 = vld [vmem:[#allocation12] sm:$0xff]
        %v1217 = vld [vmem:[#allocation12 + $0x8] sm:$0xff]
        %v1218 = vld [vmem:[#allocation12 + $0x10] sm:$0xff]
        %v1219 = vld [vmem:[#allocation12 + $0x18] sm:$0xff]
        %v1220 = vadd.f32 %v1149, %v1216
        %v1221 = vadd.f32 %v1152, %v1217
        %v1222 = vadd.f32 %v1210, %v1218
        %v1223 = vadd.f32 %v1213, %v1219
        %v1224 = vsel %vm911, %v1220, -inf
        %1225 = vmax.xlane.f32.xlu0 %v1224
        %v1226 = vpop.xlane.xlu0 %1225
        %v1227 = vsel %vm911, %v1221, -inf
        %1228 = vmax.xlane.f32.xlu0 %v1227
        %v1229 = vpop.xlane.xlu0 %1228
        %v1230 = vsel %vm911, %v1222, -inf
        %1231 = vmax.xlane.f32.xlu0 %v1230
        %v1232 = vpop.xlane.xlu0 %1231
        %v1233 = vsel %vm911, %v1223, -inf
        %1234 = vmax.xlane.f32.xlu0 %v1233
        %v1235 = vpop.xlane.xlu0 %1234
        %v1236 = vsub.f32 %v1220, %v1226
        %v1237 = vsub.f32 %v1221, %v1229
        %v1238 = vsub.f32 %v1222, %v1232
        %v1239 = vsub.f32 %v1223, %v1235
        %v1240 = vmul.f32 %v1236, 1.442695
        %v1241 = vpow.pop %v1240
        %v1242 = vmul.f32 %v1237, 1.442695
        %v1243 = vpow.pop %v1242
        %v1244 = vmul.f32 %v1238, 1.442695
        %v1245 = vpow.pop %v1244
        %v1246 = vmul.f32 %v1239, 1.442695
        %v1247 = vpow.pop %v1246
        %v1248 = vsel %vm911, %v1241, 0.0
        %1249 = vadd.xlane.f32.xlu0 %v1248
        %v1250 = vpop.xlane.xlu0 %1249
        %v1251 = vsel %vm911, %v1243, 0.0
        %1252 = vadd.xlane.f32.xlu0 %v1251
        %v1253 = vpop.xlane.xlu0 %1252
        %v1254 = vsel %vm911, %v1245, 0.0
        %1255 = vadd.xlane.f32.xlu0 %v1254
        %v1256 = vpop.xlane.xlu0 %1255
        %v1257 = vsel %vm911, %v1247, 0.0
        %1258 = vadd.xlane.f32.xlu0 %v1257
        %v1259 = vpop.xlane.xlu0 %1258
        %v1260 = vrcp.pop %v1250
        %v1261 = vrcp.pop %v1253
        %v1262 = vrcp.pop %v1256
        %v1263 = vrcp.pop %v1259
        %v1264 = vmul.f32 %v1241, %v1260
        %v1265 = vmul.f32 %v1243, %v1261
        %v1266 = vmul.f32 %v1245, %v1262
        %v1267 = vmul.f32 %v1247, %v1263
        %v1268 = vpack.c.bf16 %v1265, %v1264
        %v1269 = vpack.c.bf16 %v1267, %v1266
        %v1272 = vunpack.c.l.b16 %v1087
        %v1273 = vunpack.c.l.b16 %v1088
        %v1274 = vpack.c.b16 %v1273, %v1272
        %1275 = vrot.lane.b32.xlu0 %v1274, 120
        %v1276 = vpop.permute.xlu0 %1275
        %v1279 = vsel %vm911, %v1268, 0
        %1281 = vmatprep.subr.bf16.mxu0 0
        %1282 = vmatpush1.bf16.msra.mxu0 0
        %1283 = vmatprep.subr.bf16.mxu0 0
        %1284 = vmatpush1.bf16.msra.mxu0 0
        %1285 = vmatprep.subr.bf16.mxu0 0
        %1286 = vmatpush1.bf16.msra.mxu0 0
        %1287 = vmatprep.subr.bf16.mxu0 0
        %1288 = vmatpush1.bf16.msra.mxu0 0
        %1289 = vmatprep.subr.bf16.mxu0 0
        %1290 = vmatpush1.bf16.msra.mxu0 0
        %1291 = vmatprep.subr.bf16.mxu0 0
        %1292 = vmatpush1.bf16.msra.mxu0 0
        %1293 = vmatprep.subr.bf16.mxu0 0
        %1294 = vmatpush1.bf16.msra.mxu0 0
        %1295 = vmatprep.subr.bf16.mxu0 0
        %1296 = vmatpush1.bf16.msra.mxu0 %v1276
        %1297 = vmatprep.subr.bf16.mxu0 0
        %1298 = vmatpush2.bf16.msra.mxu0 0
        %1299 = vmatprep.subr.bf16.mxu0 0
        %1300 = vmatpush2.bf16.msra.mxu0 0
        %1301 = vmatprep.subr.bf16.mxu0 0
        %1302 = vmatpush2.bf16.msra.mxu0 0
        %1303 = vmatprep.subr.bf16.mxu0 0
        %1304 = vmatpush2.bf16.msra.mxu0 0
        %1305 = vmatprep.subr.bf16.mxu0 0
        %1306 = vmatpush2.bf16.msra.mxu0 0
        %1307 = vmatprep.subr.bf16.mxu0 0
        %1308 = vmatpush2.bf16.msra.mxu0 0
        %1309 = vmatprep.subr.bf16.mxu0 0
        %1310 = vmatpush2.bf16.msra.mxu0 0
        %1311 = vmatprep.subr.bf16.mxu0 0
        %1312 = vmatpush2.bf16.msra.mxu0 0
        %1313 = vmatprep.mubr.bf16.mxu0 0
        %1314 = vmatmul.mubr.bf16.gmra.mxu0 %v1279
        %v1315 = vpop.f32.mrf.mxu0
        %v1316 = vadd.f32 0.0, %v1315
        %v1317 = vpop.f32.mrf.mxu0
        %v1318 = vpop.f32.mrf.mxu0
        %v1319 = vadd.f32 0.0, %v1318
        %v1320 = vpop.f32.mrf.mxu0
        %1321 = vdwg.mxu0
        %v1324 = vunpack.c.l.b16 %v1089
        %v1325 = vunpack.c.l.b16 %v1090
        %v1326 = vpack.c.b16 %v1325, %v1324
        %1327 = vrot.lane.b32.xlu0 %v1326, 120
        %v1328 = vpop.permute.xlu0 %1327
        %v1331 = vsel %vm911, %v1269, 0
        %1333 = vmatprep.subr.bf16.mxu0 0
        %1334 = vmatpush1.bf16.msra.mxu0 0
        %1335 = vmatprep.subr.bf16.mxu0 0
        %1336 = vmatpush1.bf16.msra.mxu0 0
        %1337 = vmatprep.subr.bf16.mxu0 0
        %1338 = vmatpush1.bf16.msra.mxu0 0
        %1339 = vmatprep.subr.bf16.mxu0 0
        %1340 = vmatpush1.bf16.msra.mxu0 0
        %1341 = vmatprep.subr.bf16.mxu0 0
        %1342 = vmatpush1.bf16.msra.mxu0 0
        %1343 = vmatprep.subr.bf16.mxu0 0
        %1344 = vmatpush1.bf16.msra.mxu0 0
        %1345 = vmatprep.subr.bf16.mxu0 0
        %1346 = vmatpush1.bf16.msra.mxu0 0
        %1347 = vmatprep.subr.bf16.mxu0 0
        %1348 = vmatpush1.bf16.msra.mxu0 %v1328
        %1349 = vmatprep.subr.bf16.mxu0 0
        %1350 = vmatpush2.bf16.msra.mxu0 0
        %1351 = vmatprep.subr.bf16.mxu0 0
        %1352 = vmatpush2.bf16.msra.mxu0 0
        %1353 = vmatprep.subr.bf16.mxu0 0
        %1354 = vmatpush2.bf16.msra.mxu0 0
        %1355 = vmatprep.subr.bf16.mxu0 0
        %1356 = vmatpush2.bf16.msra.mxu0 0
        %1357 = vmatprep.subr.bf16.mxu0 0
        %1358 = vmatpush2.bf16.msra.mxu0 0
        %1359 = vmatprep.subr.bf16.mxu0 0
        %1360 = vmatpush2.bf16.msra.mxu0 0
        %1361 = vmatprep.subr.bf16.mxu0 0
        %1362 = vmatpush2.bf16.msra.mxu0 0
        %1363 = vmatprep.subr.bf16.mxu0 0
        %1364 = vmatpush2.bf16.msra.mxu0 0
        %1365 = vmatprep.mubr.bf16.mxu0 0
        %1366 = vmatmul.mubr.bf16.gmra.mxu0 %v1331
        %v1367 = vpop.f32.mrf.mxu0
        %v1368 = vadd.f32 0.0, %v1367
        %v1369 = vpop.f32.mrf.mxu0
        %v1370 = vpop.f32.mrf.mxu0
        %v1371 = vadd.f32 0.0, %v1370
        %v1372 = vpop.f32.mrf.mxu0
        %1373 = vdwg.mxu0
        %v1374 = vpack.c.bf16 %v1319, %v1316
        %v1375 = vpack.c.bf16 %v1371, %v1368
        %v1378 = vunpack.c.l.b16 %v1374
        %v1379 = vunpack.c.h.b16 %v1374
        %v1380 = vunpack.c.l.b16 %v1375
        %v1381 = vunpack.c.h.b16 %v1375
        %v1382 = vpack.c.b16 %v1378, %v1378
        %v1383 = vpack.c.b16 %v1379, %v1379
        %v1384 = vpack.c.b16 %v1380, %v1380
        %v1385 = vpack.c.b16 %v1381, %v1381
        %1386 = vrot.lane.b32.xlu0 %v1382, 8
        %v1387 = vpop.permute.xlu0 %1386
        %1388 = vrot.lane.b32.xlu0 %v1383, 8
        %v1389 = vpop.permute.xlu0 %1388
        %1390 = vrot.lane.b32.xlu0 %v1384, 8
        %v1391 = vpop.permute.xlu0 %1390
        %1392 = vrot.lane.b32.xlu0 %v1385, 8
        %v1393 = vpop.permute.xlu0 %1392
        %vm1398 = vcmask 126016
        %1399 = vst.msk [vmem:[#allocation3] sm:$0xf] %vm1398, %v1387
        %1400 = vst.msk [vmem:[#allocation3 + $0x4] sm:$0xf] %vm1398, %v1389
        %1401 = vst.msk [vmem:[#allocation3 + $0x8] sm:$0xf] %vm1398, %v1391
        %1402 = vst.msk [vmem:[#allocation3 + $0xc] sm:$0xf] %vm1398, %v1393
        %v1403 = vld [vmem:[#allocation2] sm:$0xf]
        %v1404 = vld [vmem:[#allocation2 + $0xc] sm:$0xf]
        %v1405 = vld [vmem:[#allocation2 + $0x18] sm:$0xf]
        %v1406 = vld [vmem:[#allocation2 + $0x24] sm:$0xf]
        %v1407 = vld [vmem:[#allocation2 + $0x4] sm:$0xf]
        %v1408 = vld [vmem:[#allocation2 + $0x10] sm:$0xf]
        %v1409 = vld [vmem:[#allocation2 + $0x1c] sm:$0xf]
        %v1410 = vld [vmem:[#allocation2 + $0x28] sm:$0xf]
        %v1411 = vld [vmem:[#allocation2 + $0x8] sm:$0xf]
        %v1412 = vld [vmem:[#allocation2 + $0x14] sm:$0xf]
        %v1413 = vld [vmem:[#allocation2 + $0x20] sm:$0xf]
        %v1414 = vld [vmem:[#allocation2 + $0x2c] sm:$0xf]
        %s1415 = scalar_lea.vmem [#allocation9], 32
        %v1416 = vld [vmem:[%s1415] sm:$0xff]
        %v1417 = vld [vmem:[%s1415 + $0x8] sm:$0xff]
        %v1420 = vunpack.c.l.b16 %v1403
        %v1421 = vunpack.c.l.b16 %v1404
        %v1422 = vpack.c.b16 %v1421, %v1420
        %1423 = vrot.lane.b32.xlu0 %v1422, 112
        %v1424 = vpop.permute.xlu0 %1423
        %v1427 = vunpack.c.l.b16 %v1407
        %v1428 = vunpack.c.l.b16 %v1408
        %v1429 = vpack.c.b16 %v1428, %v1427
        %1430 = vrot.lane.b32.xlu0 %v1429, 112
        %v1431 = vpop.permute.xlu0 %1430
        %v1433 = vsel %vm798, %v1424, 0
        %v1436 = vsel %vm798, %v1431, 0
        %1438 = vmatprep.subr.bf16.mxu0 0
        %1439 = vmatpush1.bf16.xpose.msra.mxu0 0
        %1440 = vmatprep.subr.bf16.mxu0 0
        %1441 = vmatpush1.bf16.xpose.msra.mxu0 0
        %1442 = vmatprep.subr.bf16.mxu0 0
        %1443 = vmatpush1.bf16.xpose.msra.mxu0 0
        %1444 = vmatprep.subr.bf16.mxu0 0
        %1445 = vmatpush1.bf16.xpose.msra.mxu0 0
        %1446 = vmatprep.subr.bf16.mxu0 0
        %1447 = vmatpush1.bf16.xpose.msra.mxu0 0
        %1448 = vmatprep.subr.bf16.mxu0 0
        %1449 = vmatpush1.bf16.xpose.msra.mxu0 0
        %1450 = vmatprep.subr.bf16.mxu0 0
        %1451 = vmatpush1.bf16.xpose.msra.mxu0 0
        %1452 = vmatprep.subr.bf16.mxu0 0
        %1453 = vmatpush1.bf16.xpose.msra.mxu0 %v1436
        %1454 = vmatprep.subr.bf16.mxu0 0
        %1455 = vmatpush2.bf16.xpose.msra.mxu0 0
        %1456 = vmatprep.subr.bf16.mxu0 0
        %1457 = vmatpush2.bf16.xpose.msra.mxu0 0
        %1458 = vmatprep.subr.bf16.mxu0 0
        %1459 = vmatpush2.bf16.xpose.msra.mxu0 0
        %1460 = vmatprep.subr.bf16.mxu0 0
        %1461 = vmatpush2.bf16.xpose.msra.mxu0 0
        %1462 = vmatprep.subr.bf16.mxu0 0
        %1463 = vmatpush2.bf16.xpose.msra.mxu0 0
        %1464 = vmatprep.subr.bf16.mxu0 0
        %1465 = vmatpush2.bf16.xpose.msra.mxu0 0
        %1466 = vmatprep.subr.bf16.mxu0 0
        %1467 = vmatpush2.bf16.xpose.msra.mxu0 0
        %1468 = vmatprep.subr.bf16.mxu0 0
        %1469 = vmatpush2.bf16.xpose.msra.mxu0 0
        %1470 = vmatprep.mubr.bf16.mxu0 0
        %1471 = vmatmul.mubr.bf16.gmra.mxu0 %v1433
        %v1472 = vpop.f32.mrf.mxu0
        %v1473 = vadd.f32 %v1416, %v1472
        %v1474 = vpop.f32.mrf.mxu0
        %v1475 = vpop.f32.mrf.mxu0
        %v1476 = vadd.f32 %v1417, %v1475
        %v1477 = vpop.f32.mrf.mxu0
        %1478 = vdwg.mxu0
        %v1481 = vunpack.c.l.b16 %v1405
        %v1482 = vunpack.c.l.b16 %v1406
        %v1483 = vpack.c.b16 %v1482, %v1481
        %1484 = vrot.lane.b32.xlu0 %v1483, 112
        %v1485 = vpop.permute.xlu0 %1484
        %v1488 = vunpack.c.l.b16 %v1409
        %v1489 = vunpack.c.l.b16 %v1410
        %v1490 = vpack.c.b16 %v1489, %v1488
        %1491 = vrot.lane.b32.xlu0 %v1490, 112
        %v1492 = vpop.permute.xlu0 %1491
        %v1494 = vsel %vm798, %v1485, 0
        %v1497 = vsel %vm798, %v1492, 0
        %1499 = vmatprep.subr.bf16.mxu0 0
        %1500 = vmatpush1.bf16.xpose.msra.mxu0 0
        %1501 = vmatprep.subr.bf16.mxu0 0
        %1502 = vmatpush1.bf16.xpose.msra.mxu0 0
        %1503 = vmatprep.subr.bf16.mxu0 0
        %1504 = vmatpush1.bf16.xpose.msra.mxu0 0
        %1505 = vmatprep.subr.bf16.mxu0 0
        %1506 = vmatpush1.bf16.xpose.msra.mxu0 0
        %1507 = vmatprep.subr.bf16.mxu0 0
        %1508 = vmatpush1.bf16.xpose.msra.mxu0 0
        %1509 = vmatprep.subr.bf16.mxu0 0
        %1510 = vmatpush1.bf16.xpose.msra.mxu0 0
        %1511 = vmatprep.subr.bf16.mxu0 0
        %1512 = vmatpush1.bf16.xpose.msra.mxu0 0
        %1513 = vmatprep.subr.bf16.mxu0 0
        %1514 = vmatpush1.bf16.xpose.msra.mxu0 %v1497
        %1515 = vmatprep.subr.bf16.mxu0 0
        %1516 = vmatpush2.bf16.xpose.msra.mxu0 0
        %1517 = vmatprep.subr.bf16.mxu0 0
        %1518 = vmatpush2.bf16.xpose.msra.mxu0 0
        %1519 = vmatprep.subr.bf16.mxu0 0
        %1520 = vmatpush2.bf16.xpose.msra.mxu0 0
        %1521 = vmatprep.subr.bf16.mxu0 0
        %1522 = vmatpush2.bf16.xpose.msra.mxu0 0
        %1523 = vmatprep.subr.bf16.mxu0 0
        %1524 = vmatpush2.bf16.xpose.msra.mxu0 0
        %1525 = vmatprep.subr.bf16.mxu0 0
        %1526 = vmatpush2.bf16.xpose.msra.mxu0 0
        %1527 = vmatprep.subr.bf16.mxu0 0
        %1528 = vmatpush2.bf16.xpose.msra.mxu0 0
        %1529 = vmatprep.subr.bf16.mxu0 0
        %1530 = vmatpush2.bf16.xpose.msra.mxu0 0
        %1531 = vmatprep.mubr.bf16.mxu0 0
        %1532 = vmatmul.mubr.bf16.gmra.mxu0 %v1494
        %v1533 = vpop.f32.mrf.mxu0
        %v1534 = vadd.f32 %v1416, %v1533
        %v1535 = vpop.f32.mrf.mxu0
        %v1536 = vpop.f32.mrf.mxu0
        %v1537 = vadd.f32 %v1417, %v1536
        %v1538 = vpop.f32.mrf.mxu0
        %1539 = vdwg.mxu0
        %v1540 = vld [vmem:[#allocation12] sm:$0xff]
        %v1541 = vld [vmem:[#allocation12 + $0x8] sm:$0xff]
        %v1542 = vld [vmem:[#allocation12 + $0x10] sm:$0xff]
        %v1543 = vld [vmem:[#allocation12 + $0x18] sm:$0xff]
        %v1544 = vadd.f32 %v1473, %v1540
        %v1545 = vadd.f32 %v1476, %v1541
        %v1546 = vadd.f32 %v1534, %v1542
        %v1547 = vadd.f32 %v1537, %v1543
        %v1548 = vsel %vm911, %v1544, -inf
        %1549 = vmax.xlane.f32.xlu0 %v1548
        %v1550 = vpop.xlane.xlu0 %1549
        %v1551 = vsel %vm911, %v1545, -inf
        %1552 = vmax.xlane.f32.xlu0 %v1551
        %v1553 = vpop.xlane.xlu0 %1552
        %v1554 = vsel %vm911, %v1546, -inf
        %1555 = vmax.xlane.f32.xlu0 %v1554
        %v1556 = vpop.xlane.xlu0 %1555
        %v1557 = vsel %vm911, %v1547, -inf
        %1558 = vmax.xlane.f32.xlu0 %v1557
        %v1559 = vpop.xlane.xlu0 %1558
        %v1560 = vsub.f32 %v1544, %v1550
        %v1561 = vsub.f32 %v1545, %v1553
        %v1562 = vsub.f32 %v1546, %v1556
        %v1563 = vsub.f32 %v1547, %v1559
        %v1564 = vmul.f32 %v1560, 1.442695
        %v1565 = vpow.pop %v1564
        %v1566 = vmul.f32 %v1561, 1.442695
        %v1567 = vpow.pop %v1566
        %v1568 = vmul.f32 %v1562, 1.442695
        %v1569 = vpow.pop %v1568
        %v1570 = vmul.f32 %v1563, 1.442695
        %v1571 = vpow.pop %v1570
        %v1572 = vsel %vm911, %v1565, 0.0
        %1573 = vadd.xlane.f32.xlu0 %v1572
        %v1574 = vpop.xlane.xlu0 %1573
        %v1575 = vsel %vm911, %v1567, 0.0
        %1576 = vadd.xlane.f32.xlu0 %v1575
        %v1577 = vpop.xlane.xlu0 %1576
        %v1578 = vsel %vm911, %v1569, 0.0
        %1579 = vadd.xlane.f32.xlu0 %v1578
        %v1580 = vpop.xlane.xlu0 %1579
        %v1581 = vsel %vm911, %v1571, 0.0
        %1582 = vadd.xlane.f32.xlu0 %v1581
        %v1583 = vpop.xlane.xlu0 %1582
        %v1584 = vrcp.pop %v1574
        %v1585 = vrcp.pop %v1577
        %v1586 = vrcp.pop %v1580
        %v1587 = vrcp.pop %v1583
        %v1588 = vmul.f32 %v1565, %v1584
        %v1589 = vmul.f32 %v1567, %v1585
        %v1590 = vmul.f32 %v1569, %v1586
        %v1591 = vmul.f32 %v1571, %v1587
        %v1592 = vpack.c.bf16 %v1589, %v1588
        %v1593 = vpack.c.bf16 %v1591, %v1590
        %v1596 = vunpack.c.l.b16 %v1411
        %v1597 = vunpack.c.l.b16 %v1412
        %v1598 = vpack.c.b16 %v1597, %v1596
        %1599 = vrot.lane.b32.xlu0 %v1598, 112
        %v1600 = vpop.permute.xlu0 %1599
        %v1603 = vsel %vm911, %v1592, 0
        %1605 = vmatprep.subr.bf16.mxu0 0
        %1606 = vmatpush1.bf16.msra.mxu0 0
        %1607 = vmatprep.subr.bf16.mxu0 0
        %1608 = vmatpush1.bf16.msra.mxu0 0
        %1609 = vmatprep.subr.bf16.mxu0 0
        %1610 = vmatpush1.bf16.msra.mxu0 0
        %1611 = vmatprep.subr.bf16.mxu0 0
        %1612 = vmatpush1.bf16.msra.mxu0 0
        %1613 = vmatprep.subr.bf16.mxu0 0
        %1614 = vmatpush1.bf16.msra.mxu0 0
        %1615 = vmatprep.subr.bf16.mxu0 0
        %1616 = vmatpush1.bf16.msra.mxu0 0
        %1617 = vmatprep.subr.bf16.mxu0 0
        %1618 = vmatpush1.bf16.msra.mxu0 0
        %1619 = vmatprep.subr.bf16.mxu0 0
        %1620 = vmatpush1.bf16.msra.mxu0 %v1600
        %1621 = vmatprep.subr.bf16.mxu0 0
        %1622 = vmatpush2.bf16.msra.mxu0 0
        %1623 = vmatprep.subr.bf16.mxu0 0
        %1624 = vmatpush2.bf16.msra.mxu0 0
        %1625 = vmatprep.subr.bf16.mxu0 0
        %1626 = vmatpush2.bf16.msra.mxu0 0
        %1627 = vmatprep.subr.bf16.mxu0 0
        %1628 = vmatpush2.bf16.msra.mxu0 0
        %1629 = vmatprep.subr.bf16.mxu0 0
        %1630 = vmatpush2.bf16.msra.mxu0 0
        %1631 = vmatprep.subr.bf16.mxu0 0
        %1632 = vmatpush2.bf16.msra.mxu0 0
        %1633 = vmatprep.subr.bf16.mxu0 0
        %1634 = vmatpush2.bf16.msra.mxu0 0
        %1635 = vmatprep.subr.bf16.mxu0 0
        %1636 = vmatpush2.bf16.msra.mxu0 0
        %1637 = vmatprep.mubr.bf16.mxu0 0
        %1638 = vmatmul.mubr.bf16.gmra.mxu0 %v1603
        %v1639 = vpop.f32.mrf.mxu0
        %v1640 = vadd.f32 0.0, %v1639
        %v1641 = vpop.f32.mrf.mxu0
        %v1642 = vpop.f32.mrf.mxu0
        %v1643 = vadd.f32 0.0, %v1642
        %v1644 = vpop.f32.mrf.mxu0
        %1645 = vdwg.mxu0
        %v1648 = vunpack.c.l.b16 %v1413
        %v1649 = vunpack.c.l.b16 %v1414
        %v1650 = vpack.c.b16 %v1649, %v1648
        %1651 = vrot.lane.b32.xlu0 %v1650, 112
        %v1652 = vpop.permute.xlu0 %1651
        %v1655 = vsel %vm911, %v1593, 0
        %1657 = vmatprep.subr.bf16.mxu0 0
        %1658 = vmatpush1.bf16.msra.mxu0 0
        %1659 = vmatprep.subr.bf16.mxu0 0
        %1660 = vmatpush1.bf16.msra.mxu0 0
        %1661 = vmatprep.subr.bf16.mxu0 0
        %1662 = vmatpush1.bf16.msra.mxu0 0
        %1663 = vmatprep.subr.bf16.mxu0 0
        %1664 = vmatpush1.bf16.msra.mxu0 0
        %1665 = vmatprep.subr.bf16.mxu0 0
        %1666 = vmatpush1.bf16.msra.mxu0 0
        %1667 = vmatprep.subr.bf16.mxu0 0
        %1668 = vmatpush1.bf16.msra.mxu0 0
        %1669 = vmatprep.subr.bf16.mxu0 0
        %1670 = vmatpush1.bf16.msra.mxu0 0
        %1671 = vmatprep.subr.bf16.mxu0 0
        %1672 = vmatpush1.bf16.msra.mxu0 %v1652
        %1673 = vmatprep.subr.bf16.mxu0 0
        %1674 = vmatpush2.bf16.msra.mxu0 0
        %1675 = vmatprep.subr.bf16.mxu0 0
        %1676 = vmatpush2.bf16.msra.mxu0 0
        %1677 = vmatprep.subr.bf16.mxu0 0
        %1678 = vmatpush2.bf16.msra.mxu0 0
        %1679 = vmatprep.subr.bf16.mxu0 0
        %1680 = vmatpush2.bf16.msra.mxu0 0
        %1681 = vmatprep.subr.bf16.mxu0 0
        %1682 = vmatpush2.bf16.msra.mxu0 0
        %1683 = vmatprep.subr.bf16.mxu0 0
        %1684 = vmatpush2.bf16.msra.mxu0 0
        %1685 = vmatprep.subr.bf16.mxu0 0
        %1686 = vmatpush2.bf16.msra.mxu0 0
        %1687 = vmatprep.subr.bf16.mxu0 0
        %1688 = vmatpush2.bf16.msra.mxu0 0
        %1689 = vmatprep.mubr.bf16.mxu0 0
        %1690 = vmatmul.mubr.bf16.gmra.mxu0 %v1655
        %v1691 = vpop.f32.mrf.mxu0
        %v1692 = vadd.f32 0.0, %v1691
        %v1693 = vpop.f32.mrf.mxu0
        %v1694 = vpop.f32.mrf.mxu0
        %v1695 = vadd.f32 0.0, %v1694
        %v1696 = vpop.f32.mrf.mxu0
        %1697 = vdwg.mxu0
        %v1698 = vpack.c.bf16 %v1643, %v1640
        %v1699 = vpack.c.bf16 %v1695, %v1692
        %v1702 = vunpack.c.l.b16 %v1698
        %v1703 = vunpack.c.h.b16 %v1698
        %v1704 = vunpack.c.l.b16 %v1699
        %v1705 = vunpack.c.h.b16 %v1699
        %v1706 = vpack.c.b16 %v1702, %v1702
        %v1707 = vpack.c.b16 %v1703, %v1703
        %v1708 = vpack.c.b16 %v1704, %v1704
        %v1709 = vpack.c.b16 %v1705, %v1705
        %1710 = vrot.lane.b32.xlu0 %v1706, 16
        %v1711 = vpop.permute.xlu0 %1710
        %1712 = vrot.lane.b32.xlu0 %v1707, 16
        %v1713 = vpop.permute.xlu0 %1712
        %1714 = vrot.lane.b32.xlu0 %v1708, 16
        %v1715 = vpop.permute.xlu0 %1714
        %1716 = vrot.lane.b32.xlu0 %v1709, 16
        %v1717 = vpop.permute.xlu0 %1716
        %vm1722 = vcmask 191616
        %1723 = vst.msk [vmem:[#allocation3] sm:$0xf] %vm1722, %v1711
        %1724 = vst.msk [vmem:[#allocation3 + $0x4] sm:$0xf] %vm1722, %v1713
        %1725 = vst.msk [vmem:[#allocation3 + $0x8] sm:$0xf] %vm1722, %v1715
        %1726 = vst.msk [vmem:[#allocation3 + $0xc] sm:$0xf] %vm1722, %v1717
        %v1727 = vld [vmem:[#allocation2] sm:$0xf]
        %v1728 = vld [vmem:[#allocation2 + $0xc] sm:$0xf]
        %v1729 = vld [vmem:[#allocation2 + $0x18] sm:$0xf]
        %v1730 = vld [vmem:[#allocation2 + $0x24] sm:$0xf]
        %v1731 = vld [vmem:[#allocation2 + $0x4] sm:$0xf]
        %v1732 = vld [vmem:[#allocation2 + $0x10] sm:$0xf]
        %v1733 = vld [vmem:[#allocation2 + $0x1c] sm:$0xf]
        %v1734 = vld [vmem:[#allocation2 + $0x28] sm:$0xf]
        %v1735 = vld [vmem:[#allocation2 + $0x8] sm:$0xf]
        %v1736 = vld [vmem:[#allocation2 + $0x14] sm:$0xf]
        %v1737 = vld [vmem:[#allocation2 + $0x20] sm:$0xf]
        %v1738 = vld [vmem:[#allocation2 + $0x2c] sm:$0xf]
        %s1739 = scalar_lea.vmem [#allocation9], 48
        %v1740 = vld [vmem:[%s1739] sm:$0xff]
        %v1741 = vld [vmem:[%s1739 + $0x8] sm:$0xff]
        %v1744 = vunpack.c.l.b16 %v1727
        %v1745 = vunpack.c.l.b16 %v1728
        %v1746 = vpack.c.b16 %v1745, %v1744
        %1747 = vrot.lane.b32.xlu0 %v1746, 104
        %v1748 = vpop.permute.xlu0 %1747
        %v1751 = vunpack.c.l.b16 %v1731
        %v1752 = vunpack.c.l.b16 %v1732
        %v1753 = vpack.c.b16 %v1752, %v1751
        %1754 = vrot.lane.b32.xlu0 %v1753, 104
        %v1755 = vpop.permute.xlu0 %1754
        %v1757 = vsel %vm798, %v1748, 0
        %v1760 = vsel %vm798, %v1755, 0
        %1762 = vmatprep.subr.bf16.mxu0 0
        %1763 = vmatpush1.bf16.xpose.msra.mxu0 0
        %1764 = vmatprep.subr.bf16.mxu0 0
        %1765 = vmatpush1.bf16.xpose.msra.mxu0 0
        %1766 = vmatprep.subr.bf16.mxu0 0
        %1767 = vmatpush1.bf16.xpose.msra.mxu0 0
        %1768 = vmatprep.subr.bf16.mxu0 0
        %1769 = vmatpush1.bf16.xpose.msra.mxu0 0
        %1770 = vmatprep.subr.bf16.mxu0 0
        %1771 = vmatpush1.bf16.xpose.msra.mxu0 0
        %1772 = vmatprep.subr.bf16.mxu0 0
        %1773 = vmatpush1.bf16.xpose.msra.mxu0 0
        %1774 = vmatprep.subr.bf16.mxu0 0
        %1775 = vmatpush1.bf16.xpose.msra.mxu0 0
        %1776 = vmatprep.subr.bf16.mxu0 0
        %1777 = vmatpush1.bf16.xpose.msra.mxu0 %v1760
        %1778 = vmatprep.subr.bf16.mxu0 0
        %1779 = vmatpush2.bf16.xpose.msra.mxu0 0
        %1780 = vmatprep.subr.bf16.mxu0 0
        %1781 = vmatpush2.bf16.xpose.msra.mxu0 0
        %1782 = vmatprep.subr.bf16.mxu0 0
        %1783 = vmatpush2.bf16.xpose.msra.mxu0 0
        %1784 = vmatprep.subr.bf16.mxu0 0
        %1785 = vmatpush2.bf16.xpose.msra.mxu0 0
        %1786 = vmatprep.subr.bf16.mxu0 0
        %1787 = vmatpush2.bf16.xpose.msra.mxu0 0
        %1788 = vmatprep.subr.bf16.mxu0 0
        %1789 = vmatpush2.bf16.xpose.msra.mxu0 0
        %1790 = vmatprep.subr.bf16.mxu0 0
        %1791 = vmatpush2.bf16.xpose.msra.mxu0 0
        %1792 = vmatprep.subr.bf16.mxu0 0
        %1793 = vmatpush2.bf16.xpose.msra.mxu0 0
        %1794 = vmatprep.mubr.bf16.mxu0 0
        %1795 = vmatmul.mubr.bf16.gmra.mxu0 %v1757
        %v1796 = vpop.f32.mrf.mxu0
        %v1797 = vadd.f32 %v1740, %v1796
        %v1798 = vpop.f32.mrf.mxu0
        %v1799 = vpop.f32.mrf.mxu0
        %v1800 = vadd.f32 %v1741, %v1799
        %v1801 = vpop.f32.mrf.mxu0
        %1802 = vdwg.mxu0
        %v1805 = vunpack.c.l.b16 %v1729
        %v1806 = vunpack.c.l.b16 %v1730
        %v1807 = vpack.c.b16 %v1806, %v1805
        %1808 = vrot.lane.b32.xlu0 %v1807, 104
        %v1809 = vpop.permute.xlu0 %1808
        %v1812 = vunpack.c.l.b16 %v1733
        %v1813 = vunpack.c.l.b16 %v1734
        %v1814 = vpack.c.b16 %v1813, %v1812
        %1815 = vrot.lane.b32.xlu0 %v1814, 104
        %v1816 = vpop.permute.xlu0 %1815
        %v1818 = vsel %vm798, %v1809, 0
        %v1821 = vsel %vm798, %v1816, 0
        %1823 = vmatprep.subr.bf16.mxu0 0
        %1824 = vmatpush1.bf16.xpose.msra.mxu0 0
        %1825 = vmatprep.subr.bf16.mxu0 0
        %1826 = vmatpush1.bf16.xpose.msra.mxu0 0
        %1827 = vmatprep.subr.bf16.mxu0 0
        %1828 = vmatpush1.bf16.xpose.msra.mxu0 0
        %1829 = vmatprep.subr.bf16.mxu0 0
        %1830 = vmatpush1.bf16.xpose.msra.mxu0 0
        %1831 = vmatprep.subr.bf16.mxu0 0
        %1832 = vmatpush1.bf16.xpose.msra.mxu0 0
        %1833 = vmatprep.subr.bf16.mxu0 0
        %1834 = vmatpush1.bf16.xpose.msra.mxu0 0
        %1835 = vmatprep.subr.bf16.mxu0 0
        %1836 = vmatpush1.bf16.xpose.msra.mxu0 0
        %1837 = vmatprep.subr.bf16.mxu0 0
        %1838 = vmatpush1.bf16.xpose.msra.mxu0 %v1821
        %1839 = vmatprep.subr.bf16.mxu0 0
        %1840 = vmatpush2.bf16.xpose.msra.mxu0 0
        %1841 = vmatprep.subr.bf16.mxu0 0
        %1842 = vmatpush2.bf16.xpose.msra.mxu0 0
        %1843 = vmatprep.subr.bf16.mxu0 0
        %1844 = vmatpush2.bf16.xpose.msra.mxu0 0
        %1845 = vmatprep.subr.bf16.mxu0 0
        %1846 = vmatpush2.bf16.xpose.msra.mxu0 0
        %1847 = vmatprep.subr.bf16.mxu0 0
        %1848 = vmatpush2.bf16.xpose.msra.mxu0 0
        %1849 = vmatprep.subr.bf16.mxu0 0
        %1850 = vmatpush2.bf16.xpose.msra.mxu0 0
        %1851 = vmatprep.subr.bf16.mxu0 0
        %1852 = vmatpush2.bf16.xpose.msra.mxu0 0
        %1853 = vmatprep.subr.bf16.mxu0 0
        %1854 = vmatpush2.bf16.xpose.msra.mxu0 0
        %1855 = vmatprep.mubr.bf16.mxu0 0
        %1856 = vmatmul.mubr.bf16.gmra.mxu0 %v1818
        %v1857 = vpop.f32.mrf.mxu0
        %v1858 = vadd.f32 %v1740, %v1857
        %v1859 = vpop.f32.mrf.mxu0
        %v1860 = vpop.f32.mrf.mxu0
        %v1861 = vadd.f32 %v1741, %v1860
        %v1862 = vpop.f32.mrf.mxu0
        %1863 = vdwg.mxu0
        %v1864 = vld [vmem:[#allocation12] sm:$0xff]
        %v1865 = vld [vmem:[#allocation12 + $0x8] sm:$0xff]
        %v1866 = vld [vmem:[#allocation12 + $0x10] sm:$0xff]
        %v1867 = vld [vmem:[#allocation12 + $0x18] sm:$0xff]
        %v1868 = vadd.f32 %v1797, %v1864
        %v1869 = vadd.f32 %v1800, %v1865
        %v1870 = vadd.f32 %v1858, %v1866
        %v1871 = vadd.f32 %v1861, %v1867
        %v1872 = vsel %vm911, %v1868, -inf
        %1873 = vmax.xlane.f32.xlu0 %v1872
        %v1874 = vpop.xlane.xlu0 %1873
        %v1875 = vsel %vm911, %v1869, -inf
        %1876 = vmax.xlane.f32.xlu0 %v1875
        %v1877 = vpop.xlane.xlu0 %1876
        %v1878 = vsel %vm911, %v1870, -inf
        %1879 = vmax.xlane.f32.xlu0 %v1878
        %v1880 = vpop.xlane.xlu0 %1879
        %v1881 = vsel %vm911, %v1871, -inf
        %1882 = vmax.xlane.f32.xlu0 %v1881
        %v1883 = vpop.xlane.xlu0 %1882
        %v1884 = vsub.f32 %v1868, %v1874
        %v1885 = vsub.f32 %v1869, %v1877
        %v1886 = vsub.f32 %v1870, %v1880
        %v1887 = vsub.f32 %v1871, %v1883
        %v1888 = vmul.f32 %v1884, 1.442695
        %v1889 = vpow.pop %v1888
        %v1890 = vmul.f32 %v1885, 1.442695
        %v1891 = vpow.pop %v1890
        %v1892 = vmul.f32 %v1886, 1.442695
        %v1893 = vpow.pop %v1892
        %v1894 = vmul.f32 %v1887, 1.442695
        %v1895 = vpow.pop %v1894
        %v1896 = vsel %vm911, %v1889, 0.0
        %1897 = vadd.xlane.f32.xlu0 %v1896
        %v1898 = vpop.xlane.xlu0 %1897
        %v1899 = vsel %vm911, %v1891, 0.0
        %1900 = vadd.xlane.f32.xlu0 %v1899
        %v1901 = vpop.xlane.xlu0 %1900
        %v1902 = vsel %vm911, %v1893, 0.0
        %1903 = vadd.xlane.f32.xlu0 %v1902
        %v1904 = vpop.xlane.xlu0 %1903
        %v1905 = vsel %vm911, %v1895, 0.0
        %1906 = vadd.xlane.f32.xlu0 %v1905
        %v1907 = vpop.xlane.xlu0 %1906
        %v1908 = vrcp.pop %v1898
        %v1909 = vrcp.pop %v1901
        %v1910 = vrcp.pop %v1904
        %v1911 = vrcp.pop %v1907
        %v1912 = vmul.f32 %v1889, %v1908
        %v1913 = vmul.f32 %v1891, %v1909
        %v1914 = vmul.f32 %v1893, %v1910
        %v1915 = vmul.f32 %v1895, %v1911
        %v1916 = vpack.c.bf16 %v1913, %v1912
        %v1917 = vpack.c.bf16 %v1915, %v1914
        %v1920 = vunpack.c.l.b16 %v1735
        %v1921 = vunpack.c.l.b16 %v1736
        %v1922 = vpack.c.b16 %v1921, %v1920
        %1923 = vrot.lane.b32.xlu0 %v1922, 104
        %v1924 = vpop.permute.xlu0 %1923
        %v1927 = vsel %vm911, %v1916, 0
        %1929 = vmatprep.subr.bf16.mxu0 0
        %1930 = vmatpush1.bf16.msra.mxu0 0
        %1931 = vmatprep.subr.bf16.mxu0 0
        %1932 = vmatpush1.bf16.msra.mxu0 0
        %1933 = vmatprep.subr.bf16.mxu0 0
        %1934 = vmatpush1.bf16.msra.mxu0 0
        %1935 = vmatprep.subr.bf16.mxu0 0
        %1936 = vmatpush1.bf16.msra.mxu0 0
        %1937 = vmatprep.subr.bf16.mxu0 0
        %1938 = vmatpush1.bf16.msra.mxu0 0
        %1939 = vmatprep.subr.bf16.mxu0 0
        %1940 = vmatpush1.bf16.msra.mxu0 0
        %1941 = vmatprep.subr.bf16.mxu0 0
        %1942 = vmatpush1.bf16.msra.mxu0 0
        %1943 = vmatprep.subr.bf16.mxu0 0
        %1944 = vmatpush1.bf16.msra.mxu0 %v1924
        %1945 = vmatprep.subr.bf16.mxu0 0
        %1946 = vmatpush2.bf16.msra.mxu0 0
        %1947 = vmatprep.subr.bf16.mxu0 0
        %1948 = vmatpush2.bf16.msra.mxu0 0
        %1949 = vmatprep.subr.bf16.mxu0 0
        %1950 = vmatpush2.bf16.msra.mxu0 0
        %1951 = vmatprep.subr.bf16.mxu0 0
        %1952 = vmatpush2.bf16.msra.mxu0 0
        %1953 = vmatprep.subr.bf16.mxu0 0
        %1954 = vmatpush2.bf16.msra.mxu0 0
        %1955 = vmatprep.subr.bf16.mxu0 0
        %1956 = vmatpush2.bf16.msra.mxu0 0
        %1957 = vmatprep.subr.bf16.mxu0 0
        %1958 = vmatpush2.bf16.msra.mxu0 0
        %1959 = vmatprep.subr.bf16.mxu0 0
        %1960 = vmatpush2.bf16.msra.mxu0 0
        %1961 = vmatprep.mubr.bf16.mxu0 0
        %1962 = vmatmul.mubr.bf16.gmra.mxu0 %v1927
        %v1963 = vpop.f32.mrf.mxu0
        %v1964 = vadd.f32 0.0, %v1963
        %v1965 = vpop.f32.mrf.mxu0
        %v1966 = vpop.f32.mrf.mxu0
        %v1967 = vadd.f32 0.0, %v1966
        %v1968 = vpop.f32.mrf.mxu0
        %1969 = vdwg.mxu0
        %v1972 = vunpack.c.l.b16 %v1737
        %v1973 = vunpack.c.l.b16 %v1738
        %v1974 = vpack.c.b16 %v1973, %v1972
        %1975 = vrot.lane.b32.xlu0 %v1974, 104
        %v1976 = vpop.permute.xlu0 %1975
        %v1979 = vsel %vm911, %v1917, 0
        %1981 = vmatprep.subr.bf16.mxu0 0
        %1982 = vmatpush1.bf16.msra.mxu0 0
        %1983 = vmatprep.subr.bf16.mxu0 0
        %1984 = vmatpush1.bf16.msra.mxu0 0
        %1985 = vmatprep.subr.bf16.mxu0 0
        %1986 = vmatpush1.bf16.msra.mxu0 0
        %1987 = vmatprep.subr.bf16.mxu0 0
        %1988 = vmatpush1.bf16.msra.mxu0 0
        %1989 = vmatprep.subr.bf16.mxu0 0
        %1990 = vmatpush1.bf16.msra.mxu0 0
        %1991 = vmatprep.subr.bf16.mxu0 0
        %1992 = vmatpush1.bf16.msra.mxu0 0
        %1993 = vmatprep.subr.bf16.mxu0 0
        %1994 = vmatpush1.bf16.msra.mxu0 0
        %1995 = vmatprep.subr.bf16.mxu0 0
        %1996 = vmatpush1.bf16.msra.mxu0 %v1976
        %1997 = vmatprep.subr.bf16.mxu0 0
        %1998 = vmatpush2.bf16.msra.mxu0 0
        %1999 = vmatprep.subr.bf16.mxu0 0
        %2000 = vmatpush2.bf16.msra.mxu0 0
        %2001 = vmatprep.subr.bf16.mxu0 0
        %2002 = vmatpush2.bf16.msra.mxu0 0
        %2003 = vmatprep.subr.bf16.mxu0 0
        %2004 = vmatpush2.bf16.msra.mxu0 0
        %2005 = vmatprep.subr.bf16.mxu0 0
        %2006 = vmatpush2.bf16.msra.mxu0 0
        %2007 = vmatprep.subr.bf16.mxu0 0
        %2008 = vmatpush2.bf16.msra.mxu0 0
        %2009 = vmatprep.subr.bf16.mxu0 0
        %2010 = vmatpush2.bf16.msra.mxu0 0
        %2011 = vmatprep.subr.bf16.mxu0 0
        %2012 = vmatpush2.bf16.msra.mxu0 0
        %2013 = vmatprep.mubr.bf16.mxu0 0
        %2014 = vmatmul.mubr.bf16.gmra.mxu0 %v1979
        %v2015 = vpop.f32.mrf.mxu0
        %v2016 = vadd.f32 0.0, %v2015
        %v2017 = vpop.f32.mrf.mxu0
        %v2018 = vpop.f32.mrf.mxu0
        %v2019 = vadd.f32 0.0, %v2018
        %v2020 = vpop.f32.mrf.mxu0
        %2021 = vdwg.mxu0
        %v2022 = vpack.c.bf16 %v1967, %v1964
        %v2023 = vpack.c.bf16 %v2019, %v2016
        %v2026 = vunpack.c.l.b16 %v2022
        %v2027 = vunpack.c.h.b16 %v2022
        %v2028 = vunpack.c.l.b16 %v2023
        %v2029 = vunpack.c.h.b16 %v2023
        %v2030 = vpack.c.b16 %v2026, %v2026
        %v2031 = vpack.c.b16 %v2027, %v2027
        %v2032 = vpack.c.b16 %v2028, %v2028
        %v2033 = vpack.c.b16 %v2029, %v2029
        %2034 = vrot.lane.b32.xlu0 %v2030, 24
        %v2035 = vpop.permute.xlu0 %2034
        %2036 = vrot.lane.b32.xlu0 %v2031, 24
        %v2037 = vpop.permute.xlu0 %2036
        %2038 = vrot.lane.b32.xlu0 %v2032, 24
        %v2039 = vpop.permute.xlu0 %2038
        %2040 = vrot.lane.b32.xlu0 %v2033, 24
        %v2041 = vpop.permute.xlu0 %2040
        %vm2046 = vcmask 257216
        %2047 = vst.msk [vmem:[#allocation3] sm:$0xf] %vm2046, %v2035
        %2048 = vst.msk [vmem:[#allocation3 + $0x4] sm:$0xf] %vm2046, %v2037
        %2049 = vst.msk [vmem:[#allocation3 + $0x8] sm:$0xf] %vm2046, %v2039
        %2050 = vst.msk [vmem:[#allocation3 + $0xc] sm:$0xf] %vm2046, %v2041
        %v2051 = vld [vmem:[#allocation3] sm:$0xf]
        %v2052 = vld [vmem:[#allocation3 + $0x4] sm:$0xf]
        %v2053 = vld [vmem:[#allocation3 + $0x8] sm:$0xf]
        %v2054 = vld [vmem:[#allocation3 + $0xc] sm:$0xf]
        %v2055 = vld [vmem:[%s384] sm:$0xf]
        %v2056 = vld [vmem:[%s384 + $0x4] sm:$0xf]
        %v2057 = vld [vmem:[%s384 + $0x8] sm:$0xf]
        %v2058 = vld [vmem:[%s384 + $0xc] sm:$0xf]
        %v2059 = vadd.bf16 %v2051, %v2055
        %v2060 = vadd.bf16 %v2052, %v2056
        %v2061 = vadd.bf16 %v2053, %v2057
        %v2062 = vadd.bf16 %v2054, %v2058
        %v2063 = vld [vmem:[#allocation10] sm:$0xf]
        %v2064 = vld [vmem:[#allocation10 + $0x4] sm:$0xf]
        %v2065 = vld [vmem:[#allocation10 + $0x8] sm:$0xf]
        %v2066 = vld [vmem:[#allocation10 + $0xc] sm:$0xf]
        %v2067 = vld [vmem:[#allocation10 + $0x10] sm:$0xf]
        %v2068 = vld [vmem:[#allocation10 + $0x14] sm:$0xf]
        %v2069 = vld [vmem:[#allocation10 + $0x18] sm:$0xf]
        %v2070 = vld [vmem:[#allocation10 + $0x1c] sm:$0xf]
        %v2071 = vld [vmem:[#allocation10 + $0x20] sm:$0xf]
        %v2072 = vld [vmem:[#allocation10 + $0x24] sm:$0xf]
        %v2073 = vld [vmem:[#allocation10 + $0x28] sm:$0xf]
        %v2074 = vld [vmem:[#allocation10 + $0x2c] sm:$0xf]
        %v2075 = vld [vmem:[#allocation10 + $0x30] sm:$0xf]
        %v2076 = vld [vmem:[#allocation10 + $0x34] sm:$0xf]
        %v2077 = vld [vmem:[#allocation10 + $0x38] sm:$0xf]
        %v2078 = vld [vmem:[#allocation10 + $0x3c] sm:$0xf]
        %v2079 = vld [vmem:[%s5] sm:$0x1]
        %v2081 = vlaneseq
        %v2082 = vshrl.u32 %v2081, 7
        %v2083 = vsub.s32 0, %v2082
        %v2084 = vrot.slane %v2079, %v2083
        %v2090 = vunpack.c.l.b16 %v2059
        %v2091 = vunpack.c.l.b16 %v2060
        %v2092 = vunpack.c.l.b16 %v2061
        %v2093 = vunpack.c.l.b16 %v2062
        %v2094 = vpack.c.b16 %v2091, %v2090
        %v2095 = vpack.c.b16 %v2093, %v2092
        %v2114 = vunpack.c.l.b16 %v2063
        %v2115 = vunpack.c.l.b16 %v2064
        %v2116 = vunpack.c.l.b16 %v2065
        %v2117 = vunpack.c.l.b16 %v2066
        %v2118 = vunpack.c.l.b16 %v2067
        %v2119 = vunpack.c.l.b16 %v2068
        %v2120 = vunpack.c.l.b16 %v2069
        %v2121 = vunpack.c.l.b16 %v2070
        %v2122 = vunpack.c.l.b16 %v2071
        %v2123 = vunpack.c.l.b16 %v2072
        %v2124 = vunpack.c.l.b16 %v2073
        %v2125 = vunpack.c.l.b16 %v2074
        %v2126 = vunpack.c.l.b16 %v2075
        %v2127 = vunpack.c.l.b16 %v2076
        %v2128 = vunpack.c.l.b16 %v2077
        %v2129 = vunpack.c.l.b16 %v2078
        %v2130 = vpack.c.b16 %v2115, %v2114
        %v2131 = vpack.c.b16 %v2117, %v2116
        %v2132 = vpack.c.b16 %v2119, %v2118
        %v2133 = vpack.c.b16 %v2121, %v2120
        %v2134 = vpack.c.b16 %v2123, %v2122
        %v2135 = vpack.c.b16 %v2125, %v2124
        %v2136 = vpack.c.b16 %v2127, %v2126
        %v2137 = vpack.c.b16 %v2129, %v2128
        %2146 = vmatprep.subr.bf16.mxu0 0
        %2147 = vmatpush1.bf16.msra.mxu0 %v2137
        %2148 = vmatprep.subr.bf16.mxu0 0
        %2149 = vmatpush1.bf16.msra.mxu0 %v2136
        %2150 = vmatprep.subr.bf16.mxu0 0
        %2151 = vmatpush1.bf16.msra.mxu0 %v2135
        %2152 = vmatprep.subr.bf16.mxu0 0
        %2153 = vmatpush1.bf16.msra.mxu0 %v2134
        %2154 = vmatprep.subr.bf16.mxu0 0
        %2155 = vmatpush1.bf16.msra.mxu0 %v2133
        %2156 = vmatprep.subr.bf16.mxu0 0
        %2157 = vmatpush1.bf16.msra.mxu0 %v2132
        %2158 = vmatprep.subr.bf16.mxu0 0
        %2159 = vmatpush1.bf16.msra.mxu0 %v2131
        %2160 = vmatprep.subr.bf16.mxu0 0
        %2161 = vmatpush1.bf16.msra.mxu0 %v2130
        %2162 = vmatprep.subr.bf16.mxu0 0
        %2163 = vmatpush2.bf16.msra.mxu0 0
        %2164 = vmatprep.subr.bf16.mxu0 0
        %2165 = vmatpush2.bf16.msra.mxu0 0
        %2166 = vmatprep.subr.bf16.mxu0 0
        %2167 = vmatpush2.bf16.msra.mxu0 0
        %2168 = vmatprep.subr.bf16.mxu0 0
        %2169 = vmatpush2.bf16.msra.mxu0 0
        %2170 = vmatprep.subr.bf16.mxu0 0
        %2171 = vmatpush2.bf16.msra.mxu0 0
        %2172 = vmatprep.subr.bf16.mxu0 0
        %2173 = vmatpush2.bf16.msra.mxu0 0
        %2174 = vmatprep.subr.bf16.mxu0 0
        %2175 = vmatpush2.bf16.msra.mxu0 0
        %2176 = vmatprep.subr.bf16.mxu0 0
        %2177 = vmatpush2.bf16.msra.mxu0 0
        %2178 = vmatprep.mubr.bf16.mxu0 0
        %2179 = vmatmul.mubr.bf16.gmra.mxu0 %v2094
        %v2180 = vpop.f32.mrf.mxu0
        %v2181 = vadd.f32 %v2084, %v2180
        %v2182 = vpop.f32.mrf.mxu0
        %v2183 = vpop.f32.mrf.mxu0
        %v2184 = vadd.f32 %v2084, %v2183
        %v2185 = vpop.f32.mrf.mxu0
        %2186 = vmatprep.mubr.bf16.mxu0 0
        %2187 = vmatmul.mubr.bf16.gmra.mxu0 %v2095
        %v2188 = vpop.f32.mrf.mxu0
        %v2189 = vadd.f32 %v2084, %v2188
        %v2190 = vpop.f32.mrf.mxu0
        %v2191 = vpop.f32.mrf.mxu0
        %v2192 = vadd.f32 %v2084, %v2191
        %v2193 = vpop.f32.mrf.mxu0
        %2194 = vdwg.mxu0
        %2195 = vst [vmem:[%s421] sm:$0xff] %v2181
        %2196 = vst [vmem:[%s421 + $0x8] sm:$0xff] %v2184
        %2197 = vst [vmem:[%s421 + $0x10] sm:$0xff] %v2189
        %2198 = vst [vmem:[%s421 + $0x18] sm:$0xff] %v2192
        %s2199 = sand.u32 %s216, 1
        %s2200 = scalar_lea.sflag [#allocation6], %s2199
        %s2201 = sand.u32 %s216, 1
        %s2202 = smul.addr %s2201, 32
        %s2203 = scalar_lea.vmem [#allocation15], %s2202
        // Predicated region
        $region77: #{tpu_custom_call.1} parent=51 // pred_check
          %p2204 = pneg %p226
        $region78: #{tpu_custom_call.1} parent=51 // pred_check_branch
          %2206 = sbr.rel (%p2204) target = $region80
        $region79: #{tpu_custom_call.1} parent=51 // pred_region
          %s2207 = smul.u32 4, %s30
          %s2209 = ssub.s32 512, 512
          %2210 = vsyncadd %s2200, %s2209
          %s2211 = smul.addr %s2207, 128
          %s2212 = scalar_lea.hbm %s8, %s2211
          %s2213 = sshll.u32 %s2203, 4
          %s2214 = int_to_ptr.vmem [resolvable:$true] %s2213
          %2219 = dma.vmem_to_hbm [thread:$0]  %s2214, 512, %s2212, %s2200, 128, 128, 8
        $region80: #{tpu_custom_call.1} parent=51 // pred_fallthru
          _
      $region52: #{tpu_custom_call.1} parent=5 // pred_fallthru
        _
      %p2220 = scmp.le.s32.totalorder 2, %s25
      // Predicated region
      $region81: #{tpu_custom_call.1} parent=5 // pred_check
        %p2221 = pneg %p2220
      $region82: #{tpu_custom_call.1} parent=5 // pred_check_branch
        %2223 = sbr.rel (%p2221) target = $region84
      $region83: #{tpu_custom_call.1} parent=5 // pred_region
        %s2224 = ssub.s32 %s25, 2
        // Predicated region
        $region85: #{tpu_custom_call.1} parent=83 // pred_check
          %p2225 = pneg %p232
        $region86: #{tpu_custom_call.1} parent=83 // pred_check_branch
          %2227 = sbr.rel (%p2225) target = $region88
        $region87: #{tpu_custom_call.1} parent=83 // pred_region
          %s2228 = sand.u32 %s217, 1
          %s2229 = scalar_lea.sflag [#allocation6], %s2228
          %s2230 = sand.u32 %s217, 1
          %s2231 = smul.addr %s2230, 32
          %s2232 = scalar_lea.vmem [#allocation15], %s2231
          %2233 = dma.done %s2229, 512
        $region88: #{tpu_custom_call.1} parent=83 // pred_fallthru
          _
      $region84: #{tpu_custom_call.1} parent=5 // pred_fallthru
        _
    $region6: #{tpu_custom_call.1} parent=1 // loop_footer
      %s29 = sadd.s32 1, %s25
    $region7: #{tpu_custom_call.1} parent=1 // loop_footer_branch
      %24 = sbr.rel target = $region3
    $region8: #{tpu_custom_call.1} parent=1 // loop_exit
      _
    %2234 = vsyncpa [#allocation5], 1
    %s2235 = scalar_lea.sflag [#allocation5], 1
    %2236 = vsyncpa %s2235, 1
    %2237 = vsyncpa [#allocation8], 1
    %2238 = vsyncpa [#allocation11], 1
    %2239 = vsyncpa [#allocation14], 1
    %s2240 = scalar_lea.sflag [#allocation14], 1
    %2241 = vsyncpa %s2240, 1
    %2242 = vsyncpa [#allocation6], 1
    %s2243 = scalar_lea.sflag [#allocation6], 1
    %2244 = vsyncpa %s2243, 1

// kernel: tpu_custom_call.1
$region0: #{tpu_custom_call.1}
  #allocation0 [shape = 'u32[]', space=smem, size = 0x4, offset = 0x4, fixed_abs, tag = 'smem constant byte address 0x4 - core index']
  #allocation1 [shape = 'u32[144,128]{1,0:T(1,128)}', space=vmem, size = 0x12000, scoped, tag = 'internal scratch']
  #allocation2 [shape = 'bf16[32,384]{1,0:T(8,128)(2,1)}', space=vmem, size = 0x6000, scoped, tag = 'scratch operand']
  #allocation3 [shape = 'bf16[32,128]{1,0:T(8,128)(2,1)}', space=vmem, size = 0x2000, scoped, tag = 'scratch operand']
  %s0 = inlined_call_operand.hbm [shape: bf16[64,128], index: 0, kind: input, shape index: {}]
  %s1 = inlined_call_operand.hbm [shape: bf16[128,384], index: 1, kind: input, shape index: {}]
  %s2 = inlined_call_operand.vmem [shape: f32[1,384], index: 2, kind: input, shape index: {}]
  %s3 = inlined_call_operand.hbm [shape: f32[4,16,16], index: 3, kind: input, shape index: {}]
  %s4 = inlined_call_operand.hbm [shape: bf16[128,128], index: 4, kind: input, shape index: {}]
  %s5 = inlined_call_operand.vmem [shape: f32[1,128], index: 5, kind: input, shape index: {}]
  %s6 = inlined_call_operand.hbm [shape: f32[2,16,16], index: 6, kind: input, shape index: {}]
  %s7 = inlined_call_operand.hbm [shape: bf16[64,128], index: 7, kind: input, shape index: {}]
  %s8 = inlined_call_operand.hbm [shape: f32[64,128], index: 8, kind: output, shape index: {}]
  %s9 = sld [smem:[#allocation0]]
  $region89: #{tpu_custom_call.1} parent=0
    _
  %s11 = ssub.s32 1, %s9
  %s12 = scalar_select 0, %s11, %s9
  $region1: #{tpu_custom_call.1} parent=0
    #allocation4 [shape = 'u8[16384]{0}', space=vmem, size = 0x4000, scoped, tag = 'input window, operand 0']
    #allocation5 [shape = 's32[2]{0}', space=sflag, size = 0x8, scoped, tag = 'scoped memory for tpu_custom_call.1']
    #allocation6 [shape = 's32[2]{0}', space=sflag, size = 0x8, scoped, tag = 'scoped memory for tpu_custom_call.1']
    #allocation7 [shape = 'u8[98304]{0}', space=vmem, size = 0x18000, scoped, tag = 'input window, operand 1, single buffered']
    #allocation8 [shape = 's32[1]{0}', space=sflag, size = 0x4, scoped, tag = 'scoped memory for tpu_custom_call.1']
    #allocation9 [shape = 'u8[32768]{0}', space=vmem, size = 0x8000, scoped, tag = 'input window, operand 3, single buffered']
    #allocation10 [shape = 'u8[32768]{0}', space=vmem, size = 0x8000, scoped, tag = 'input window, operand 4, single buffered']
    #allocation11 [shape = 's32[1]{0}', space=sflag, size = 0x4, scoped, tag = 'scoped memory for tpu_custom_call.1']
    #allocation12 [shape = 'u8[16384]{0}', space=vmem, size = 0x4000, scoped, tag = 'input window, operand 6, single buffered']
    #allocation13 [shape = 'u8[16384]{0}', space=vmem, size = 0x4000, scoped, tag = 'input window, operand 7']
    #allocation14 [shape = 's32[2]{0}', space=sflag, size = 0x8, scoped, tag = 'scoped memory for tpu_custom_call.1']
    #allocation15 [shape = 'u8[32768]{0}', space=vmem, size = 0x8000, scoped, tag = 'output window, operand 0']
    %13 = vsyncpa [#allocation5], 0
    %s14 = scalar_lea.sflag [#allocation5], 1
    %15 = vsyncpa %s14, 0
    %16 = vsyncpa [#allocation8], 0
    %17 = vsyncpa [#allocation11], 0
    %18 = vsyncpa [#allocation14], 0
    %s19 = scalar_lea.sflag [#allocation14], 1
    %20 = vsyncpa %s19, 0
    %21 = vsyncpa [#allocation6], 0
    %s22 = scalar_lea.sflag [#allocation6], 1
    %23 = vsyncpa %s22, 0
    loop: start=0, step=1, limit=4
    $region2: #{tpu_custom_call.1} parent=1 // loop_pre_header
      _
    $region3: #{tpu_custom_call.1} parent=1 // loop_header
      %s25 = sphi 0, %s29
      %p26 = scmp.ge.s32.totalorder %s25, 4
      %s35 = sphi 0, %s37
      %s38 = sphi 0, %s35
      %s39 = sphi 0, %s38
      %s55 = sphi 0, %s39
      %s59 = sphi 0, %s59
      %s61 = sphi 0, %s59
      %s62 = sphi 0, %s61
      %s76 = sphi 0, %s62
      %s80 = sphi 0, %s80
      %s82 = sphi 0, %s80
      %s83 = sphi 0, %s82
      %s97 = sphi 0, %s83
      %s101 = sphi 0, %s101
      %s103 = sphi 0, %s101
      %s104 = sphi 0, %s103
      %s118 = sphi 0, %s104
      %s122 = sphi 0, %s122
      %s124 = sphi 0, %s122
      %s125 = sphi 0, %s124
      %s139 = sphi 0, %s125
      %s143 = sphi 0, %s143
      %s145 = sphi 0, %s143
      %s146 = sphi 0, %s145
      %s160 = sphi 0, %s146
      %s164 = sphi 0, %s164
      %s166 = sphi 0, %s164
      %s167 = sphi 0, %s166
      %s181 = sphi 0, %s167
      %s187 = sphi 0, %s189
      %s190 = sphi 0, %s187
      %s191 = sphi 0, %s190
      %s207 = sphi 0, %s191
      %s213 = sphi 0, %s215
      %s216 = sphi 0, %s213
      %s217 = sphi 0, %s216
      %s233 = sphi 0, %s217
    $region4: #{tpu_custom_call.1} parent=1 // loop_header_branch
      %28 = sbr.rel (%p26) target = $region8
    $region5: #{tpu_custom_call.1} parent=1 // loop_body
      %s30 = ssub.s32 %s25, 1
      %s31 = ssub.s32 %s25, 2
      %s32 = sadd.s32 %s25, 1
      %s33 = ssub.s32 %s25, %s32
      %p34 = scmp.eq.s32.totalorder %s33, 0
      %s36 = sadd.s32 %s35, 1
      %s37 = scalar_select %p34, %s35, %s36
      %p40 = pneg %p34
      %p41 = scmp.eq.s32.totalorder %s25, 1
      %p42 = por %p40, %p41
      %p43 = scmp.ne.s32.totalorder %s35, %s38
      %p44 = scmp.eq.s32.totalorder %s25, 0
      %p45 = por %p43, %p44
      %p46 = scmp.ne.s32.totalorder %s35, %s38
      %p47 = scmp.eq.s32.totalorder %s30, 1
      %p48 = por %p46, %p47
      %p49 = scmp.ne.s32.totalorder %s38, %s39
      %p50 = scmp.eq.s32.totalorder %s30, 0
      %p51 = por %p49, %p50
      %p52 = scmp.ne.s32.totalorder %s38, %s39
      %p53 = scmp.eq.s32.totalorder %s31, 1
      %p54 = por %p52, %p53
      %p56 = scmp.ne.s32.totalorder %s39, %s55
      %p57 = scmp.eq.s32.totalorder %s31, 0
      %p58 = por %p56, %p57
      %s60 = sadd.s32 %s59, 1
      %p63 = scmp.eq.s32.totalorder %s25, 1
      %p64 = scmp.ne.s32.totalorder %s59, %s61
      %p65 = scmp.eq.s32.totalorder %s25, 0
      %p66 = por %p64, %p65
      %p67 = scmp.ne.s32.totalorder %s59, %s61
      %p68 = scmp.eq.s32.totalorder %s30, 1
      %p69 = por %p67, %p68
      %p70 = scmp.ne.s32.totalorder %s61, %s62
      %p71 = scmp.eq.s32.totalorder %s30, 0
      %p72 = por %p70, %p71
      %p73 = scmp.ne.s32.totalorder %s61, %s62
      %p74 = scmp.eq.s32.totalorder %s31, 1
      %p75 = por %p73, %p74
      %p77 = scmp.ne.s32.totalorder %s62, %s76
      %p78 = scmp.eq.s32.totalorder %s31, 0
      %p79 = por %p77, %p78
      %s81 = sadd.s32 %s80, 1
      %p84 = scmp.eq.s32.totalorder %s25, 1
      %p85 = scmp.ne.s32.totalorder %s80, %s82
      %p86 = scmp.eq.s32.totalorder %s25, 0
      %p87 = por %p85, %p86
      %p88 = scmp.ne.s32.totalorder %s80, %s82
      %p89 = scmp.eq.s32.totalorder %s30, 1
      %p90 = por %p88, %p89
      %p91 = scmp.ne.s32.totalorder %s82, %s83
      %p92 = scmp.eq.s32.totalorder %s30, 0
      %p93 = por %p91, %p92
      %p94 = scmp.ne.s32.totalorder %s82, %s83
      %p95 = scmp.eq.s32.totalorder %s31, 1
      %p96 = por %p94, %p95
      %p98 = scmp.ne.s32.totalorder %s83, %s97
      %p99 = scmp.eq.s32.totalorder %s31, 0
      %p100 = por %p98, %p99
      %s102 = sadd.s32 %s101, 1
      %p105 = scmp.eq.s32.totalorder %s25, 1
      %p106 = scmp.ne.s32.totalorder %s101, %s103
      %p107 = scmp.eq.s32.totalorder %s25, 0
      %p108 = por %p106, %p107
      %p109 = scmp.ne.s32.totalorder %s101, %s103
      %p110 = scmp.eq.s32.totalorder %s30, 1
      %p111 = por %p109, %p110
      %p112 = scmp.ne.s32.totalorder %s103, %s104
      %p113 = scmp.eq.s32.totalorder %s30, 0
      %p114 = por %p112, %p113
      %p115 = scmp.ne.s32.totalorder %s103, %s104
      %p116 = scmp.eq.s32.totalorder %s31, 1
      %p117 = por %p115, %p116
      %p119 = scmp.ne.s32.totalorder %s104, %s118
      %p120 = scmp.eq.s32.totalorder %s31, 0
      %p121 = por %p119, %p120
      %s123 = sadd.s32 %s122, 1
      %p126 = scmp.eq.s32.totalorder %s25, 1
      %p127 = scmp.ne.s32.totalorder %s122, %s124
      %p128 = scmp.eq.s32.totalorder %s25, 0
      %p129 = por %p127, %p128
      %p130 = scmp.ne.s32.totalorder %s122, %s124
      %p131 = scmp.eq.s32.totalorder %s30, 1
      %p132 = por %p130, %p131
      %p133 = scmp.ne.s32.totalorder %s124, %s125
      %p134 = scmp.eq.s32.totalorder %s30, 0
      %p135 = por %p133, %p134
      %p136 = scmp.ne.s32.totalorder %s124, %s125
      %p137 = scmp.eq.s32.totalorder %s31, 1
      %p138 = por %p136, %p137
      %p140 = scmp.ne.s32.totalorder %s125, %s139
      %p141 = scmp.eq.s32.totalorder %s31, 0
      %p142 = por %p140, %p141
      %s144 = sadd.s32 %s143, 1
      %p147 = scmp.eq.s32.totalorder %s25, 1
      %p148 = scmp.ne.s32.totalorder %s143, %s145
      %p149 = scmp.eq.s32.totalorder %s25, 0
      %p150 = por %p148, %p149
      %p151 = scmp.ne.s32.totalorder %s143, %s145
      %p152 = scmp.eq.s32.totalorder %s30, 1
      %p153 = por %p151, %p152
      %p154 = scmp.ne.s32.totalorder %s145, %s146
      %p155 = scmp.eq.s32.totalorder %s30, 0
      %p156 = por %p154, %p155
      %p157 = scmp.ne.s32.totalorder %s145, %s146
      %p158 = scmp.eq.s32.totalorder %s31, 1
      %p159 = por %p157, %p158
      %p161 = scmp.ne.s32.totalorder %s146, %s160
      %p162 = scmp.eq.s32.totalorder %s31, 0
      %p163 = por %p161, %p162
      %s165 = sadd.s32 %s164, 1
      %p168 = scmp.eq.s32.totalorder %s25, 1
      %p169 = scmp.ne.s32.totalorder %s164, %s166
      %p170 = scmp.eq.s32.totalorder %s25, 0
      %p171 = por %p169, %p170
      %p172 = scmp.ne.s32.totalorder %s164, %s166
      %p173 = scmp.eq.s32.totalorder %s30, 1
      %p174 = por %p172, %p173
      %p175 = scmp.ne.s32.totalorder %s166, %s167
      %p176 = scmp.eq.s32.totalorder %s30, 0
      %p177 = por %p175, %p176
      %p178 = scmp.ne.s32.totalorder %s166, %s167
      %p179 = scmp.eq.s32.totalorder %s31, 1
      %p180 = por %p178, %p179
      %p182 = scmp.ne.s32.totalorder %s167, %s181
      %p183 = scmp.eq.s32.totalorder %s31, 0
      %p184 = por %p182, %p183
      %s185 = ssub.s32 %s25, %s32
      %p186 = scmp.eq.s32.totalorder %s185, 0
      %s188 = sadd.s32 %s187, 1
      %s189 = scalar_select %p186, %s187, %s188
      %p192 = pneg %p186
      %p193 = scmp.eq.s32.totalorder %s25, 1
      %p194 = por %p192, %p193
      %p195 = scmp.ne.s32.totalorder %s187, %s190
      %p196 = scmp.eq.s32.totalorder %s25, 0
      %p197 = por %p195, %p196
      %p198 = scmp.ne.s32.totalorder %s187, %s190
      %p199 = scmp.eq.s32.totalorder %s30, 1
      %p200 = por %p198, %p199
      %p201 = scmp.ne.s32.totalorder %s190, %s191
      %p202 = scmp.eq.s32.totalorder %s30, 0
      %p203 = por %p201, %p202
      %p204 = scmp.ne.s32.totalorder %s190, %s191
      %p205 = scmp.eq.s32.totalorder %s31, 1
      %p206 = por %p204, %p205
      %p208 = scmp.ne.s32.totalorder %s191, %s207
      %p209 = scmp.eq.s32.totalorder %s31, 0
      %p210 = por %p208, %p209
      %s211 = ssub.s32 %s25, %s32
      %p212 = scmp.eq.s32.totalorder %s211, 0
      %s214 = sadd.s32 %s213, 1
      %s215 = scalar_select %p212, %s213, %s214
      %p218 = pneg %p212
      %p219 = scmp.eq.s32.totalorder %s25, 1
      %p220 = por %p218, %p219
      %p221 = scmp.ne.s32.totalorder %s213, %s216
      %p222 = scmp.eq.s32.totalorder %s25, 0
      %p223 = por %p221, %p222
      %p224 = scmp.ne.s32.totalorder %s213, %s216
      %p225 = scmp.eq.s32.totalorder %s30, 1
      %p226 = por %p224, %p225
      %p227 = scmp.ne.s32.totalorder %s216, %s217
      %p228 = scmp.eq.s32.totalorder %s30, 0
      %p229 = por %p227, %p228
      %p230 = scmp.ne.s32.totalorder %s216, %s217
      %p231 = scmp.eq.s32.totalorder %s31, 1
      %p232 = por %p230, %p231
      %p234 = scmp.ne.s32.totalorder %s217, %s233
      %p235 = scmp.eq.s32.totalorder %s31, 0
      %p236 = por %p234, %p235
      %p237 = scmp.le.s32.totalorder 1, %s25
      %p238 = scmp.lt.s32.totalorder %s25, 3
      %p239 = pnand %p237, %p238
      %p240 = pneg %p239
      // Predicated region
      $region9: #{tpu_custom_call.1} parent=5 // pred_check
        _
      $region10: #{tpu_custom_call.1} parent=5 // pred_check_branch
        %242 = sbr.rel (%p239) target = $region12
      $region11: #{tpu_custom_call.1} parent=5 // pred_region
        %s243 = ssub.s32 %s25, 1
        // Predicated region
        $region13: #{tpu_custom_call.1} parent=11 // pred_check
          %p244 = pneg %p72
        $region14: #{tpu_custom_call.1} parent=11 // pred_check_branch
          %246 = sbr.rel (%p244) target = $region16
        $region15: #{tpu_custom_call.1} parent=11 // pred_region
          %s248 = ssub.s32 3072, 3072
          %249 = vsyncadd [#allocation8], %s248
          %s250 = sshll.u32 [#allocation7], 4
          %s251 = int_to_ptr.vmem [resolvable:$true] %s250
          %256 = dma.hbm_to_vmem [thread:$0]  %s1, 3072, %s251, [#allocation8], 192, 192, 12
        $region16: #{tpu_custom_call.1} parent=11 // pred_fallthru
          _
        // Predicated region
        $region17: #{tpu_custom_call.1} parent=11 // pred_check
          %p257 = pneg %p93
        $region18: #{tpu_custom_call.1} parent=11 // pred_check_branch
          %259 = sbr.rel (%p257) target = $region20
        $region19: #{tpu_custom_call.1} parent=11 // pred_region
          _
        $region20: #{tpu_custom_call.1} parent=11 // pred_fallthru
          _
        // Predicated region
        $region21: #{tpu_custom_call.1} parent=11 // pred_check
          %p260 = pneg %p114
        $region22: #{tpu_custom_call.1} parent=11 // pred_check_branch
          %262 = sbr.rel (%p260) target = $region24
        $region23: #{tpu_custom_call.1} parent=11 // pred_region
          %s264 = ssub.s32 1024, 1024
          %265 = vsyncadd [#allocation8], %s264
          %s266 = sshll.u32 [#allocation9], 4
          %s267 = int_to_ptr.vmem [resolvable:$true] %s266
          %272 = dma.hbm_to_vmem [thread:$0]  %s3, 1024, %s267, [#allocation8], 128, 128, 8
        $region24: #{tpu_custom_call.1} parent=11 // pred_fallthru
          _
        // Predicated region
        $region25: #{tpu_custom_call.1} parent=11 // pred_check
          %p273 = pneg %p135
        $region26: #{tpu_custom_call.1} parent=11 // pred_check_branch
          %275 = sbr.rel (%p273) target = $region28
        $region27: #{tpu_custom_call.1} parent=11 // pred_region
          %s277 = ssub.s32 1024, 1024
          %278 = vsyncadd [#allocation11], %s277
          %s279 = sshll.u32 [#allocation10], 4
          %s280 = int_to_ptr.vmem [resolvable:$true] %s279
          %285 = dma.hbm_to_vmem [thread:$0]  %s4, 1024, %s280, [#allocation11], 64, 64, 4
        $region28: #{tpu_custom_call.1} parent=11 // pred_fallthru
          _
        // Predicated region
        $region29: #{tpu_custom_call.1} parent=11 // pred_check
          %p286 = pneg %p156
        $region30: #{tpu_custom_call.1} parent=11 // pred_check_branch
          %288 = sbr.rel (%p286) target = $region32
        $region31: #{tpu_custom_call.1} parent=11 // pred_region
          _
        $region32: #{tpu_custom_call.1} parent=11 // pred_fallthru
          _
        // Predicated region
        $region33: #{tpu_custom_call.1} parent=11 // pred_check
          %p289 = pneg %p177
        $region34: #{tpu_custom_call.1} parent=11 // pred_check_branch
          %291 = sbr.rel (%p289) target = $region36
        $region35: #{tpu_custom_call.1} parent=11 // pred_region
          %s293 = ssub.s32 512, 512
          %294 = vsyncadd [#allocation11], %s293
          %s295 = sshll.u32 [#allocation12], 4
          %s296 = int_to_ptr.vmem [resolvable:$true] %s295
          %301 = dma.hbm_to_vmem [thread:$0]  %s6, 512, %s296, [#allocation11], 128, 128, 8
        $region36: #{tpu_custom_call.1} parent=11 // pred_fallthru
          _
      $region12: #{tpu_custom_call.1} parent=5 // pred_fallthru
        _
      %p302 = scmp.lt.s32.totalorder %s25, 2
      // Predicated region
      $region37: #{tpu_custom_call.1} parent=5 // pred_check
        %p303 = pneg %p302
      $region38: #{tpu_custom_call.1} parent=5 // pred_check_branch
        %305 = sbr.rel (%p303) target = $region40
      $region39: #{tpu_custom_call.1} parent=5 // pred_region
        // Predicated region
        $region41: #{tpu_custom_call.1} parent=39 // pred_check
          %p306 = pneg %p45
        $region42: #{tpu_custom_call.1} parent=39 // pred_check_branch
          %308 = sbr.rel (%p306) target = $region44
        $region43: #{tpu_custom_call.1} parent=39 // pred_region
          %s309 = sand.u32 %s35, 1
          %s310 = scalar_lea.sflag [#allocation5], %s309
          %s311 = sand.u32 %s35, 1
          %s312 = smul.addr %s311, 16
          %s313 = scalar_lea.vmem [#allocation4], %s312
          %s314 = smul.u32 4, %s25
          %s316 = ssub.s32 256, 256
          %317 = vsyncadd %s310, %s316
          %s318 = smul.addr %s314, 64
          %s319 = scalar_lea.hbm %s0, %s318
          %s320 = sshll.u32 %s313, 4
          %s321 = int_to_ptr.vmem [resolvable:$true] %s320
          %326 = dma.hbm_to_vmem [thread:$0]  %s319, 256, %s321, %s310, 64, 64, 4
        $region44: #{tpu_custom_call.1} parent=39 // pred_fallthru
          _
        // Predicated region
        $region45: #{tpu_custom_call.1} parent=39 // pred_check
          %p327 = pneg %p197
        $region46: #{tpu_custom_call.1} parent=39 // pred_check_branch
          %329 = sbr.rel (%p327) target = $region48
        $region47: #{tpu_custom_call.1} parent=39 // pred_region
          %s330 = sand.u32 %s187, 1
          %s331 = scalar_lea.sflag [#allocation14], %s330
          %s332 = sand.u32 %s187, 1
          %s333 = smul.addr %s332, 16
          %s334 = scalar_lea.vmem [#allocation13], %s333
          %s335 = smul.u32 4, %s25
          %s337 = ssub.s32 256, 256
          %338 = vsyncadd %s331, %s337
          %s339 = smul.addr %s335, 64
          %s340 = scalar_lea.hbm %s7, %s339
          %s341 = sshll.u32 %s334, 4
          %s342 = int_to_ptr.vmem [resolvable:$true] %s341
          %347 = dma.hbm_to_vmem [thread:$0]  %s340, 256, %s342, %s331, 64, 64, 4
        $region48: #{tpu_custom_call.1} parent=39 // pred_fallthru
          _
      $region40: #{tpu_custom_call.1} parent=5 // pred_fallthru
        _
      %p348 = scmp.le.s32.totalorder 1, %s25
      %p349 = scmp.lt.s32.totalorder %s25, 3
      %p350 = pnand %p348, %p349
      %p351 = pneg %p350
      // Predicated region
      $region49: #{tpu_custom_call.1} parent=5 // pred_check
        _
      $region50: #{tpu_custom_call.1} parent=5 // pred_check_branch
        %353 = sbr.rel (%p350) target = $region52
      $region51: #{tpu_custom_call.1} parent=5 // pred_region
        %s354 = ssub.s32 %s25, 1
        %s355 = sand.u32 %s38, 1
        %s356 = scalar_lea.sflag [#allocation5], %s355
        %s357 = sand.u32 %s38, 1
        %s358 = smul.addr %s357, 16
        %s359 = scalar_lea.vmem [#allocation4], %s358
        // Predicated region
        $region53: #{tpu_custom_call.1} parent=51 // pred_check
          %p360 = pneg %p51
        $region54: #{tpu_custom_call.1} parent=51 // pred_check_branch
          %362 = sbr.rel (%p360) target = $region56
        $region55: #{tpu_custom_call.1} parent=51 // pred_region
          %363 = dma.done %s356, 256
        $region56: #{tpu_custom_call.1} parent=51 // pred_fallthru
          _
        // Predicated region
        $region57: #{tpu_custom_call.1} parent=51 // pred_check
          %p364 = pneg %p72
        $region58: #{tpu_custom_call.1} parent=51 // pred_check_branch
          %366 = sbr.rel (%p364) target = $region60
        $region59: #{tpu_custom_call.1} parent=51 // pred_region
          %367 = dma.done [#allocation8], 3072
        $region60: #{tpu_custom_call.1} parent=51 // pred_fallthru
          _
        // Predicated region
        $region61: #{tpu_custom_call.1} parent=51 // pred_check
          %p368 = pneg %p114
        $region62: #{tpu_custom_call.1} parent=51 // pred_check_branch
          %370 = sbr.rel (%p368) target = $region64
        $region63: #{tpu_custom_call.1} parent=51 // pred_region
          %371 = dma.done [#allocation8], 1024
        $region64: #{tpu_custom_call.1} parent=51 // pred_fallthru
          _
        // Predicated region
        $region65: #{tpu_custom_call.1} parent=51 // pred_check
          %p372 = pneg %p135
        $region66: #{tpu_custom_call.1} parent=51 // pred_check_branch
          %374 = sbr.rel (%p372) target = $region68
        $region67: #{tpu_custom_call.1} parent=51 // pred_region
          %375 = dma.done [#allocation11], 1024
        $region68: #{tpu_custom_call.1} parent=51 // pred_fallthru
          _
        // Predicated region
        $region69: #{tpu_custom_call.1} parent=51 // pred_check
          %p376 = pneg %p177
        $region70: #{tpu_custom_call.1} parent=51 // pred_check_branch
          %378 = sbr.rel (%p376) target = $region72
        $region71: #{tpu_custom_call.1} parent=51 // pred_region
          %379 = dma.done [#allocation11], 512
        $region72: #{tpu_custom_call.1} parent=51 // pred_fallthru
          _
        %s380 = sand.u32 %s190, 1
        %s381 = scalar_lea.sflag [#allocation14], %s380
        %s382 = sand.u32 %s190, 1
        %s383 = smul.addr %s382, 16
        %s384 = scalar_lea.vmem [#allocation13], %s383
        // Predicated region
        $region73: #{tpu_custom_call.1} parent=51 // pred_check
          %p385 = pneg %p203
        $region74: #{tpu_custom_call.1} parent=51 // pred_check_branch
          %387 = sbr.rel (%p385) target = $region76
        $region75: #{tpu_custom_call.1} parent=51 // pred_region
          %388 = dma.done %s381, 256
        $region76: #{tpu_custom_call.1} parent=51 // pred_fallthru
          _
        %s389 = sand.u32 %s38, 1
        %s390 = scalar_lea.sflag [#allocation5], %s389
        %s391 = sand.u32 %s38, 1
        %s392 = smul.addr %s391, 16
        %s393 = scalar_lea.vmem [#allocation4], %s392
        %p394 = pneg %p51
        %p395 = pneg %p48
        %p396 = pneg %p72
        %p397 = pneg %p69
        %p398 = pneg %p93
        %p399 = pneg %p90
        %p400 = pneg %p114
        %p401 = pneg %p111
        %p402 = pneg %p135
        %p403 = pneg %p132
        %p404 = pneg %p156
        %p405 = pneg %p153
        %p406 = pneg %p177
        %p407 = pneg %p174
        %s408 = sand.u32 %s190, 1
        %s409 = scalar_lea.sflag [#allocation14], %s408
        %s410 = sand.u32 %s190, 1
        %s411 = smul.addr %s410, 16
        %s412 = scalar_lea.vmem [#allocation13], %s411
        %p413 = pneg %p203
        %p414 = pneg %p200
        %p415 = pneg %p229
        %p416 = pneg %p226
        %s417 = sand.u32 %s216, 1
        %s418 = scalar_lea.sflag [#allocation6], %s417
        %s419 = sand.u32 %s216, 1
        %s420 = smul.addr %s419, 32
        %s421 = scalar_lea.vmem [#allocation15], %s420
        %s422 = smul.u32 4, %s30
        %s423 = smul.u32 4, %s30
        %s424 = smul.u32 4, %s30
        %v426 = vld [vmem:[%s359] sm:$0xf]
        %v427 = vld [vmem:[%s359 + $0x4] sm:$0xf]
        %v428 = vld [vmem:[%s359 + $0x8] sm:$0xf]
        %v429 = vld [vmem:[%s359 + $0xc] sm:$0xf]
        %v430 = vld [vmem:[#allocation7] sm:$0xff]
        %v431 = vld [vmem:[#allocation7 + $0x8] sm:$0xf]
        %v432 = vld [vmem:[#allocation7 + $0xc] sm:$0xff]
        %v433 = vld [vmem:[#allocation7 + $0x14] sm:$0xf]
        %v434 = vld [vmem:[#allocation7 + $0x18] sm:$0xff]
        %v435 = vld [vmem:[#allocation7 + $0x20] sm:$0xf]
        %v436 = vld [vmem:[#allocation7 + $0x24] sm:$0xff]
        %v437 = vld [vmem:[#allocation7 + $0x2c] sm:$0xf]
        %v438 = vld [vmem:[#allocation7 + $0x30] sm:$0xff]
        %v439 = vld [vmem:[#allocation7 + $0x38] sm:$0xf]
        %v440 = vld [vmem:[#allocation7 + $0x3c] sm:$0xff]
        %v441 = vld [vmem:[#allocation7 + $0x44] sm:$0xf]
        %v442 = vld [vmem:[#allocation7 + $0x48] sm:$0xff]
        %v443 = vld [vmem:[#allocation7 + $0x50] sm:$0xf]
        %v444 = vld [vmem:[#allocation7 + $0x54] sm:$0xff]
        %v445 = vld [vmem:[#allocation7 + $0x5c] sm:$0xf]
        %v446 = vld [vmem:[#allocation7 + $0x60] sm:$0xff]
        %v447 = vld [vmem:[#allocation7 + $0x68] sm:$0xf]
        %v448 = vld [vmem:[#allocation7 + $0x6c] sm:$0xff]
        %v449 = vld [vmem:[#allocation7 + $0x74] sm:$0xf]
        %v450 = vld [vmem:[#allocation7 + $0x78] sm:$0xff]
        %v451 = vld [vmem:[#allocation7 + $0x80] sm:$0xf]
        %v452 = vld [vmem:[#allocation7 + $0x84] sm:$0xff]
        %v453 = vld [vmem:[#allocation7 + $0x8c] sm:$0xf]
        %v454 = vld [vmem:[#allocation7 + $0x90] sm:$0xff]
        %v455 = vld [vmem:[#allocation7 + $0x98] sm:$0xf]
        %v456 = vld [vmem:[#allocation7 + $0x9c] sm:$0xff]
        %v457 = vld [vmem:[#allocation7 + $0xa4] sm:$0xf]
        %v458 = vld [vmem:[#allocation7 + $0xa8] sm:$0xff]
        %v459 = vld [vmem:[#allocation7 + $0xb0] sm:$0xf]
        %v460 = vld [vmem:[#allocation7 + $0xb4] sm:$0xff]
        %v461 = vld [vmem:[#allocation7 + $0xbc] sm:$0xf]
        %v462 = vld [vmem:[%s2] sm:$0x7]
        %v464 = vlaneseq
        %v465 = vshrl.u32 %v464, 7
        %v466 = vsub.s32 0, %v465
        %v467 = vrot.slane %v462, %v466
        %v468 = vlaneseq
        %v469 = vshrl.u32 %v468, 7
        %v470 = vsub.s32 1, %v469
        %v471 = vrot.slane %v462, %v470
        %v472 = vlaneseq
        %v473 = vshrl.u32 %v472, 7
        %v474 = vsub.s32 2, %v473
        %v475 = vrot.slane %v462, %v474
        %v483 = vunpack.c.l.b16 %v426
        %v484 = vunpack.c.l.b16 %v427
        %v485 = vunpack.c.l.b16 %v428
        %v486 = vunpack.c.l.b16 %v429
        %v487 = vpack.c.b16 %v484, %v483
        %v488 = vpack.c.b16 %v486, %v485
        %v523 = vunpack.c.l.b16 %v430
        %v524 = vunpack.c.h.b16 %v430
        %v525 = vunpack.c.l.b16 %v431
        %v526 = vunpack.c.l.b16 %v432
        %v527 = vunpack.c.h.b16 %v432
        %v528 = vunpack.c.l.b16 %v433
        %v529 = vunpack.c.l.b16 %v434
        %v530 = vunpack.c.h.b16 %v434
        %v531 = vunpack.c.l.b16 %v435
        %v532 = vunpack.c.l.b16 %v436
        %v533 = vunpack.c.h.b16 %v436
        %v534 = vunpack.c.l.b16 %v437
        %v535 = vunpack.c.l.b16 %v438
        %v536 = vunpack.c.h.b16 %v438
        %v537 = vunpack.c.l.b16 %v439
        %v538 = vunpack.c.l.b16 %v440
        %v539 = vunpack.c.h.b16 %v440
        %v540 = vunpack.c.l.b16 %v441
        %v541 = vunpack.c.l.b16 %v442
        %v542 = vunpack.c.h.b16 %v442
        %v543 = vunpack.c.l.b16 %v443
        %v544 = vunpack.c.l.b16 %v444
        %v545 = vunpack.c.h.b16 %v444
        %v546 = vunpack.c.l.b16 %v445
        %v547 = vunpack.c.l.b16 %v446
        %v548 = vunpack.c.h.b16 %v446
        %v549 = vunpack.c.l.b16 %v447
        %v550 = vunpack.c.l.b16 %v448
        %v551 = vunpack.c.h.b16 %v448
        %v552 = vunpack.c.l.b16 %v449
        %v553 = vunpack.c.l.b16 %v450
        %v554 = vunpack.c.h.b16 %v450
        %v555 = vunpack.c.l.b16 %v451
        %v556 = vunpack.c.l.b16 %v452
        %v557 = vunpack.c.h.b16 %v452
        %v558 = vunpack.c.l.b16 %v453
        %v559 = vunpack.c.l.b16 %v454
        %v560 = vunpack.c.h.b16 %v454
        %v561 = vunpack.c.l.b16 %v455
        %v562 = vunpack.c.l.b16 %v456
        %v563 = vunpack.c.h.b16 %v456
        %v564 = vunpack.c.l.b16 %v457
        %v565 = vunpack.c.l.b16 %v458
        %v566 = vunpack.c.h.b16 %v458
        %v567 = vunpack.c.l.b16 %v459
        %v568 = vunpack.c.l.b16 %v460
        %v569 = vunpack.c.h.b16 %v460
        %v570 = vunpack.c.l.b16 %v461
        %v571 = vpack.c.b16 %v526, %v523
        %v572 = vpack.c.b16 %v527, %v524
        %v573 = vpack.c.b16 %v528, %v525
        %v574 = vpack.c.b16 %v532, %v529
        %v575 = vpack.c.b16 %v533, %v530
        %v576 = vpack.c.b16 %v534, %v531
        %v577 = vpack.c.b16 %v538, %v535
        %v578 = vpack.c.b16 %v539, %v536
        %v579 = vpack.c.b16 %v540, %v537
        %v580 = vpack.c.b16 %v544, %v541
        %v581 = vpack.c.b16 %v545, %v542
        %v582 = vpack.c.b16 %v546, %v543
        %v583 = vpack.c.b16 %v550, %v547
        %v584 = vpack.c.b16 %v551, %v548
        %v585 = vpack.c.b16 %v552, %v549
        %v586 = vpack.c.b16 %v556, %v553
        %v587 = vpack.c.b16 %v557, %v554
        %v588 = vpack.c.b16 %v558, %v555
        %v589 = vpack.c.b16 %v562, %v559
        %v590 = vpack.c.b16 %v563, %v560
        %v591 = vpack.c.b16 %v564, %v561
        %v592 = vpack.c.b16 %v568, %v565
        %v593 = vpack.c.b16 %v569, %v566
        %v594 = vpack.c.b16 %v570, %v567
        %619 = vmatprep.subr.bf16.mxu0 %v593
        %620 = vmatpush1.bf16.msra.mxu0 %v592
        %621 = vmatprep.subr.bf16.mxu0 %v590
        %622 = vmatpush1.bf16.msra.mxu0 %v589
        %623 = vmatprep.subr.bf16.mxu0 %v587
        %624 = vmatpush1.bf16.msra.mxu0 %v586
        %625 = vmatprep.subr.bf16.mxu0 %v584
        %626 = vmatpush1.bf16.msra.mxu0 %v583
        %627 = vmatprep.subr.bf16.mxu0 %v581
        %628 = vmatpush1.bf16.msra.mxu0 %v580
        %629 = vmatprep.subr.bf16.mxu0 %v578
        %630 = vmatpush1.bf16.msra.mxu0 %v577
        %631 = vmatprep.subr.bf16.mxu0 %v575
        %632 = vmatpush1.bf16.msra.mxu0 %v574
        %633 = vmatprep.subr.bf16.mxu0 %v572
        %634 = vmatpush1.bf16.msra.mxu0 %v571
        %635 = vmatprep.subr.bf16.mxu0 0
        %636 = vmatpush2.bf16.msra.mxu0 0
        %637 = vmatprep.subr.bf16.mxu0 0
        %638 = vmatpush2.bf16.msra.mxu0 0
        %639 = vmatprep.subr.bf16.mxu0 0
        %640 = vmatpush2.bf16.msra.mxu0 0
        %641 = vmatprep.subr.bf16.mxu0 0
        %642 = vmatpush2.bf16.msra.mxu0 0
        %643 = vmatprep.subr.bf16.mxu0 0
        %644 = vmatpush2.bf16.msra.mxu0 0
        %645 = vmatprep.subr.bf16.mxu0 0
        %646 = vmatpush2.bf16.msra.mxu0 0
        %647 = vmatprep.subr.bf16.mxu0 0
        %648 = vmatpush2.bf16.msra.mxu0 0
        %649 = vmatprep.subr.bf16.mxu0 0
        %650 = vmatpush2.bf16.msra.mxu0 0
        %651 = vmatprep.mubr.bf16.mxu0 0
        %652 = vmatmul.mubr.bf16.gmra.mxu0 %v487
        %v653 = vpop.f32.mrf.mxu0
        %v654 = vadd.f32 %v467, %v653
        %v655 = vpop.f32.mrf.mxu0
        %v656 = vadd.f32 %v471, %v655
        %v657 = vpop.f32.mrf.mxu0
        %v658 = vadd.f32 %v467, %v657
        %v659 = vpop.f32.mrf.mxu0
        %v660 = vadd.f32 %v471, %v659
        %661 = vmatprep.mubr.bf16.mxu0 0
        %662 = vmatmul.mubr.bf16.gmra.mxu0 %v488
        %v663 = vpop.f32.mrf.mxu0
        %v664 = vadd.f32 %v467, %v663
        %v665 = vpop.f32.mrf.mxu0
        %v666 = vadd.f32 %v471, %v665
        %v667 = vpop.f32.mrf.mxu0
        %v668 = vadd.f32 %v467, %v667
        %v669 = vpop.f32.mrf.mxu0
        %v670 = vadd.f32 %v471, %v669
        %671 = vdwg.mxu0
        %672 = vmatprep.subr.bf16.mxu0 0
        %673 = vmatpush1.bf16.msra.mxu0 %v594
        %674 = vmatprep.subr.bf16.mxu0 0
        %675 = vmatpush1.bf16.msra.mxu0 %v591
        %676 = vmatprep.subr.bf16.mxu0 0
        %677 = vmatpush1.bf16.msra.mxu0 %v588
        %678 = vmatprep.subr.bf16.mxu0 0
        %679 = vmatpush1.bf16.msra.mxu0 %v585
        %680 = vmatprep.subr.bf16.mxu0 0
        %681 = vmatpush1.bf16.msra.mxu0 %v582
        %682 = vmatprep.subr.bf16.mxu0 0
        %683 = vmatpush1.bf16.msra.mxu0 %v579
        %684 = vmatprep.subr.bf16.mxu0 0
        %685 = vmatpush1.bf16.msra.mxu0 %v576
        %686 = vmatprep.subr.bf16.mxu0 0
        %687 = vmatpush1.bf16.msra.mxu0 %v573
        %688 = vmatprep.subr.bf16.mxu0 0
        %689 = vmatpush2.bf16.msra.mxu0 0
        %690 = vmatprep.subr.bf16.mxu0 0
        %691 = vmatpush2.bf16.msra.mxu0 0
        %692 = vmatprep.subr.bf16.mxu0 0
        %693 = vmatpush2.bf16.msra.mxu0 0
        %694 = vmatprep.subr.bf16.mxu0 0
        %695 = vmatpush2.bf16.msra.mxu0 0
        %696 = vmatprep.subr.bf16.mxu0 0
        %697 = vmatpush2.bf16.msra.mxu0 0
        %698 = vmatprep.subr.bf16.mxu0 0
        %699 = vmatpush2.bf16.msra.mxu0 0
        %700 = vmatprep.subr.bf16.mxu0 0
        %701 = vmatpush2.bf16.msra.mxu0 0
        %702 = vmatprep.subr.bf16.mxu0 0
        %703 = vmatpush2.bf16.msra.mxu0 0
        %704 = vmatprep.mubr.bf16.mxu0 0
        %705 = vmatmul.mubr.bf16.gmra.mxu0 %v487
        %v706 = vpop.f32.mrf.mxu0
        %v707 = vadd.f32 %v475, %v706
        %v708 = vpop.f32.mrf.mxu0
        %v709 = vpop.f32.mrf.mxu0
        %v710 = vadd.f32 %v475, %v709
        %v711 = vpop.f32.mrf.mxu0
        %712 = vmatprep.mubr.bf16.mxu0 0
        %713 = vmatmul.mubr.bf16.gmra.mxu0 %v488
        %v714 = vpop.f32.mrf.mxu0
        %v715 = vadd.f32 %v475, %v714
        %v716 = vpop.f32.mrf.mxu0
        %v717 = vpop.f32.mrf.mxu0
        %v718 = vadd.f32 %v475, %v717
        %v719 = vpop.f32.mrf.mxu0
        %720 = vdwg.mxu0
        %v721 = vpack.c.bf16 %v658, %v654
        %v722 = vpack.c.bf16 %v660, %v656
        %v723 = vpack.c.bf16 %v710, %v707
        %v724 = vpack.c.bf16 %v668, %v664
        %v725 = vpack.c.bf16 %v670, %v666
        %v726 = vpack.c.bf16 %v718, %v715
        %v733 = vunpack.c.l.b16 %v721
        %v734 = vunpack.c.l.b16 %v722
        %v735 = vunpack.c.l.b16 %v723
        %v736 = vunpack.c.h.b16 %v721
        %v737 = vunpack.c.h.b16 %v722
        %v738 = vunpack.c.h.b16 %v723
        %v739 = vunpack.c.l.b16 %v724
        %v740 = vunpack.c.l.b16 %v725
        %v741 = vunpack.c.l.b16 %v726
        %v742 = vunpack.c.h.b16 %v724
        %v743 = vunpack.c.h.b16 %v725
        %v744 = vunpack.c.h.b16 %v726
        %v745 = vpack.c.b16 %v734, %v733
        %v746 = vpack.c.b16 %v735, %v735
        %v747 = vpack.c.b16 %v737, %v736
        %v748 = vpack.c.b16 %v738, %v738
        %v749 = vpack.c.b16 %v740, %v739
        %v750 = vpack.c.b16 %v741, %v741
        %v751 = vpack.c.b16 %v743, %v742
        %v752 = vpack.c.b16 %v744, %v744
        %761 = vst [vmem:[#allocation2] sm:$0xff] %v745
        %762 = vst [vmem:[#allocation2 + $0x8] sm:$0xf] %v746
        %763 = vst [vmem:[#allocation2 + $0xc] sm:$0xff] %v747
        %764 = vst [vmem:[#allocation2 + $0x14] sm:$0xf] %v748
        %765 = vst [vmem:[#allocation2 + $0x18] sm:$0xff] %v749
        %766 = vst [vmem:[#allocation2 + $0x20] sm:$0xf] %v750
        %767 = vst [vmem:[#allocation2 + $0x24] sm:$0xff] %v751
        %768 = vst [vmem:[#allocation2 + $0x2c] sm:$0xf] %v752
        %vm769 = vcmask 1043712
        %770 = vst.msk [vmem:[#allocation3] sm:$0xf] %vm769, 0
        %771 = vst.msk [vmem:[#allocation3 + $0x4] sm:$0xf] %vm769, 0
        %772 = vst.msk [vmem:[#allocation3 + $0x8] sm:$0xf] %vm769, 0
        %773 = vst.msk [vmem:[#allocation3 + $0xc] sm:$0xf] %vm769, 0
        %v774 = vld [vmem:[#allocation2] sm:$0xf]
        %v775 = vld [vmem:[#allocation2 + $0xc] sm:$0xf]
        %v776 = vld [vmem:[#allocation2 + $0x18] sm:$0xf]
        %v777 = vld [vmem:[#allocation2 + $0x24] sm:$0xf]
        %v778 = vld [vmem:[#allocation2 + $0x4] sm:$0xf]
        %v779 = vld [vmem:[#allocation2 + $0x10] sm:$0xf]
        %v780 = vld [vmem:[#allocation2 + $0x1c] sm:$0xf]
        %v781 = vld [vmem:[#allocation2 + $0x28] sm:$0xf]
        %v782 = vld [vmem:[#allocation2 + $0x8] sm:$0xf]
        %v783 = vld [vmem:[#allocation2 + $0x14] sm:$0xf]
        %v784 = vld [vmem:[#allocation2 + $0x20] sm:$0xf]
        %v785 = vld [vmem:[#allocation2 + $0x2c] sm:$0xf]
        %v786 = vld [vmem:[#allocation9] sm:$0xff]
        %v787 = vld [vmem:[#allocation9 + $0x8] sm:$0xff]
        %v790 = vunpack.c.l.b16 %v774
        %v791 = vunpack.c.l.b16 %v775
        %v792 = vpack.c.b16 %v791, %v790
        %v795 = vunpack.c.l.b16 %v778
        %v796 = vunpack.c.l.b16 %v779
        %v797 = vpack.c.b16 %v796, %v795
        %vm798 = vcmask 64512
        %v800 = vsel %vm798, %v792, 0
        %v803 = vsel %vm798, %v797, 0
        %805 = vmatprep.subr.bf16.mxu0 0
        %806 = vmatpush1.bf16.xpose.msra.mxu0 0
        %807 = vmatprep.subr.bf16.mxu0 0
        %808 = vmatpush1.bf16.xpose.msra.mxu0 0
        %809 = vmatprep.subr.bf16.mxu0 0
        %810 = vmatpush1.bf16.xpose.msra.mxu0 0
        %811 = vmatprep.subr.bf16.mxu0 0
        %812 = vmatpush1.bf16.xpose.msra.mxu0 0
        %813 = vmatprep.subr.bf16.mxu0 0
        %814 = vmatpush1.bf16.xpose.msra.mxu0 0
        %815 = vmatprep.subr.bf16.mxu0 0
        %816 = vmatpush1.bf16.xpose.msra.mxu0 0
        %817 = vmatprep.subr.bf16.mxu0 0
        %818 = vmatpush1.bf16.xpose.msra.mxu0 0
        %819 = vmatprep.subr.bf16.mxu0 0
        %820 = vmatpush1.bf16.xpose.msra.mxu0 %v803
        %821 = vmatprep.subr.bf16.mxu0 0
        %822 = vmatpush2.bf16.xpose.msra.mxu0 0
        %823 = vmatprep.subr.bf16.mxu0 0
        %824 = vmatpush2.bf16.xpose.msra.mxu0 0
        %825 = vmatprep.subr.bf16.mxu0 0
        %826 = vmatpush2.bf16.xpose.msra.mxu0 0
        %827 = vmatprep.subr.bf16.mxu0 0
        %828 = vmatpush2.bf16.xpose.msra.mxu0 0
        %829 = vmatprep.subr.bf16.mxu0 0
        %830 = vmatpush2.bf16.xpose.msra.mxu0 0
        %831 = vmatprep.subr.bf16.mxu0 0
        %832 = vmatpush2.bf16.xpose.msra.mxu0 0
        %833 = vmatprep.subr.bf16.mxu0 0
        %834 = vmatpush2.bf16.xpose.msra.mxu0 0
        %835 = vmatprep.subr.bf16.mxu0 0
        %836 = vmatpush2.bf16.xpose.msra.mxu0 0
        %837 = vmatprep.mubr.bf16.mxu0 0
        %838 = vmatmul.mubr.bf16.gmra.mxu0 %v800
        %v839 = vpop.f32.mrf.mxu0
        %v840 = vadd.f32 %v786, %v839
        %v841 = vpop.f32.mrf.mxu0
        %v842 = vpop.f32.mrf.mxu0
        %v843 = vadd.f32 %v787, %v842
        %v844 = vpop.f32.mrf.mxu0
        %845 = vdwg.mxu0
        %v848 = vunpack.c.l.b16 %v776
        %v849 = vunpack.c.l.b16 %v777
        %v850 = vpack.c.b16 %v849, %v848
        %v853 = vunpack.c.l.b16 %v780
        %v854 = vunpack.c.l.b16 %v781
        %v855 = vpack.c.b16 %v854, %v853
        %v857 = vsel %vm798, %v850, 0
        %v860 = vsel %vm798, %v855, 0
        %862 = vmatprep.subr.bf16.mxu0 0
        %863 = vmatpush1.bf16.xpose.msra.mxu0 0
        %864 = vmatprep.subr.bf16.mxu0 0
        %865 = vmatpush1.bf16.xpose.msra.mxu0 0
        %866 = vmatprep.subr.bf16.mxu0 0
        %867 = vmatpush1.bf16.xpose.msra.mxu0 0
        %868 = vmatprep.subr.bf16.mxu0 0
        %869 = vmatpush1.bf16.xpose.msra.mxu0 0
        %870 = vmatprep.subr.bf16.mxu0 0
        %871 = vmatpush1.bf16.xpose.msra.mxu0 0
        %872 = vmatprep.subr.bf16.mxu0 0
        %873 = vmatpush1.bf16.xpose.msra.mxu0 0
        %874 = vmatprep.subr.bf16.mxu0 0
        %875 = vmatpush1.bf16.xpose.msra.mxu0 0
        %876 = vmatprep.subr.bf16.mxu0 0
        %877 = vmatpush1.bf16.xpose.msra.mxu0 %v860
        %878 = vmatprep.subr.bf16.mxu0 0
        %879 = vmatpush2.bf16.xpose.msra.mxu0 0
        %880 = vmatprep.subr.bf16.mxu0 0
        %881 = vmatpush2.bf16.xpose.msra.mxu0 0
        %882 = vmatprep.subr.bf16.mxu0 0
        %883 = vmatpush2.bf16.xpose.msra.mxu0 0
        %884 = vmatprep.subr.bf16.mxu0 0
        %885 = vmatpush2.bf16.xpose.msra.mxu0 0
        %886 = vmatprep.subr.bf16.mxu0 0
        %887 = vmatpush2.bf16.xpose.msra.mxu0 0
        %888 = vmatprep.subr.bf16.mxu0 0
        %889 = vmatpush2.bf16.xpose.msra.mxu0 0
        %890 = vmatprep.subr.bf16.mxu0 0
        %891 = vmatpush2.bf16.xpose.msra.mxu0 0
        %892 = vmatprep.subr.bf16.mxu0 0
        %893 = vmatpush2.bf16.xpose.msra.mxu0 0
        %894 = vmatprep.mubr.bf16.mxu0 0
        %895 = vmatmul.mubr.bf16.gmra.mxu0 %v857
        %v896 = vpop.f32.mrf.mxu0
        %v897 = vadd.f32 %v786, %v896
        %v898 = vpop.f32.mrf.mxu0
        %v899 = vpop.f32.mrf.mxu0
        %v900 = vadd.f32 %v787, %v899
        %v901 = vpop.f32.mrf.mxu0
        %902 = vdwg.mxu0
        %v903 = vld [vmem:[#allocation12] sm:$0xff]
        %v904 = vld [vmem:[#allocation12 + $0x8] sm:$0xff]
        %v905 = vld [vmem:[#allocation12 + $0x10] sm:$0xff]
        %v906 = vld [vmem:[#allocation12 + $0x18] sm:$0xff]
        %v907 = vadd.f32 %v840, %v903
        %v908 = vadd.f32 %v843, %v904
        %v909 = vadd.f32 %v897, %v905
        %v910 = vadd.f32 %v900, %v906
        %vm911 = vcmask 130048
        %v912 = vsel %vm911, %v907, -inf
        %913 = vmax.xlane.f32.xlu0 %v912
        %v914 = vpop.xlane.xlu0 %913
        %v915 = vsel %vm911, %v908, -inf
        %916 = vmax.xlane.f32.xlu0 %v915
        %v917 = vpop.xlane.xlu0 %916
        %v918 = vsel %vm911, %v909, -inf
        %919 = vmax.xlane.f32.xlu0 %v918
        %v920 = vpop.xlane.xlu0 %919
        %v921 = vsel %vm911, %v910, -inf
        %922 = vmax.xlane.f32.xlu0 %v921
        %v923 = vpop.xlane.xlu0 %922
        %v924 = vsub.f32 %v907, %v914
        %v925 = vsub.f32 %v908, %v917
        %v926 = vsub.f32 %v909, %v920
        %v927 = vsub.f32 %v910, %v923
        %v928 = vmul.f32 %v924, 1.442695
        %v929 = vpow.pop %v928
        %v930 = vmul.f32 %v925, 1.442695
        %v931 = vpow.pop %v930
        %v932 = vmul.f32 %v926, 1.442695
        %v933 = vpow.pop %v932
        %v934 = vmul.f32 %v927, 1.442695
        %v935 = vpow.pop %v934
        %v936 = vsel %vm911, %v929, 0.0
        %937 = vadd.xlane.f32.xlu0 %v936
        %v938 = vpop.xlane.xlu0 %937
        %v939 = vsel %vm911, %v931, 0.0
        %940 = vadd.xlane.f32.xlu0 %v939
        %v941 = vpop.xlane.xlu0 %940
        %v942 = vsel %vm911, %v933, 0.0
        %943 = vadd.xlane.f32.xlu0 %v942
        %v944 = vpop.xlane.xlu0 %943
        %v945 = vsel %vm911, %v935, 0.0
        %946 = vadd.xlane.f32.xlu0 %v945
        %v947 = vpop.xlane.xlu0 %946
        %v948 = vrcp.pop %v938
        %v949 = vrcp.pop %v941
        %v950 = vrcp.pop %v944
        %v951 = vrcp.pop %v947
        %v952 = vmul.f32 %v929, %v948
        %v953 = vmul.f32 %v931, %v949
        %v954 = vmul.f32 %v933, %v950
        %v955 = vmul.f32 %v935, %v951
        %v956 = vpack.c.bf16 %v953, %v952
        %v957 = vpack.c.bf16 %v955, %v954
        %v960 = vunpack.c.l.b16 %v782
        %v961 = vunpack.c.l.b16 %v783
        %v962 = vpack.c.b16 %v961, %v960
        %v965 = vsel %vm911, %v956, 0
        %967 = vmatprep.subr.bf16.mxu0 0
        %968 = vmatpush1.bf16.msra.mxu0 0
        %969 = vmatprep.subr.bf16.mxu0 0
        %970 = vmatpush1.bf16.msra.mxu0 0
        %971 = vmatprep.subr.bf16.mxu0 0
        %972 = vmatpush1.bf16.msra.mxu0 0
        %973 = vmatprep.subr.bf16.mxu0 0
        %974 = vmatpush1.bf16.msra.mxu0 0
        %975 = vmatprep.subr.bf16.mxu0 0
        %976 = vmatpush1.bf16.msra.mxu0 0
        %977 = vmatprep.subr.bf16.mxu0 0
        %978 = vmatpush1.bf16.msra.mxu0 0
        %979 = vmatprep.subr.bf16.mxu0 0
        %980 = vmatpush1.bf16.msra.mxu0 0
        %981 = vmatprep.subr.bf16.mxu0 0
        %982 = vmatpush1.bf16.msra.mxu0 %v962
        %983 = vmatprep.subr.bf16.mxu0 0
        %984 = vmatpush2.bf16.msra.mxu0 0
        %985 = vmatprep.subr.bf16.mxu0 0
        %986 = vmatpush2.bf16.msra.mxu0 0
        %987 = vmatprep.subr.bf16.mxu0 0
        %988 = vmatpush2.bf16.msra.mxu0 0
        %989 = vmatprep.subr.bf16.mxu0 0
        %990 = vmatpush2.bf16.msra.mxu0 0
        %991 = vmatprep.subr.bf16.mxu0 0
        %992 = vmatpush2.bf16.msra.mxu0 0
        %993 = vmatprep.subr.bf16.mxu0 0
        %994 = vmatpush2.bf16.msra.mxu0 0
        %995 = vmatprep.subr.bf16.mxu0 0
        %996 = vmatpush2.bf16.msra.mxu0 0
        %997 = vmatprep.subr.bf16.mxu0 0
        %998 = vmatpush2.bf16.msra.mxu0 0
        %999 = vmatprep.mubr.bf16.mxu0 0
        %1000 = vmatmul.mubr.bf16.gmra.mxu0 %v965
        %v1001 = vpop.f32.mrf.mxu0
        %v1002 = vadd.f32 0.0, %v1001
        %v1003 = vpop.f32.mrf.mxu0
        %v1004 = vpop.f32.mrf.mxu0
        %v1005 = vadd.f32 0.0, %v1004
        %v1006 = vpop.f32.mrf.mxu0
        %1007 = vdwg.mxu0
        %v1010 = vunpack.c.l.b16 %v784
        %v1011 = vunpack.c.l.b16 %v785
        %v1012 = vpack.c.b16 %v1011, %v1010
        %v1015 = vsel %vm911, %v957, 0
        %1017 = vmatprep.subr.bf16.mxu0 0
        %1018 = vmatpush1.bf16.msra.mxu0 0
        %1019 = vmatprep.subr.bf16.mxu0 0
        %1020 = vmatpush1.bf16.msra.mxu0 0
        %1021 = vmatprep.subr.bf16.mxu0 0
        %1022 = vmatpush1.bf16.msra.mxu0 0
        %1023 = vmatprep.subr.bf16.mxu0 0
        %1024 = vmatpush1.bf16.msra.mxu0 0
        %1025 = vmatprep.subr.bf16.mxu0 0
        %1026 = vmatpush1.bf16.msra.mxu0 0
        %1027 = vmatprep.subr.bf16.mxu0 0
        %1028 = vmatpush1.bf16.msra.mxu0 0
        %1029 = vmatprep.subr.bf16.mxu0 0
        %1030 = vmatpush1.bf16.msra.mxu0 0
        %1031 = vmatprep.subr.bf16.mxu0 0
        %1032 = vmatpush1.bf16.msra.mxu0 %v1012
        %1033 = vmatprep.subr.bf16.mxu0 0
        %1034 = vmatpush2.bf16.msra.mxu0 0
        %1035 = vmatprep.subr.bf16.mxu0 0
        %1036 = vmatpush2.bf16.msra.mxu0 0
        %1037 = vmatprep.subr.bf16.mxu0 0
        %1038 = vmatpush2.bf16.msra.mxu0 0
        %1039 = vmatprep.subr.bf16.mxu0 0
        %1040 = vmatpush2.bf16.msra.mxu0 0
        %1041 = vmatprep.subr.bf16.mxu0 0
        %1042 = vmatpush2.bf16.msra.mxu0 0
        %1043 = vmatprep.subr.bf16.mxu0 0
        %1044 = vmatpush2.bf16.msra.mxu0 0
        %1045 = vmatprep.subr.bf16.mxu0 0
        %1046 = vmatpush2.bf16.msra.mxu0 0
        %1047 = vmatprep.subr.bf16.mxu0 0
        %1048 = vmatpush2.bf16.msra.mxu0 0
        %1049 = vmatprep.mubr.bf16.mxu0 0
        %1050 = vmatmul.mubr.bf16.gmra.mxu0 %v1015
        %v1051 = vpop.f32.mrf.mxu0
        %v1052 = vadd.f32 0.0, %v1051
        %v1053 = vpop.f32.mrf.mxu0
        %v1054 = vpop.f32.mrf.mxu0
        %v1055 = vadd.f32 0.0, %v1054
        %v1056 = vpop.f32.mrf.mxu0
        %1057 = vdwg.mxu0
        %v1058 = vpack.c.bf16 %v1005, %v1002
        %v1059 = vpack.c.bf16 %v1055, %v1052
        %v1062 = vunpack.c.l.b16 %v1058
        %v1063 = vunpack.c.h.b16 %v1058
        %v1064 = vunpack.c.l.b16 %v1059
        %v1065 = vunpack.c.h.b16 %v1059
        %v1066 = vpack.c.b16 %v1062, %v1062
        %v1067 = vpack.c.b16 %v1063, %v1063
        %v1068 = vpack.c.b16 %v1064, %v1064
        %v1069 = vpack.c.b16 %v1065, %v1065
        %vm1074 = vcmask 60416
        %1075 = vst.msk [vmem:[#allocation3] sm:$0xf] %vm1074, %v1066
        %1076 = vst.msk [vmem:[#allocation3 + $0x4] sm:$0xf] %vm1074, %v1067
        %1077 = vst.msk [vmem:[#allocation3 + $0x8] sm:$0xf] %vm1074, %v1068
        %1078 = vst.msk [vmem:[#allocation3 + $0xc] sm:$0xf] %vm1074, %v1069
        %v1079 = vld [vmem:[#allocation2] sm:$0xf]
        %v1080 = vld [vmem:[#allocation2 + $0xc] sm:$0xf]
        %v1081 = vld [vmem:[#allocation2 + $0x18] sm:$0xf]
        %v1082 = vld [vmem:[#allocation2 + $0x24] sm:$0xf]
        %v1083 = vld [vmem:[#allocation2 + $0x4] sm:$0xf]
        %v1084 = vld [vmem:[#allocation2 + $0x10] sm:$0xf]
        %v1085 = vld [vmem:[#allocation2 + $0x1c] sm:$0xf]
        %v1086 = vld [vmem:[#allocation2 + $0x28] sm:$0xf]
        %v1087 = vld [vmem:[#allocation2 + $0x8] sm:$0xf]
        %v1088 = vld [vmem:[#allocation2 + $0x14] sm:$0xf]
        %v1089 = vld [vmem:[#allocation2 + $0x20] sm:$0xf]
        %v1090 = vld [vmem:[#allocation2 + $0x2c] sm:$0xf]
        %s1091 = scalar_lea.vmem [#allocation9], 16
        %v1092 = vld [vmem:[%s1091] sm:$0xff]
        %v1093 = vld [vmem:[%s1091 + $0x8] sm:$0xff]
        %v1096 = vunpack.c.l.b16 %v1079
        %v1097 = vunpack.c.l.b16 %v1080
        %v1098 = vpack.c.b16 %v1097, %v1096
        %1099 = vrot.lane.b32.xlu0 %v1098, 120
        %v1100 = vpop.permute.xlu0 %1099
        %v1103 = vunpack.c.l.b16 %v1083
        %v1104 = vunpack.c.l.b16 %v1084
        %v1105 = vpack.c.b16 %v1104, %v1103
        %1106 = vrot.lane.b32.xlu0 %v1105, 120
        %v1107 = vpop.permute.xlu0 %1106
        %v1109 = vsel %vm798, %v1100, 0
        %v1112 = vsel %vm798, %v1107, 0
        %1114 = vmatprep.subr.bf16.mxu0 0
        %1115 = vmatpush1.bf16.xpose.msra.mxu0 0
        %1116 = vmatprep.subr.bf16.mxu0 0
        %1117 = vmatpush1.bf16.xpose.msra.mxu0 0
        %1118 = vmatprep.subr.bf16.mxu0 0
        %1119 = vmatpush1.bf16.xpose.msra.mxu0 0
        %1120 = vmatprep.subr.bf16.mxu0 0
        %1121 = vmatpush1.bf16.xpose.msra.mxu0 0
        %1122 = vmatprep.subr.bf16.mxu0 0
        %1123 = vmatpush1.bf16.xpose.msra.mxu0 0
        %1124 = vmatprep.subr.bf16.mxu0 0
        %1125 = vmatpush1.bf16.xpose.msra.mxu0 0
        %1126 = vmatprep.subr.bf16.mxu0 0
        %1127 = vmatpush1.bf16.xpose.msra.mxu0 0
        %1128 = vmatprep.subr.bf16.mxu0 0
        %1129 = vmatpush1.bf16.xpose.msra.mxu0 %v1112
        %1130 = vmatprep.subr.bf16.mxu0 0
        %1131 = vmatpush2.bf16.xpose.msra.mxu0 0
        %1132 = vmatprep.subr.bf16.mxu0 0
        %1133 = vmatpush2.bf16.xpose.msra.mxu0 0
        %1134 = vmatprep.subr.bf16.mxu0 0
        %1135 = vmatpush2.bf16.xpose.msra.mxu0 0
        %1136 = vmatprep.subr.bf16.mxu0 0
        %1137 = vmatpush2.bf16.xpose.msra.mxu0 0
        %1138 = vmatprep.subr.bf16.mxu0 0
        %1139 = vmatpush2.bf16.xpose.msra.mxu0 0
        %1140 = vmatprep.subr.bf16.mxu0 0
        %1141 = vmatpush2.bf16.xpose.msra.mxu0 0
        %1142 = vmatprep.subr.bf16.mxu0 0
        %1143 = vmatpush2.bf16.xpose.msra.mxu0 0
        %1144 = vmatprep.subr.bf16.mxu0 0
        %1145 = vmatpush2.bf16.xpose.msra.mxu0 0
        %1146 = vmatprep.mubr.bf16.mxu0 0
        %1147 = vmatmul.mubr.bf16.gmra.mxu0 %v1109
        %v1148 = vpop.f32.mrf.mxu0
        %v1149 = vadd.f32 %v1092, %v1148
        %v1150 = vpop.f32.mrf.mxu0
        %v1151 = vpop.f32.mrf.mxu0
        %v1152 = vadd.f32 %v1093, %v1151
        %v1153 = vpop.f32.mrf.mxu0
        %1154 = vdwg.mxu0
        %v1157 = vunpack.c.l.b16 %v1081
        %v1158 = vunpack.c.l.b16 %v1082
        %v1159 = vpack.c.b16 %v1158, %v1157
        %1160 = vrot.lane.b32.xlu0 %v1159, 120
        %v1161 = vpop.permute.xlu0 %1160
        %v1164 = vunpack.c.l.b16 %v1085
        %v1165 = vunpack.c.l.b16 %v1086
        %v1166 = vpack.c.b16 %v1165, %v1164
        %1167 = vrot.lane.b32.xlu0 %v1166, 120
        %v1168 = vpop.permute.xlu0 %1167
        %v1170 = vsel %vm798, %v1161, 0
        %v1173 = vsel %vm798, %v1168, 0
        %1175 = vmatprep.subr.bf16.mxu0 0
        %1176 = vmatpush1.bf16.xpose.msra.mxu0 0
        %1177 = vmatprep.subr.bf16.mxu0 0
        %1178 = vmatpush1.bf16.xpose.msra.mxu0 0
        %1179 = vmatprep.subr.bf16.mxu0 0
        %1180 = vmatpush1.bf16.xpose.msra.mxu0 0
        %1181 = vmatprep.subr.bf16.mxu0 0
        %1182 = vmatpush1.bf16.xpose.msra.mxu0 0
        %1183 = vmatprep.subr.bf16.mxu0 0
        %1184 = vmatpush1.bf16.xpose.msra.mxu0 0
        %1185 = vmatprep.subr.bf16.mxu0 0
        %1186 = vmatpush1.bf16.xpose.msra.mxu0 0
        %1187 = vmatprep.subr.bf16.mxu0 0
        %1188 = vmatpush1.bf16.xpose.msra.mxu0 0
        %1189 = vmatprep.subr.bf16.mxu0 0
        %1190 = vmatpush1.bf16.xpose.msra.mxu0 %v1173
        %1191 = vmatprep.subr.bf16.mxu0 0
        %1192 = vmatpush2.bf16.xpose.msra.mxu0 0
        %1193 = vmatprep.subr.bf16.mxu0 0
        %1194 = vmatpush2.bf16.xpose.msra.mxu0 0
        %1195 = vmatprep.subr.bf16.mxu0 0
        %1196 = vmatpush2.bf16.xpose.msra.mxu0 0
        %1197 = vmatprep.subr.bf16.mxu0 0
        %1198 = vmatpush2.bf16.xpose.msra.mxu0 0
        %1199 = vmatprep.subr.bf16.mxu0 0
        %1200 = vmatpush2.bf16.xpose.msra.mxu0 0
        %1201 = vmatprep.subr.bf16.mxu0 0
        %1202 = vmatpush2.bf16.xpose.msra.mxu0 0
        %1203 = vmatprep.subr.bf16.mxu0 0
        %1204 = vmatpush2.bf16.xpose.msra.mxu0 0
        %1205 = vmatprep.subr.bf16.mxu0 0
        %1206 = vmatpush2.bf16.xpose.msra.mxu0 0
        %1207 = vmatprep.mubr.bf16.mxu0 0
        %1208 = vmatmul.mubr.bf16.gmra.mxu0 %v1170
        %v1209 = vpop.f32.mrf.mxu0
        %v1210 = vadd.f32 %v1092, %v1209
        %v1211 = vpop.f32.mrf.mxu0
        %v1212 = vpop.f32.mrf.mxu0
        %v1213 = vadd.f32 %v1093, %v1212
        %v1214 = vpop.f32.mrf.mxu0
        %1215 = vdwg.mxu0
        %v1216 = vld [vmem:[#allocation12] sm:$0xff]
        %v1217 = vld [vmem:[#allocation12 + $0x8] sm:$0xff]
        %v1218 = vld [vmem:[#allocation12 + $0x10] sm:$0xff]
        %v1219 = vld [vmem:[#allocation12 + $0x18] sm:$0xff]
        %v1220 = vadd.f32 %v1149, %v1216
        %v1221 = vadd.f32 %v1152, %v1217
        %v1222 = vadd.f32 %v1210, %v1218
        %v1223 = vadd.f32 %v1213, %v1219
        %v1224 = vsel %vm911, %v1220, -inf
        %1225 = vmax.xlane.f32.xlu0 %v1224
        %v1226 = vpop.xlane.xlu0 %1225
        %v1227 = vsel %vm911, %v1221, -inf
        %1228 = vmax.xlane.f32.xlu0 %v1227
        %v1229 = vpop.xlane.xlu0 %1228
        %v1230 = vsel %vm911, %v1222, -inf
        %1231 = vmax.xlane.f32.xlu0 %v1230
        %v1232 = vpop.xlane.xlu0 %1231
        %v1233 = vsel %vm911, %v1223, -inf
        %1234 = vmax.xlane.f32.xlu0 %v1233
        %v1235 = vpop.xlane.xlu0 %1234
        %v1236 = vsub.f32 %v1220, %v1226
        %v1237 = vsub.f32 %v1221, %v1229
        %v1238 = vsub.f32 %v1222, %v1232
        %v1239 = vsub.f32 %v1223, %v1235
        %v1240 = vmul.f32 %v1236, 1.442695
        %v1241 = vpow.pop %v1240
        %v1242 = vmul.f32 %v1237, 1.442695
        %v1243 = vpow.pop %v1242
        %v1244 = vmul.f32 %v1238, 1.442695
        %v1245 = vpow.pop %v1244
        %v1246 = vmul.f32 %v1239, 1.442695
        %v1247 = vpow.pop %v1246
        %v1248 = vsel %vm911, %v1241, 0.0
        %1249 = vadd.xlane.f32.xlu0 %v1248
        %v1250 = vpop.xlane.xlu0 %1249
        %v1251 = vsel %vm911, %v1243, 0.0
        %1252 = vadd.xlane.f32.xlu0 %v1251
        %v1253 = vpop.xlane.xlu0 %1252
        %v1254 = vsel %vm911, %v1245, 0.0
        %1255 = vadd.xlane.f32.xlu0 %v1254
        %v1256 = vpop.xlane.xlu0 %1255
        %v1257 = vsel %vm911, %v1247, 0.0
        %1258 = vadd.xlane.f32.xlu0 %v1257
        %v1259 = vpop.xlane.xlu0 %1258
        %v1260 = vrcp.pop %v1250
        %v1261 = vrcp.pop %v1253
        %v1262 = vrcp.pop %v1256
        %v1263 = vrcp.pop %v1259
        %v1264 = vmul.f32 %v1241, %v1260
        %v1265 = vmul.f32 %v1243, %v1261
        %v1266 = vmul.f32 %v1245, %v1262
        %v1267 = vmul.f32 %v1247, %v1263
        %v1268 = vpack.c.bf16 %v1265, %v1264
        %v1269 = vpack.c.bf16 %v1267, %v1266
        %v1272 = vunpack.c.l.b16 %v1087
        %v1273 = vunpack.c.l.b16 %v1088
        %v1274 = vpack.c.b16 %v1273, %v1272
        %1275 = vrot.lane.b32.xlu0 %v1274, 120
        %v1276 = vpop.permute.xlu0 %1275
        %v1279 = vsel %vm911, %v1268, 0
        %1281 = vmatprep.subr.bf16.mxu0 0
        %1282 = vmatpush1.bf16.msra.mxu0 0
        %1283 = vmatprep.subr.bf16.mxu0 0
        %1284 = vmatpush1.bf16.msra.mxu0 0
        %1285 = vmatprep.subr.bf16.mxu0 0
        %1286 = vmatpush1.bf16.msra.mxu0 0
        %1287 = vmatprep.subr.bf16.mxu0 0
        %1288 = vmatpush1.bf16.msra.mxu0 0
        %1289 = vmatprep.subr.bf16.mxu0 0
        %1290 = vmatpush1.bf16.msra.mxu0 0
        %1291 = vmatprep.subr.bf16.mxu0 0
        %1292 = vmatpush1.bf16.msra.mxu0 0
        %1293 = vmatprep.subr.bf16.mxu0 0
        %1294 = vmatpush1.bf16.msra.mxu0 0
        %1295 = vmatprep.subr.bf16.mxu0 0
        %1296 = vmatpush1.bf16.msra.mxu0 %v1276
        %1297 = vmatprep.subr.bf16.mxu0 0
        %1298 = vmatpush2.bf16.msra.mxu0 0
        %1299 = vmatprep.subr.bf16.mxu0 0
        %1300 = vmatpush2.bf16.msra.mxu0 0
        %1301 = vmatprep.subr.bf16.mxu0 0
        %1302 = vmatpush2.bf16.msra.mxu0 0
        %1303 = vmatprep.subr.bf16.mxu0 0
        %1304 = vmatpush2.bf16.msra.mxu0 0
        %1305 = vmatprep.subr.bf16.mxu0 0
        %1306 = vmatpush2.bf16.msra.mxu0 0
        %1307 = vmatprep.subr.bf16.mxu0 0
        %1308 = vmatpush2.bf16.msra.mxu0 0
        %1309 = vmatprep.subr.bf16.mxu0 0
        %1310 = vmatpush2.bf16.msra.mxu0 0
        %1311 = vmatprep.subr.bf16.mxu0 0
        %1312 = vmatpush2.bf16.msra.mxu0 0
        %1313 = vmatprep.mubr.bf16.mxu0 0
        %1314 = vmatmul.mubr.bf16.gmra.mxu0 %v1279
        %v1315 = vpop.f32.mrf.mxu0
        %v1316 = vadd.f32 0.0, %v1315
        %v1317 = vpop.f32.mrf.mxu0
        %v1318 = vpop.f32.mrf.mxu0
        %v1319 = vadd.f32 0.0, %v1318
        %v1320 = vpop.f32.mrf.mxu0
        %1321 = vdwg.mxu0
        %v1324 = vunpack.c.l.b16 %v1089
        %v1325 = vunpack.c.l.b16 %v1090
        %v1326 = vpack.c.b16 %v1325, %v1324
        %1327 = vrot.lane.b32.xlu0 %v1326, 120
        %v1328 = vpop.permute.xlu0 %1327
        %v1331 = vsel %vm911, %v1269, 0
        %1333 = vmatprep.subr.bf16.mxu0 0
        %1334 = vmatpush1.bf16.msra.mxu0 0
        %1335 = vmatprep.subr.bf16.mxu0 0
        %1336 = vmatpush1.bf16.msra.mxu0 0
        %1337 = vmatprep.subr.bf16.mxu0 0
        %1338 = vmatpush1.bf16.msra.mxu0 0
        %1339 = vmatprep.subr.bf16.mxu0 0
        %1340 = vmatpush1.bf16.msra.mxu0 0
        %1341 = vmatprep.subr.bf16.mxu0 0
        %1342 = vmatpush1.bf16.msra.mxu0 0
        %1343 = vmatprep.subr.bf16.mxu0 0
        %1344 = vmatpush1.bf16.msra.mxu0 0
        %1345 = vmatprep.subr.bf16.mxu0 0
        %1346 = vmatpush1.bf16.msra.mxu0 0
        %1347 = vmatprep.subr.bf16.mxu0 0
        %1348 = vmatpush1.bf16.msra.mxu0 %v1328
        %1349 = vmatprep.subr.bf16.mxu0 0
        %1350 = vmatpush2.bf16.msra.mxu0 0
        %1351 = vmatprep.subr.bf16.mxu0 0
        %1352 = vmatpush2.bf16.msra.mxu0 0
        %1353 = vmatprep.subr.bf16.mxu0 0
        %1354 = vmatpush2.bf16.msra.mxu0 0
        %1355 = vmatprep.subr.bf16.mxu0 0
        %1356 = vmatpush2.bf16.msra.mxu0 0
        %1357 = vmatprep.subr.bf16.mxu0 0
        %1358 = vmatpush2.bf16.msra.mxu0 0
        %1359 = vmatprep.subr.bf16.mxu0 0
        %1360 = vmatpush2.bf16.msra.mxu0 0
        %1361 = vmatprep.subr.bf16.mxu0 0
        %1362 = vmatpush2.bf16.msra.mxu0 0
        %1363 = vmatprep.subr.bf16.mxu0 0
        %1364 = vmatpush2.bf16.msra.mxu0 0
        %1365 = vmatprep.mubr.bf16.mxu0 0
        %1366 = vmatmul.mubr.bf16.gmra.mxu0 %v1331
        %v1367 = vpop.f32.mrf.mxu0
        %v1368 = vadd.f32 0.0, %v1367
        %v1369 = vpop.f32.mrf.mxu0
        %v1370 = vpop.f32.mrf.mxu0
        %v1371 = vadd.f32 0.0, %v1370
        %v1372 = vpop.f32.mrf.mxu0
        %1373 = vdwg.mxu0
        %v1374 = vpack.c.bf16 %v1319, %v1316
        %v1375 = vpack.c.bf16 %v1371, %v1368
        %v1378 = vunpack.c.l.b16 %v1374
        %v1379 = vunpack.c.h.b16 %v1374
        %v1380 = vunpack.c.l.b16 %v1375
        %v1381 = vunpack.c.h.b16 %v1375
        %v1382 = vpack.c.b16 %v1378, %v1378
        %v1383 = vpack.c.b16 %v1379, %v1379
        %v1384 = vpack.c.b16 %v1380, %v1380
        %v1385 = vpack.c.b16 %v1381, %v1381
        %1386 = vrot.lane.b32.xlu0 %v1382, 8
        %v1387 = vpop.permute.xlu0 %1386
        %1388 = vrot.lane.b32.xlu0 %v1383, 8
        %v1389 = vpop.permute.xlu0 %1388
        %1390 = vrot.lane.b32.xlu0 %v1384, 8
        %v1391 = vpop.permute.xlu0 %1390
        %1392 = vrot.lane.b32.xlu0 %v1385, 8
        %v1393 = vpop.permute.xlu0 %1392
        %vm1398 = vcmask 126016
        %1399 = vst.msk [vmem:[#allocation3] sm:$0xf] %vm1398, %v1387
        %1400 = vst.msk [vmem:[#allocation3 + $0x4] sm:$0xf] %vm1398, %v1389
        %1401 = vst.msk [vmem:[#allocation3 + $0x8] sm:$0xf] %vm1398, %v1391
        %1402 = vst.msk [vmem:[#allocation3 + $0xc] sm:$0xf] %vm1398, %v1393
        %v1403 = vld [vmem:[#allocation2] sm:$0xf]
        %v1404 = vld [vmem:[#allocation2 + $0xc] sm:$0xf]
        %v1405 = vld [vmem:[#allocation2 + $0x18] sm:$0xf]
        %v1406 = vld [vmem:[#allocation2 + $0x24] sm:$0xf]
        %v1407 = vld [vmem:[#allocation2 + $0x4] sm:$0xf]
        %v1408 = vld [vmem:[#allocation2 + $0x10] sm:$0xf]
        %v1409 = vld [vmem:[#allocation2 + $0x1c] sm:$0xf]
        %v1410 = vld [vmem:[#allocation2 + $0x28] sm:$0xf]
        %v1411 = vld [vmem:[#allocation2 + $0x8] sm:$0xf]
        %v1412 = vld [vmem:[#allocation2 + $0x14] sm:$0xf]
        %v1413 = vld [vmem:[#allocation2 + $0x20] sm:$0xf]
        %v1414 = vld [vmem:[#allocation2 + $0x2c] sm:$0xf]
        %s1415 = scalar_lea.vmem [#allocation9], 32
        %v1416 = vld [vmem:[%s1415] sm:$0xff]
        %v1417 = vld [vmem:[%s1415 + $0x8] sm:$0xff]
        %v1420 = vunpack.c.l.b16 %v1403
        %v1421 = vunpack.c.l.b16 %v1404
        %v1422 = vpack.c.b16 %v1421, %v1420
        %1423 = vrot.lane.b32.xlu0 %v1422, 112
        %v1424 = vpop.permute.xlu0 %1423
        %v1427 = vunpack.c.l.b16 %v1407
        %v1428 = vunpack.c.l.b16 %v1408
        %v1429 = vpack.c.b16 %v1428, %v1427
        %1430 = vrot.lane.b32.xlu0 %v1429, 112
        %v1431 = vpop.permute.xlu0 %1430
        %v1433 = vsel %vm798, %v1424, 0
        %v1436 = vsel %vm798, %v1431, 0
        %1438 = vmatprep.subr.bf16.mxu0 0
        %1439 = vmatpush1.bf16.xpose.msra.mxu0 0
        %1440 = vmatprep.subr.bf16.mxu0 0
        %1441 = vmatpush1.bf16.xpose.msra.mxu0 0
        %1442 = vmatprep.subr.bf16.mxu0 0
        %1443 = vmatpush1.bf16.xpose.msra.mxu0 0
        %1444 = vmatprep.subr.bf16.mxu0 0
        %1445 = vmatpush1.bf16.xpose.msra.mxu0 0
        %1446 = vmatprep.subr.bf16.mxu0 0
        %1447 = vmatpush1.bf16.xpose.msra.mxu0 0
        %1448 = vmatprep.subr.bf16.mxu0 0
        %1449 = vmatpush1.bf16.xpose.msra.mxu0 0
        %1450 = vmatprep.subr.bf16.mxu0 0
        %1451 = vmatpush1.bf16.xpose.msra.mxu0 0
        %1452 = vmatprep.subr.bf16.mxu0 0
        %1453 = vmatpush1.bf16.xpose.msra.mxu0 %v1436
        %1454 = vmatprep.subr.bf16.mxu0 0
        %1455 = vmatpush2.bf16.xpose.msra.mxu0 0
        %1456 = vmatprep.subr.bf16.mxu0 0
        %1457 = vmatpush2.bf16.xpose.msra.mxu0 0
        %1458 = vmatprep.subr.bf16.mxu0 0
        %1459 = vmatpush2.bf16.xpose.msra.mxu0 0
        %1460 = vmatprep.subr.bf16.mxu0 0
        %1461 = vmatpush2.bf16.xpose.msra.mxu0 0
        %1462 = vmatprep.subr.bf16.mxu0 0
        %1463 = vmatpush2.bf16.xpose.msra.mxu0 0
        %1464 = vmatprep.subr.bf16.mxu0 0
        %1465 = vmatpush2.bf16.xpose.msra.mxu0 0
        %1466 = vmatprep.subr.bf16.mxu0 0
        %1467 = vmatpush2.bf16.xpose.msra.mxu0 0
        %1468 = vmatprep.subr.bf16.mxu0 0
        %1469 = vmatpush2.bf16.xpose.msra.mxu0 0
        %1470 = vmatprep.mubr.bf16.mxu0 0
        %1471 = vmatmul.mubr.bf16.gmra.mxu0 %v1433
        %v1472 = vpop.f32.mrf.mxu0
        %v1473 = vadd.f32 %v1416, %v1472
        %v1474 = vpop.f32.mrf.mxu0
        %v1475 = vpop.f32.mrf.mxu0
        %v1476 = vadd.f32 %v1417, %v1475
        %v1477 = vpop.f32.mrf.mxu0
        %1478 = vdwg.mxu0
        %v1481 = vunpack.c.l.b16 %v1405
        %v1482 = vunpack.c.l.b16 %v1406
        %v1483 = vpack.c.b16 %v1482, %v1481
        %1484 = vrot.lane.b32.xlu0 %v1483, 112
        %v1485 = vpop.permute.xlu0 %1484
        %v1488 = vunpack.c.l.b16 %v1409
        %v1489 = vunpack.c.l.b16 %v1410
        %v1490 = vpack.c.b16 %v1489, %v1488
        %1491 = vrot.lane.b32.xlu0 %v1490, 112
        %v1492 = vpop.permute.xlu0 %1491
        %v1494 = vsel %vm798, %v1485, 0
        %v1497 = vsel %vm798, %v1492, 0
        %1499 = vmatprep.subr.bf16.mxu0 0
        %1500 = vmatpush1.bf16.xpose.msra.mxu0 0
        %1501 = vmatprep.subr.bf16.mxu0 0
        %1502 = vmatpush1.bf16.xpose.msra.mxu0 0
        %1503 = vmatprep.subr.bf16.mxu0 0
        %1504 = vmatpush1.bf16.xpose.msra.mxu0 0
        %1505 = vmatprep.subr.bf16.mxu0 0
        %1506 = vmatpush1.bf16.xpose.msra.mxu0 0
        %1507 = vmatprep.subr.bf16.mxu0 0
        %1508 = vmatpush1.bf16.xpose.msra.mxu0 0
        %1509 = vmatprep.subr.bf16.mxu0 0
        %1510 = vmatpush1.bf16.xpose.msra.mxu0 0
        %1511 = vmatprep.subr.bf16.mxu0 0
        %1512 = vmatpush1.bf16.xpose.msra.mxu0 0
        %1513 = vmatprep.subr.bf16.mxu0 0
        %1514 = vmatpush1.bf16.xpose.msra.mxu0 %v1497
        %1515 = vmatprep.subr.bf16.mxu0 0
        %1516 = vmatpush2.bf16.xpose.msra.mxu0 0
        %1517 = vmatprep.subr.bf16.mxu0 0
        %1518 = vmatpush2.bf16.xpose.msra.mxu0 0
        %1519 = vmatprep.subr.bf16.mxu0 0
        %1520 = vmatpush2.bf16.xpose.msra.mxu0 0
        %1521 = vmatprep.subr.bf16.mxu0 0
        %1522 = vmatpush2.bf16.xpose.msra.mxu0 0
        %1523 = vmatprep.subr.bf16.mxu0 0
        %1524 = vmatpush2.bf16.xpose.msra.mxu0 0
        %1525 = vmatprep.subr.bf16.mxu0 0
        %1526 = vmatpush2.bf16.xpose.msra.mxu0 0
        %1527 = vmatprep.subr.bf16.mxu0 0
        %1528 = vmatpush2.bf16.xpose.msra.mxu0 0
        %1529 = vmatprep.subr.bf16.mxu0 0
        %1530 = vmatpush2.bf16.xpose.msra.mxu0 0
        %1531 = vmatprep.mubr.bf16.mxu0 0
        %1532 = vmatmul.mubr.bf16.gmra.mxu0 %v1494
        %v1533 = vpop.f32.mrf.mxu0
        %v1534 = vadd.f32 %v1416, %v1533
        %v1535 = vpop.f32.mrf.mxu0
        %v1536 = vpop.f32.mrf.mxu0
        %v1537 = vadd.f32 %v1417, %v1536
        %v1538 = vpop.f32.mrf.mxu0
        %1539 = vdwg.mxu0
        %v1540 = vld [vmem:[#allocation12] sm:$0xff]
        %v1541 = vld [vmem:[#allocation12 + $0x8] sm:$0xff]
        %v1542 = vld [vmem:[#allocation12 + $0x10] sm:$0xff]
        %v1543 = vld [vmem:[#allocation12 + $0x18] sm:$0xff]
        %v1544 = vadd.f32 %v1473, %v1540
        %v1545 = vadd.f32 %v1476, %v1541
        %v1546 = vadd.f32 %v1534, %v1542
        %v1547 = vadd.f32 %v1537, %v1543
        %v1548 = vsel %vm911, %v1544, -inf
        %1549 = vmax.xlane.f32.xlu0 %v1548
        %v1550 = vpop.xlane.xlu0 %1549
        %v1551 = vsel %vm911, %v1545, -inf
        %1552 = vmax.xlane.f32.xlu0 %v1551
        %v1553 = vpop.xlane.xlu0 %1552
        %v1554 = vsel %vm911, %v1546, -inf
        %1555 = vmax.xlane.f32.xlu0 %v1554
        %v1556 = vpop.xlane.xlu0 %1555
        %v1557 = vsel %vm911, %v1547, -inf
        %1558 = vmax.xlane.f32.xlu0 %v1557
        %v1559 = vpop.xlane.xlu0 %1558
        %v1560 = vsub.f32 %v1544, %v1550
        %v1561 = vsub.f32 %v1545, %v1553
        %v1562 = vsub.f32 %v1546, %v1556
        %v1563 = vsub.f32 %v1547, %v1559
        %v1564 = vmul.f32 %v1560, 1.442695
        %v1565 = vpow.pop %v1564
        %v1566 = vmul.f32 %v1561, 1.442695
        %v1567 = vpow.pop %v1566
        %v1568 = vmul.f32 %v1562, 1.442695
        %v1569 = vpow.pop %v1568
        %v1570 = vmul.f32 %v1563, 1.442695
        %v1571 = vpow.pop %v1570
        %v1572 = vsel %vm911, %v1565, 0.0
        %1573 = vadd.xlane.f32.xlu0 %v1572
        %v1574 = vpop.xlane.xlu0 %1573
        %v1575 = vsel %vm911, %v1567, 0.0
        %1576 = vadd.xlane.f32.xlu0 %v1575
        %v1577 = vpop.xlane.xlu0 %1576
        %v1578 = vsel %vm911, %v1569, 0.0
        %1579 = vadd.xlane.f32.xlu0 %v1578
        %v1580 = vpop.xlane.xlu0 %1579
        %v1581 = vsel %vm911, %v1571, 0.0
        %1582 = vadd.xlane.f32.xlu0 %v1581
        %v1583 = vpop.xlane.xlu0 %1582
        %v1584 = vrcp.pop %v1574
        %v1585 = vrcp.pop %v1577
        %v1586 = vrcp.pop %v1580
        %v1587 = vrcp.pop %v1583
        %v1588 = vmul.f32 %v1565, %v1584
        %v1589 = vmul.f32 %v1567, %v1585
        %v1590 = vmul.f32 %v1569, %v1586
        %v1591 = vmul.f32 %v1571, %v1587
        %v1592 = vpack.c.bf16 %v1589, %v1588
        %v1593 = vpack.c.bf16 %v1591, %v1590
        %v1596 = vunpack.c.l.b16 %v1411
        %v1597 = vunpack.c.l.b16 %v1412
        %v1598 = vpack.c.b16 %v1597, %v1596
        %1599 = vrot.lane.b32.xlu0 %v1598, 112
        %v1600 = vpop.permute.xlu0 %1599
        %v1603 = vsel %vm911, %v1592, 0
        %1605 = vmatprep.subr.bf16.mxu0 0
        %1606 = vmatpush1.bf16.msra.mxu0 0
        %1607 = vmatprep.subr.bf16.mxu0 0
        %1608 = vmatpush1.bf16.msra.mxu0 0
        %1609 = vmatprep.subr.bf16.mxu0 0
        %1610 = vmatpush1.bf16.msra.mxu0 0
        %1611 = vmatprep.subr.bf16.mxu0 0
        %1612 = vmatpush1.bf16.msra.mxu0 0
        %1613 = vmatprep.subr.bf16.mxu0 0
        %1614 = vmatpush1.bf16.msra.mxu0 0
        %1615 = vmatprep.subr.bf16.mxu0 0
        %1616 = vmatpush1.bf16.msra.mxu0 0
        %1617 = vmatprep.subr.bf16.mxu0 0
        %1618 = vmatpush1.bf16.msra.mxu0 0
        %1619 = vmatprep.subr.bf16.mxu0 0
        %1620 = vmatpush1.bf16.msra.mxu0 %v1600
        %1621 = vmatprep.subr.bf16.mxu0 0
        %1622 = vmatpush2.bf16.msra.mxu0 0
        %1623 = vmatprep.subr.bf16.mxu0 0
        %1624 = vmatpush2.bf16.msra.mxu0 0
        %1625 = vmatprep.subr.bf16.mxu0 0
        %1626 = vmatpush2.bf16.msra.mxu0 0
        %1627 = vmatprep.subr.bf16.mxu0 0
        %1628 = vmatpush2.bf16.msra.mxu0 0
        %1629 = vmatprep.subr.bf16.mxu0 0
        %1630 = vmatpush2.bf16.msra.mxu0 0
        %1631 = vmatprep.subr.bf16.mxu0 0
        %1632 = vmatpush2.bf16.msra.mxu0 0
        %1633 = vmatprep.subr.bf16.mxu0 0
        %1634 = vmatpush2.bf16.msra.mxu0 0
        %1635 = vmatprep.subr.bf16.mxu0 0
        %1636 = vmatpush2.bf16.msra.mxu0 0
        %1637 = vmatprep.mubr.bf16.mxu0 0
        %1638 = vmatmul.mubr.bf16.gmra.mxu0 %v1603
        %v1639 = vpop.f32.mrf.mxu0
        %v1640 = vadd.f32 0.0, %v1639
        %v1641 = vpop.f32.mrf.mxu0
        %v1642 = vpop.f32.mrf.mxu0
        %v1643 = vadd.f32 0.0, %v1642
        %v1644 = vpop.f32.mrf.mxu0
        %1645 = vdwg.mxu0
        %v1648 = vunpack.c.l.b16 %v1413
        %v1649 = vunpack.c.l.b16 %v1414
        %v1650 = vpack.c.b16 %v1649, %v1648
        %1651 = vrot.lane.b32.xlu0 %v1650, 112
        %v1652 = vpop.permute.xlu0 %1651
        %v1655 = vsel %vm911, %v1593, 0
        %1657 = vmatprep.subr.bf16.mxu0 0
        %1658 = vmatpush1.bf16.msra.mxu0 0
        %1659 = vmatprep.subr.bf16.mxu0 0
        %1660 = vmatpush1.bf16.msra.mxu0 0
        %1661 = vmatprep.subr.bf16.mxu0 0
        %1662 = vmatpush1.bf16.msra.mxu0 0
        %1663 = vmatprep.subr.bf16.mxu0 0
        %1664 = vmatpush1.bf16.msra.mxu0 0
        %1665 = vmatprep.subr.bf16.mxu0 0
        %1666 = vmatpush1.bf16.msra.mxu0 0
        %1667 = vmatprep.subr.bf16.mxu0 0
        %1668 = vmatpush1.bf16.msra.mxu0 0
        %1669 = vmatprep.subr.bf16.mxu0 0
        %1670 = vmatpush1.bf16.msra.mxu0 0
        %1671 = vmatprep.subr.bf16.mxu0 0
        %1672 = vmatpush1.bf16.msra.mxu0 %v1652
        %1673 = vmatprep.subr.bf16.mxu0 0
        %1674 = vmatpush2.bf16.msra.mxu0 0
        %1675 = vmatprep.subr.bf16.mxu0 0
        %1676 = vmatpush2.bf16.msra.mxu0 0
        %1677 = vmatprep.subr.bf16.mxu0 0
        %1678 = vmatpush2.bf16.msra.mxu0 0
        %1679 = vmatprep.subr.bf16.mxu0 0
        %1680 = vmatpush2.bf16.msra.mxu0 0
        %1681 = vmatprep.subr.bf16.mxu0 0
        %1682 = vmatpush2.bf16.msra.mxu0 0
        %1683 = vmatprep.subr.bf16.mxu0 0
        %1684 = vmatpush2.bf16.msra.mxu0 0
        %1685 = vmatprep.subr.bf16.mxu0 0
        %1686 = vmatpush2.bf16.msra.mxu0 0
        %1687 = vmatprep.subr.bf16.mxu0 0
        %1688 = vmatpush2.bf16.msra.mxu0 0
        %1689 = vmatprep.mubr.bf16.mxu0 0
        %1690 = vmatmul.mubr.bf16.gmra.mxu0 %v1655
        %v1691 = vpop.f32.mrf.mxu0
        %v1692 = vadd.f32 0.0, %v1691
        %v1693 = vpop.f32.mrf.mxu0
        %v1694 = vpop.f32.mrf.mxu0
        %v1695 = vadd.f32 0.0, %v1694
        %v1696 = vpop.f32.mrf.mxu0
        %1697 = vdwg.mxu0
        %v1698 = vpack.c.bf16 %v1643, %v1640
        %v1699 = vpack.c.bf16 %v1695, %v1692
        %v1702 = vunpack.c.l.b16 %v1698
        %v1703 = vunpack.c.h.b16 %v1698
        %v1704 = vunpack.c.l.b16 %v1699
        %v1705 = vunpack.c.h.b16 %v1699
        %v1706 = vpack.c.b16 %v1702, %v1702
        %v1707 = vpack.c.b16 %v1703, %v1703
        %v1708 = vpack.c.b16 %v1704, %v1704
        %v1709 = vpack.c.b16 %v1705, %v1705
        %1710 = vrot.lane.b32.xlu0 %v1706, 16
        %v1711 = vpop.permute.xlu0 %1710
        %1712 = vrot.lane.b32.xlu0 %v1707, 16
        %v1713 = vpop.permute.xlu0 %1712
        %1714 = vrot.lane.b32.xlu0 %v1708, 16
        %v1715 = vpop.permute.xlu0 %1714
        %1716 = vrot.lane.b32.xlu0 %v1709, 16
        %v1717 = vpop.permute.xlu0 %1716
        %vm1722 = vcmask 191616
        %1723 = vst.msk [vmem:[#allocation3] sm:$0xf] %vm1722, %v1711
        %1724 = vst.msk [vmem:[#allocation3 + $0x4] sm:$0xf] %vm1722, %v1713
        %1725 = vst.msk [vmem:[#allocation3 + $0x8] sm:$0xf] %vm1722, %v1715
        %1726 = vst.msk [vmem:[#allocation3 + $0xc] sm:$0xf] %vm1722, %v1717
        %v1727 = vld [vmem:[#allocation2] sm:$0xf]
        %v1728 = vld [vmem:[#allocation2 + $0xc] sm:$0xf]
        %v1729 = vld [vmem:[#allocation2 + $0x18] sm:$0xf]
        %v1730 = vld [vmem:[#allocation2 + $0x24] sm:$0xf]
        %v1731 = vld [vmem:[#allocation2 + $0x4] sm:$0xf]
        %v1732 = vld [vmem:[#allocation2 + $0x10] sm:$0xf]
        %v1733 = vld [vmem:[#allocation2 + $0x1c] sm:$0xf]
        %v1734 = vld [vmem:[#allocation2 + $0x28] sm:$0xf]
        %v1735 = vld [vmem:[#allocation2 + $0x8] sm:$0xf]
        %v1736 = vld [vmem:[#allocation2 + $0x14] sm:$0xf]
        %v1737 = vld [vmem:[#allocation2 + $0x20] sm:$0xf]
        %v1738 = vld [vmem:[#allocation2 + $0x2c] sm:$0xf]
        %s1739 = scalar_lea.vmem [#allocation9], 48
        %v1740 = vld [vmem:[%s1739] sm:$0xff]
        %v1741 = vld [vmem:[%s1739 + $0x8] sm:$0xff]
        %v1744 = vunpack.c.l.b16 %v1727
        %v1745 = vunpack.c.l.b16 %v1728
        %v1746 = vpack.c.b16 %v1745, %v1744
        %1747 = vrot.lane.b32.xlu0 %v1746, 104
        %v1748 = vpop.permute.xlu0 %1747
        %v1751 = vunpack.c.l.b16 %v1731
        %v1752 = vunpack.c.l.b16 %v1732
        %v1753 = vpack.c.b16 %v1752, %v1751
        %1754 = vrot.lane.b32.xlu0 %v1753, 104
        %v1755 = vpop.permute.xlu0 %1754
        %v1757 = vsel %vm798, %v1748, 0
        %v1760 = vsel %vm798, %v1755, 0
        %1762 = vmatprep.subr.bf16.mxu0 0
        %1763 = vmatpush1.bf16.xpose.msra.mxu0 0
        %1764 = vmatprep.subr.bf16.mxu0 0
        %1765 = vmatpush1.bf16.xpose.msra.mxu0 0
        %1766 = vmatprep.subr.bf16.mxu0 0
        %1767 = vmatpush1.bf16.xpose.msra.mxu0 0
        %1768 = vmatprep.subr.bf16.mxu0 0
        %1769 = vmatpush1.bf16.xpose.msra.mxu0 0
        %1770 = vmatprep.subr.bf16.mxu0 0
        %1771 = vmatpush1.bf16.xpose.msra.mxu0 0
        %1772 = vmatprep.subr.bf16.mxu0 0
        %1773 = vmatpush1.bf16.xpose.msra.mxu0 0
        %1774 = vmatprep.subr.bf16.mxu0 0
        %1775 = vmatpush1.bf16.xpose.msra.mxu0 0
        %1776 = vmatprep.subr.bf16.mxu0 0
        %1777 = vmatpush1.bf16.xpose.msra.mxu0 %v1760
        %1778 = vmatprep.subr.bf16.mxu0 0
        %1779 = vmatpush2.bf16.xpose.msra.mxu0 0
        %1780 = vmatprep.subr.bf16.mxu0 0
        %1781 = vmatpush2.bf16.xpose.msra.mxu0 0
        %1782 = vmatprep.subr.bf16.mxu0 0
        %1783 = vmatpush2.bf16.xpose.msra.mxu0 0
        %1784 = vmatprep.subr.bf16.mxu0 0
        %1785 = vmatpush2.bf16.xpose.msra.mxu0 0
        %1786 = vmatprep.subr.bf16.mxu0 0
        %1787 = vmatpush2.bf16.xpose.msra.mxu0 0
        %1788 = vmatprep.subr.bf16.mxu0 0
        %1789 = vmatpush2.bf16.xpose.msra.mxu0 0
        %1790 = vmatprep.subr.bf16.mxu0 0
        %1791 = vmatpush2.bf16.xpose.msra.mxu0 0
        %1792 = vmatprep.subr.bf16.mxu0 0
        %1793 = vmatpush2.bf16.xpose.msra.mxu0 0
        %1794 = vmatprep.mubr.bf16.mxu0 0
        %1795 = vmatmul.mubr.bf16.gmra.mxu0 %v1757
        %v1796 = vpop.f32.mrf.mxu0
        %v1797 = vadd.f32 %v1740, %v1796
        %v1798 = vpop.f32.mrf.mxu0
        %v1799 = vpop.f32.mrf.mxu0
        %v1800 = vadd.f32 %v1741, %v1799
        %v1801 = vpop.f32.mrf.mxu0
        %1802 = vdwg.mxu0
        %v1805 = vunpack.c.l.b16 %v1729
        %v1806 = vunpack.c.l.b16 %v1730
        %v1807 = vpack.c.b16 %v1806, %v1805
        %1808 = vrot.lane.b32.xlu0 %v1807, 104
        %v1809 = vpop.permute.xlu0 %1808
        %v1812 = vunpack.c.l.b16 %v1733
        %v1813 = vunpack.c.l.b16 %v1734
        %v1814 = vpack.c.b16 %v1813, %v1812
        %1815 = vrot.lane.b32.xlu0 %v1814, 104
        %v1816 = vpop.permute.xlu0 %1815
        %v1818 = vsel %vm798, %v1809, 0
        %v1821 = vsel %vm798, %v1816, 0
        %1823 = vmatprep.subr.bf16.mxu0 0
        %1824 = vmatpush1.bf16.xpose.msra.mxu0 0
        %1825 = vmatprep.subr.bf16.mxu0 0
        %1826 = vmatpush1.bf16.xpose.msra.mxu0 0
        %1827 = vmatprep.subr.bf16.mxu0 0
        %1828 = vmatpush1.bf16.xpose.msra.mxu0 0
        %1829 = vmatprep.subr.bf16.mxu0 0
        %1830 = vmatpush1.bf16.xpose.msra.mxu0 0
        %1831 = vmatprep.subr.bf16.mxu0 0
        %1832 = vmatpush1.bf16.xpose.msra.mxu0 0
        %1833 = vmatprep.subr.bf16.mxu0 0
        %1834 = vmatpush1.bf16.xpose.msra.mxu0 0
        %1835 = vmatprep.subr.bf16.mxu0 0
        %1836 = vmatpush1.bf16.xpose.msra.mxu0 0
        %1837 = vmatprep.subr.bf16.mxu0 0
        %1838 = vmatpush1.bf16.xpose.msra.mxu0 %v1821
        %1839 = vmatprep.subr.bf16.mxu0 0
        %1840 = vmatpush2.bf16.xpose.msra.mxu0 0
        %1841 = vmatprep.subr.bf16.mxu0 0
        %1842 = vmatpush2.bf16.xpose.msra.mxu0 0
        %1843 = vmatprep.subr.bf16.mxu0 0
        %1844 = vmatpush2.bf16.xpose.msra.mxu0 0
        %1845 = vmatprep.subr.bf16.mxu0 0
        %1846 = vmatpush2.bf16.xpose.msra.mxu0 0
        %1847 = vmatprep.subr.bf16.mxu0 0
        %1848 = vmatpush2.bf16.xpose.msra.mxu0 0
        %1849 = vmatprep.subr.bf16.mxu0 0
        %1850 = vmatpush2.bf16.xpose.msra.mxu0 0
        %1851 = vmatprep.subr.bf16.mxu0 0
        %1852 = vmatpush2.bf16.xpose.msra.mxu0 0
        %1853 = vmatprep.subr.bf16.mxu0 0
        %1854 = vmatpush2.bf16.xpose.msra.mxu0 0
        %1855 = vmatprep.mubr.bf16.mxu0 0
        %1856 = vmatmul.mubr.bf16.gmra.mxu0 %v1818
        %v1857 = vpop.f32.mrf.mxu0
        %v1858 = vadd.f32 %v1740, %v1857
        %v1859 = vpop.f32.mrf.mxu0
        %v1860 = vpop.f32.mrf.mxu0
        %v1861 = vadd.f32 %v1741, %v1860
        %v1862 = vpop.f32.mrf.mxu0
        %1863 = vdwg.mxu0
        %v1864 = vld [vmem:[#allocation12] sm:$0xff]
        %v1865 = vld [vmem:[#allocation12 + $0x8] sm:$0xff]
        %v1866 = vld [vmem:[#allocation12 + $0x10] sm:$0xff]
        %v1867 = vld [vmem:[#allocation12 + $0x18] sm:$0xff]
        %v1868 = vadd.f32 %v1797, %v1864
        %v1869 = vadd.f32 %v1800, %v1865
        %v1870 = vadd.f32 %v1858, %v1866
        %v1871 = vadd.f32 %v1861, %v1867
        %v1872 = vsel %vm911, %v1868, -inf
        %1873 = vmax.xlane.f32.xlu0 %v1872
        %v1874 = vpop.xlane.xlu0 %1873
        %v1875 = vsel %vm911, %v1869, -inf
        %1876 = vmax.xlane.f32.xlu0 %v1875
        %v1877 = vpop.xlane.xlu0 %1876
        %v1878 = vsel %vm911, %v1870, -inf
        %1879 = vmax.xlane.f32.xlu0 %v1878
        %v1880 = vpop.xlane.xlu0 %1879
        %v1881 = vsel %vm911, %v1871, -inf
        %1882 = vmax.xlane.f32.xlu0 %v1881
        %v1883 = vpop.xlane.xlu0 %1882
        %v1884 = vsub.f32 %v1868, %v1874
        %v1885 = vsub.f32 %v1869, %v1877
        %v1886 = vsub.f32 %v1870, %v1880
        %v1887 = vsub.f32 %v1871, %v1883
        %v1888 = vmul.f32 %v1884, 1.442695
        %v1889 = vpow.pop %v1888
        %v1890 = vmul.f32 %v1885, 1.442695
        %v1891 = vpow.pop %v1890
        %v1892 = vmul.f32 %v1886, 1.442695
        %v1893 = vpow.pop %v1892
        %v1894 = vmul.f32 %v1887, 1.442695
        %v1895 = vpow.pop %v1894
        %v1896 = vsel %vm911, %v1889, 0.0
        %1897 = vadd.xlane.f32.xlu0 %v1896
        %v1898 = vpop.xlane.xlu0 %1897
        %v1899 = vsel %vm911, %v1891, 0.0
        %1900 = vadd.xlane.f32.xlu0 %v1899
        %v1901 = vpop.xlane.xlu0 %1900
        %v1902 = vsel %vm911, %v1893, 0.0
        %1903 = vadd.xlane.f32.xlu0 %v1902
        %v1904 = vpop.xlane.xlu0 %1903
        %v1905 = vsel %vm911, %v1895, 0.0
        %1906 = vadd.xlane.f32.xlu0 %v1905
        %v1907 = vpop.xlane.xlu0 %1906
        %v1908 = vrcp.pop %v1898
        %v1909 = vrcp.pop %v1901
        %v1910 = vrcp.pop %v1904
        %v1911 = vrcp.pop %v1907
        %v1912 = vmul.f32 %v1889, %v1908
        %v1913 = vmul.f32 %v1891, %v1909
        %v1914 = vmul.f32 %v1893, %v1910
        %v1915 = vmul.f32 %v1895, %v1911
        %v1916 = vpack.c.bf16 %v1913, %v1912
        %v1917 = vpack.c.bf16 %v1915, %v1914
        %v1920 = vunpack.c.l.b16 %v1735
        %v1921 = vunpack.c.l.b16 %v1736
        %v1922 = vpack.c.b16 %v1921, %v1920
        %1923 = vrot.lane.b32.xlu0 %v1922, 104
        %v1924 = vpop.permute.xlu0 %1923
        %v1927 = vsel %vm911, %v1916, 0
        %1929 = vmatprep.subr.bf16.mxu0 0
        %1930 = vmatpush1.bf16.msra.mxu0 0
        %1931 = vmatprep.subr.bf16.mxu0 0
        %1932 = vmatpush1.bf16.msra.mxu0 0
        %1933 = vmatprep.subr.bf16.mxu0 0
        %1934 = vmatpush1.bf16.msra.mxu0 0
        %1935 = vmatprep.subr.bf16.mxu0 0
        %1936 = vmatpush1.bf16.msra.mxu0 0
        %1937 = vmatprep.subr.bf16.mxu0 0
        %1938 = vmatpush1.bf16.msra.mxu0 0
        %1939 = vmatprep.subr.bf16.mxu0 0
        %1940 = vmatpush1.bf16.msra.mxu0 0
        %1941 = vmatprep.subr.bf16.mxu0 0
        %1942 = vmatpush1.bf16.msra.mxu0 0
        %1943 = vmatprep.subr.bf16.mxu0 0
        %1944 = vmatpush1.bf16.msra.mxu0 %v1924
        %1945 = vmatprep.subr.bf16.mxu0 0
        %1946 = vmatpush2.bf16.msra.mxu0 0
        %1947 = vmatprep.subr.bf16.mxu0 0
        %1948 = vmatpush2.bf16.msra.mxu0 0
        %1949 = vmatprep.subr.bf16.mxu0 0
        %1950 = vmatpush2.bf16.msra.mxu0 0
        %1951 = vmatprep.subr.bf16.mxu0 0
        %1952 = vmatpush2.bf16.msra.mxu0 0
        %1953 = vmatprep.subr.bf16.mxu0 0
        %1954 = vmatpush2.bf16.msra.mxu0 0
        %1955 = vmatprep.subr.bf16.mxu0 0
        %1956 = vmatpush2.bf16.msra.mxu0 0
        %1957 = vmatprep.subr.bf16.mxu0 0
        %1958 = vmatpush2.bf16.msra.mxu0 0
        %1959 = vmatprep.subr.bf16.mxu0 0
        %1960 = vmatpush2.bf16.msra.mxu0 0
        %1961 = vmatprep.mubr.bf16.mxu0 0
        %1962 = vmatmul.mubr.bf16.gmra.mxu0 %v1927
        %v1963 = vpop.f32.mrf.mxu0
        %v1964 = vadd.f32 0.0, %v1963
        %v1965 = vpop.f32.mrf.mxu0
        %v1966 = vpop.f32.mrf.mxu0
        %v1967 = vadd.f32 0.0, %v1966
        %v1968 = vpop.f32.mrf.mxu0
        %1969 = vdwg.mxu0
        %v1972 = vunpack.c.l.b16 %v1737
        %v1973 = vunpack.c.l.b16 %v1738
        %v1974 = vpack.c.b16 %v1973, %v1972
        %1975 = vrot.lane.b32.xlu0 %v1974, 104
        %v1976 = vpop.permute.xlu0 %1975
        %v1979 = vsel %vm911, %v1917, 0
        %1981 = vmatprep.subr.bf16.mxu0 0
        %1982 = vmatpush1.bf16.msra.mxu0 0
        %1983 = vmatprep.subr.bf16.mxu0 0
        %1984 = vmatpush1.bf16.msra.mxu0 0
        %1985 = vmatprep.subr.bf16.mxu0 0
        %1986 = vmatpush1.bf16.msra.mxu0 0
        %1987 = vmatprep.subr.bf16.mxu0 0
        %1988 = vmatpush1.bf16.msra.mxu0 0
        %1989 = vmatprep.subr.bf16.mxu0 0
        %1990 = vmatpush1.bf16.msra.mxu0 0
        %1991 = vmatprep.subr.bf16.mxu0 0
        %1992 = vmatpush1.bf16.msra.mxu0 0
        %1993 = vmatprep.subr.bf16.mxu0 0
        %1994 = vmatpush1.bf16.msra.mxu0 0
        %1995 = vmatprep.subr.bf16.mxu0 0
        %1996 = vmatpush1.bf16.msra.mxu0 %v1976
        %1997 = vmatprep.subr.bf16.mxu0 0
        %1998 = vmatpush2.bf16.msra.mxu0 0
        %1999 = vmatprep.subr.bf16.mxu0 0
        %2000 = vmatpush2.bf16.msra.mxu0 0
        %2001 = vmatprep.subr.bf16.mxu0 0
        %2002 = vmatpush2.bf16.msra.mxu0 0
        %2003 = vmatprep.subr.bf16.mxu0 0
        %2004 = vmatpush2.bf16.msra.mxu0 0
        %2005 = vmatprep.subr.bf16.mxu0 0
        %2006 = vmatpush2.bf16.msra.mxu0 0
        %2007 = vmatprep.subr.bf16.mxu0 0
        %2008 = vmatpush2.bf16.msra.mxu0 0
        %2009 = vmatprep.subr.bf16.mxu0 0
        %2010 = vmatpush2.bf16.msra.mxu0 0
        %2011 = vmatprep.subr.bf16.mxu0 0
        %2012 = vmatpush2.bf16.msra.mxu0 0
        %2013 = vmatprep.mubr.bf16.mxu0 0
        %2014 = vmatmul.mubr.bf16.gmra.mxu0 %v1979
        %v2015 = vpop.f32.mrf.mxu0
        %v2016 = vadd.f32 0.0, %v2015
        %v2017 = vpop.f32.mrf.mxu0
        %v2018 = vpop.f32.mrf.mxu0
        %v2019 = vadd.f32 0.0, %v2018
        %v2020 = vpop.f32.mrf.mxu0
        %2021 = vdwg.mxu0
        %v2022 = vpack.c.bf16 %v1967, %v1964
        %v2023 = vpack.c.bf16 %v2019, %v2016
        %v2026 = vunpack.c.l.b16 %v2022
        %v2027 = vunpack.c.h.b16 %v2022
        %v2028 = vunpack.c.l.b16 %v2023
        %v2029 = vunpack.c.h.b16 %v2023
        %v2030 = vpack.c.b16 %v2026, %v2026
        %v2031 = vpack.c.b16 %v2027, %v2027
        %v2032 = vpack.c.b16 %v2028, %v2028
        %v2033 = vpack.c.b16 %v2029, %v2029
        %2034 = vrot.lane.b32.xlu0 %v2030, 24
        %v2035 = vpop.permute.xlu0 %2034
        %2036 = vrot.lane.b32.xlu0 %v2031, 24
        %v2037 = vpop.permute.xlu0 %2036
        %2038 = vrot.lane.b32.xlu0 %v2032, 24
        %v2039 = vpop.permute.xlu0 %2038
        %2040 = vrot.lane.b32.xlu0 %v2033, 24
        %v2041 = vpop.permute.xlu0 %2040
        %vm2046 = vcmask 257216
        %2047 = vst.msk [vmem:[#allocation3] sm:$0xf] %vm2046, %v2035
        %2048 = vst.msk [vmem:[#allocation3 + $0x4] sm:$0xf] %vm2046, %v2037
        %2049 = vst.msk [vmem:[#allocation3 + $0x8] sm:$0xf] %vm2046, %v2039
        %2050 = vst.msk [vmem:[#allocation3 + $0xc] sm:$0xf] %vm2046, %v2041
        %v2051 = vld [vmem:[#allocation3] sm:$0xf]
        %v2052 = vld [vmem:[#allocation3 + $0x4] sm:$0xf]
        %v2053 = vld [vmem:[#allocation3 + $0x8] sm:$0xf]
        %v2054 = vld [vmem:[#allocation3 + $0xc] sm:$0xf]
        %v2055 = vld [vmem:[%s384] sm:$0xf]
        %v2056 = vld [vmem:[%s384 + $0x4] sm:$0xf]
        %v2057 = vld [vmem:[%s384 + $0x8] sm:$0xf]
        %v2058 = vld [vmem:[%s384 + $0xc] sm:$0xf]
        %v2059 = vadd.bf16 %v2051, %v2055
        %v2060 = vadd.bf16 %v2052, %v2056
        %v2061 = vadd.bf16 %v2053, %v2057
        %v2062 = vadd.bf16 %v2054, %v2058
        %v2063 = vld [vmem:[#allocation10] sm:$0xf]
        %v2064 = vld [vmem:[#allocation10 + $0x4] sm:$0xf]
        %v2065 = vld [vmem:[#allocation10 + $0x8] sm:$0xf]
        %v2066 = vld [vmem:[#allocation10 + $0xc] sm:$0xf]
        %v2067 = vld [vmem:[#allocation10 + $0x10] sm:$0xf]
        %v2068 = vld [vmem:[#allocation10 + $0x14] sm:$0xf]
        %v2069 = vld [vmem:[#allocation10 + $0x18] sm:$0xf]
        %v2070 = vld [vmem:[#allocation10 + $0x1c] sm:$0xf]
        %v2071 = vld [vmem:[#allocation10 + $0x20] sm:$0xf]
        %v2072 = vld [vmem:[#allocation10 + $0x24] sm:$0xf]
        %v2073 = vld [vmem:[#allocation10 + $0x28] sm:$0xf]
        %v2074 = vld [vmem:[#allocation10 + $0x2c] sm:$0xf]
        %v2075 = vld [vmem:[#allocation10 + $0x30] sm:$0xf]
        %v2076 = vld [vmem:[#allocation10 + $0x34] sm:$0xf]
        %v2077 = vld [vmem:[#allocation10 + $0x38] sm:$0xf]
        %v2078 = vld [vmem:[#allocation10 + $0x3c] sm:$0xf]
        %v2079 = vld [vmem:[%s5] sm:$0x1]
        %v2081 = vlaneseq
        %v2082 = vshrl.u32 %v2081, 7
        %v2083 = vsub.s32 0, %v2082
        %v2084 = vrot.slane %v2079, %v2083
        %v2090 = vunpack.c.l.b16 %v2059
        %v2091 = vunpack.c.l.b16 %v2060
        %v2092 = vunpack.c.l.b16 %v2061
        %v2093 = vunpack.c.l.b16 %v2062
        %v2094 = vpack.c.b16 %v2091, %v2090
        %v2095 = vpack.c.b16 %v2093, %v2092
        %v2114 = vunpack.c.l.b16 %v2063
        %v2115 = vunpack.c.l.b16 %v2064
        %v2116 = vunpack.c.l.b16 %v2065
        %v2117 = vunpack.c.l.b16 %v2066
        %v2118 = vunpack.c.l.b16 %v2067
        %v2119 = vunpack.c.l.b16 %v2068
        %v2120 = vunpack.c.l.b16 %v2069
        %v2121 = vunpack.c.l.b16 %v2070
        %v2122 = vunpack.c.l.b16 %v2071
        %v2123 = vunpack.c.l.b16 %v2072
        %v2124 = vunpack.c.l.b16 %v2073
        %v2125 = vunpack.c.l.b16 %v2074
        %v2126 = vunpack.c.l.b16 %v2075
        %v2127 = vunpack.c.l.b16 %v2076
        %v2128 = vunpack.c.l.b16 %v2077
        %v2129 = vunpack.c.l.b16 %v2078
        %v2130 = vpack.c.b16 %v2115, %v2114
        %v2131 = vpack.c.b16 %v2117, %v2116
        %v2132 = vpack.c.b16 %v2119, %v2118
        %v2133 = vpack.c.b16 %v2121, %v2120
        %v2134 = vpack.c.b16 %v2123, %v2122
        %v2135 = vpack.c.b16 %v2125, %v2124
        %v2136 = vpack.c.b16 %v2127, %v2126
        %v2137 = vpack.c.b16 %v2129, %v2128
        %2146 = vmatprep.subr.bf16.mxu0 0
        %2147 = vmatpush1.bf16.msra.mxu0 %v2137
        %2148 = vmatprep.subr.bf16.mxu0 0
        %2149 = vmatpush1.bf16.msra.mxu0 %v2136
        %2150 = vmatprep.subr.bf16.mxu0 0
        %2151 = vmatpush1.bf16.msra.mxu0 %v2135
        %2152 = vmatprep.subr.bf16.mxu0 0
        %2153 = vmatpush1.bf16.msra.mxu0 %v2134
        %2154 = vmatprep.subr.bf16.mxu0 0
        %2155 = vmatpush1.bf16.msra.mxu0 %v2133
        %2156 = vmatprep.subr.bf16.mxu0 0
        %2157 = vmatpush1.bf16.msra.mxu0 %v2132
        %2158 = vmatprep.subr.bf16.mxu0 0
        %2159 = vmatpush1.bf16.msra.mxu0 %v2131
        %2160 = vmatprep.subr.bf16.mxu0 0
        %2161 = vmatpush1.bf16.msra.mxu0 %v2130
        %2162 = vmatprep.subr.bf16.mxu0 0
        %2163 = vmatpush2.bf16.msra.mxu0 0
        %2164 = vmatprep.subr.bf16.mxu0 0
        %2165 = vmatpush2.bf16.msra.mxu0 0
        %2166 = vmatprep.subr.bf16.mxu0 0
        %2167 = vmatpush2.bf16.msra.mxu0 0
        %2168 = vmatprep.subr.bf16.mxu0 0
        %2169 = vmatpush2.bf16.msra.mxu0 0
        %2170 = vmatprep.subr.bf16.mxu0 0
        %2171 = vmatpush2.bf16.msra.mxu0 0
        %2172 = vmatprep.subr.bf16.mxu0 0
        %2173 = vmatpush2.bf16.msra.mxu0 0
        %2174 = vmatprep.subr.bf16.mxu0 0
        %2175 = vmatpush2.bf16.msra.mxu0 0
        %2176 = vmatprep.subr.bf16.mxu0 0
        %2177 = vmatpush2.bf16.msra.mxu0 0
        %2178 = vmatprep.mubr.bf16.mxu0 0
        %2179 = vmatmul.mubr.bf16.gmra.mxu0 %v2094
        %v2180 = vpop.f32.mrf.mxu0
        %v2181 = vadd.f32 %v2084, %v2180
        %v2182 = vpop.f32.mrf.mxu0
        %v2183 = vpop.f32.mrf.mxu0
        %v2184 = vadd.f32 %v2084, %v2183
        %v2185 = vpop.f32.mrf.mxu0
        %2186 = vmatprep.mubr.bf16.mxu0 0
        %2187 = vmatmul.mubr.bf16.gmra.mxu0 %v2095
        %v2188 = vpop.f32.mrf.mxu0
        %v2189 = vadd.f32 %v2084, %v2188
        %v2190 = vpop.f32.mrf.mxu0
        %v2191 = vpop.f32.mrf.mxu0
        %v2192 = vadd.f32 %v2084, %v2191
        %v2193 = vpop.f32.mrf.mxu0
        %2194 = vdwg.mxu0
        %2195 = vst [vmem:[%s421] sm:$0xff] %v2181
        %2196 = vst [vmem:[%s421 + $0x8] sm:$0xff] %v2184
        %2197 = vst [vmem:[%s421 + $0x10] sm:$0xff] %v2189
        %2198 = vst [vmem:[%s421 + $0x18] sm:$0xff] %v2192
        %s2199 = sand.u32 %s216, 1
        %s2200 = scalar_lea.sflag [#allocation6], %s2199
        %s2201 = sand.u32 %s216, 1
        %s2202 = smul.addr %s2201, 32
        %s2203 = scalar_lea.vmem [#allocation15], %s2202
        // Predicated region
        $region77: #{tpu_custom_call.1} parent=51 // pred_check
          %p2204 = pneg %p226
        $region78: #{tpu_custom_call.1} parent=51 // pred_check_branch
          %2206 = sbr.rel (%p2204) target = $region80
        $region79: #{tpu_custom_call.1} parent=51 // pred_region
          %s2207 = smul.u32 4, %s30
          %s2209 = ssub.s32 512, 512
          %2210 = vsyncadd %s2200, %s2209
          %s2211 = smul.addr %s2207, 128
          %s2212 = scalar_lea.hbm %s8, %s2211
          %s2213 = sshll.u32 %s2203, 4
          %s2214 = int_to_ptr.vmem [resolvable:$true] %s2213
          %2219 = dma.vmem_to_hbm [thread:$0]  %s2214, 512, %s2212, %s2200, 128, 128, 8
        $region80: #{tpu_custom_call.1} parent=51 // pred_fallthru
          _
      $region52: #{tpu_custom_call.1} parent=5 // pred_fallthru
        _
      %p2220 = scmp.le.s32.totalorder 2, %s25
      // Predicated region
      $region81: #{tpu_custom_call.1} parent=5 // pred_check
        %p2221 = pneg %p2220
      $region82: #{tpu_custom_call.1} parent=5 // pred_check_branch
        %2223 = sbr.rel (%p2221) target = $region84
      $region83: #{tpu_custom_call.1} parent=5 // pred_region
        %s2224 = ssub.s32 %s25, 2
        // Predicated region
        $region85: #{tpu_custom_call.1} parent=83 // pred_check
          %p2225 = pneg %p232
        $region86: #{tpu_custom_call.1} parent=83 // pred_check_branch
          %2227 = sbr.rel (%p2225) target = $region88
        $region87: #{tpu_custom_call.1} parent=83 // pred_region
          %s2228 = sand.u32 %s217, 1
          %s2229 = scalar_lea.sflag [#allocation6], %s2228
          %s2230 = sand.u32 %s217, 1
          %s2231 = smul.addr %s2230, 32
          %s2232 = scalar_lea.vmem [#allocation15], %s2231
          %2233 = dma.done %s2229, 512
        $region88: #{tpu_custom_call.1} parent=83 // pred_fallthru
          _
      $region84: #{tpu_custom_call.1} parent=5 // pred_fallthru
        _
    $region6: #{tpu_custom_call.1} parent=1 // loop_footer
      %s29 = sadd.s32 1, %s25
    $region7: #{tpu_custom_call.1} parent=1 // loop_footer_branch
      %24 = sbr.rel target = $region3
    $region8: #{tpu_custom_call.1} parent=1 // loop_exit
      _
    %2234 = vsyncpa [#allocation5], 1
    %s2235 = scalar_lea.sflag [#allocation5], 1
    %2236 = vsyncpa %s2235, 1
    %2237 = vsyncpa [#allocation8], 1
    %2238 = vsyncpa [#allocation11], 1
    %2239 = vsyncpa [#allocation14], 1
    %s2240 = scalar_lea.sflag [#allocation14], 1
    %2241 = vsyncpa %s2240, 1
    %2242 = vsyncpa [#allocation6], 1
    %s2243 = scalar_lea.sflag [#allocation6], 1
    %2244 = vsyncpa %s2243, 1

</llo_original>
